<compile_context>
chip_gen: v5e
topology: v5e:2x2
jax: 0.10.0
libtpu: 0.0.40
codegen_flags: <defaults>
</compile_context>

<pallas_src>
import functools

import jax
import jax.numpy as jnp
import numpy as np
from jax import lax
from jax.experimental import pallas as pl
from jax.experimental.pallas import tpu as pltpu


EPS = 1e-6


def _downsample_kernel(x_ref, w_ref, b_ref, o_ref, *, c, num_taps, mxu_dtype):
    # x_ref: (tm, num_taps*c)  patches, channels fastest within each tap
    # w_ref: (num_taps*c, O)   conv weight with LN gamma folded in (bf16)
    # b_ref: (1, O)            conv bias with LN beta folded in (f32)
    # o_ref: (tm, O)
    x = x_ref[...].astype(jnp.float32)

    # LayerNorm over each c-sized channel segment (one segment per (kh, kw) tap).
    segs = []
    for p in range(num_taps):
        seg = x[:, p * c:(p + 1) * c]
        mean = jnp.mean(seg, axis=-1, keepdims=True)
        cent = seg - mean
        var = jnp.mean(cent * cent, axis=-1, keepdims=True)
        segs.append(cent * lax.rsqrt(var + EPS))
    xn = jnp.concatenate(segs, axis=-1) if num_taps > 1 else segs[0]

    # Single MXU dot with K = num_taps*c (gamma already folded into w, beta into b).
    out = jnp.dot(xn.astype(mxu_dtype), w_ref[...],
                  preferred_element_type=jnp.float32)
    out = out + b_ref[...]
    o_ref[...] = out.astype(o_ref.dtype)


@functools.partial(jax.jit, static_argnames=("tm", "mxu_dtype"))
def downsample(x, gamma, beta, w_conv, b_conv, *, tm=512, mxu_dtype=jnp.bfloat16):
    """x: (N, C, D, H, W) float32  ->  (N, O, D, H//2, W//2) float32."""
    N, C, D, H, W = x.shape
    O = w_conv.shape[0]
    H2, W2 = H // 2, W // 2
    M = N * D * H2 * W2
    K = 4 * C

    # ---- glue: patch-major, channels-last view (one transpose + free reshapes) ----
    xv = x.reshape(N, C, D, H2, 2, W2, 2)
    xp = jnp.transpose(xv, (0, 2, 3, 5, 4, 6, 1))          # (N, D, H2, W2, kh, kw, C)
    patches = xp.reshape(M, K)

    # ---- fold LayerNorm affine into the conv weight / bias ----
    # conv weight (O, C, 1, 2, 2) -> (kh, kw, C, O)
    w4 = jnp.transpose(w_conv[:, :, 0], (2, 3, 1, 0))
    bias_f = (b_conv + jnp.einsum("hwco,c->o", w4, beta)).astype(jnp.float32)
    w_f = (w4 * gamma[None, None, :, None]).reshape(K, O).astype(mxu_dtype)
    bias2 = bias_f.reshape(1, O)

    # ---- tile selection: multiple of 8, <= tm, keep >= 2 grid steps (v7x megacore) ----
    tm_eff = ((max(8, min(tm, M)) + 7) // 8) * 8
    half = (M + 1) // 2
    if M >= 16 and tm_eff > half:
        tm_eff = ((half + 7) // 8) * 8
    grid_m = -(-M // tm_eff)          # cdiv
    Mp = grid_m * tm_eff
    if Mp != M:                       # zero-pad the tail tile (safe through LN: eps > 0)
        patches = jnp.pad(patches, ((0, Mp - M), (0, 0)))

    kernel = functools.partial(_downsample_kernel, c=C, num_taps=4,
                               mxu_dtype=mxu_dtype)

    out_flat = pl.pallas_call(
        kernel,
        out_shape=jax.ShapeDtypeStruct((Mp, O), x.dtype),
        grid_spec=pltpu.PrefetchScalarGridSpec(
            num_scalar_prefetch=0,
            grid=(grid_m,),
            in_specs=[
                pl.BlockSpec((tm_eff, K), lambda i: (i, 0)),
                # constant index_map -> fetched once, reused for every grid step
                pl.BlockSpec((K, O), lambda i: (0, 0)),
                pl.BlockSpec((1, O), lambda i: (0, 0)),
            ],
            out_specs=pl.BlockSpec((tm_eff, O), lambda i: (i, 0)),
        ),
        compiler_params=pltpu.CompilerParams(
            dimension_semantics=("parallel",)),
    )(patches, w_f, bias2)

    # ---- glue: back to NCDHW ----
    out = out_flat[:M].reshape(N, D, H2, W2, O)
    return jnp.transpose(out, (0, 4, 1, 2, 3))              # (N, O, D, H2, W2)


def _reference(x, gamma, beta, w_conv, b_conv):
    """Faithful f32 reference of the PyTorch module (LN over channels + Conv3d)."""
    u = jnp.mean(x, axis=1, keepdims=True)
    s = jnp.mean((x - u) ** 2, axis=1, keepdims=True)
    xn = (x - u) / jnp.sqrt(s + EPS)
    xn = gamma[None, :, None, None, None] * xn + beta[None, :, None, None, None]
    y = lax.conv_general_dilated(
        xn, w_conv, window_strides=(1, 2, 2), padding="VALID",
        dimension_numbers=("NCDHW", "OIDHW", "NCDHW"))
    return y + b_conv[None, :, None, None, None]


def _reference_matched(x, gamma, beta, w_conv, b_conv, mxu_dtype=jnp.bfloat16):
    """Same math as the kernel (f32 LN, folded affine, bf16 MXU dot) — validates
    the pallas_call plumbing (tiling / padding / weight packing) tightly."""
    N, C, D, H, W = x.shape
    O = w_conv.shape[0]
    H2, W2 = H // 2, W // 2
    xv = x.reshape(N, C, D, H2, 2, W2, 2)
    xp = jnp.transpose(xv, (0, 2, 3, 5, 4, 6, 1))          # (N, D, H2, W2, kh, kw, C)
    mean = jnp.mean(xp, axis=-1, keepdims=True)
    cent = xp - mean
    var = jnp.mean(cent * cent, axis=-1, keepdims=True)
    xn = cent * lax.rsqrt(var + EPS)
    w4 = jnp.transpose(w_conv[:, :, 0], (2, 3, 1, 0))
    w_f = (w4 * gamma[None, None, :, None]).reshape(4 * C, O).astype(mxu_dtype)
    bias_f = b_conv + jnp.einsum("hwco,c->o", w4, beta)
    out = jnp.dot(xn.reshape(-1, 4 * C).astype(mxu_dtype), w_f,
                  preferred_element_type=jnp.float32) + bias_f
    out = out.reshape(N, D, H2, W2, O)
    return jnp.transpose(out, (0, 4, 1, 2, 3))


if __name__ == "__main__":
    key = jax.random.PRNGKey(0)
    k_x, k_w, k_b = jax.random.split(key, 3)

    N, C, D, H, W = 2, 4, 4, 16, 16
    O = 8

    x = jax.random.normal(k_x, (N, C, D, H, W), dtype=jnp.float32)

    # LayerNorm params (PyTorch init: ones / zeros)
    gamma = jnp.ones((C,), jnp.float32)
    beta = jnp.zeros((C,), jnp.float32)

    # Conv3d params, deterministic random init (shape (O, C, 1, 2, 2))
    fan_in = C * 1 * 2 * 2
    bound = 1.0 / np.sqrt(fan_in)
    w_conv = jax.random.uniform(k_w, (O, C, 1, 2, 2), jnp.float32, -bound, bound)
    b_conv = jax.random.uniform(k_b, (O,), jnp.float32, -bound, bound)

    y = downsample(x, gamma, beta, w_conv, b_conv)
    y = jax.block_until_ready(y)

    # Tight check against the same-precision (bf16 MXU) reference.
    y_match = _reference_matched(x, gamma, beta, w_conv, b_conv)
    np.testing.assert_allclose(np.asarray(y), np.asarray(y_match),
                               rtol=5e-4, atol=1e-4)

    # Loose check against the pure-f32 PyTorch-equivalent reference.
    # (The bf16 MXU path introduces ~1e-2-scale diffs vs full f32.)
    y_ref = _reference(x, gamma, beta, w_conv, b_conv)
    np.testing.assert_allclose(np.asarray(y), np.asarray(y_ref),
                               rtol=5e-2, atol=5e-2)

    print("KERNEL_OK")
</pallas_src>

<mosaic_0001>
module attributes {stable_mosaic.version = 11 : i64} {
  func.func @_downsample_kernel(%arg0: i32, %arg1: memref<256x16xf32, #tpu.memory_space<vmem>>, %arg2: memref<16x8xbf16, #tpu.memory_space<vmem>>, %arg3: memref<1x8xf32, #tpu.memory_space<vmem>>, %arg4: memref<256x8xf32, #tpu.memory_space<vmem>>) attributes {dimension_semantics = [#tpu.dimension_semantics<parallel>], iteration_bounds = array<i64: 2>, scalar_prefetch = 0 : i64, scratch_operands = 0 : i64, tpu.core_type = #tpu.core_type<tc>, window_params = [{transform_indices = @transform_0, window_bounds = array<i64: 256, 16>}, {pipeline_mode = #tpu.pipeline_mode<synchronous>, transform_indices = @transform_1, window_bounds = array<i64: 16, 8>}, {pipeline_mode = #tpu.pipeline_mode<synchronous>, transform_indices = @transform_2, window_bounds = array<i64: 1, 8>}, {transform_indices = @transform_3, window_bounds = array<i64: 256, 8>}]} {
    %c0 = arith.constant 0 : index
    %c0_0 = arith.constant 0 : index
    %0 = vector.load %arg1[%c0, %c0_0] : memref<256x16xf32, #tpu.memory_space<vmem>>, vector<256x16xf32>
    %1 = vector.extract_strided_slice %0 {offsets = [0, 0], sizes = [256, 4], strides = [1, 1]} : vector<256x16xf32> to vector<256x4xf32>
    %cst = arith.constant dense<0.000000e+00> : vector<256xf32>
    %2 = vector.multi_reduction <add>, %1, %cst [1] : vector<256x4xf32> to vector<256xf32>
    %3 = vector.shape_cast %2 : vector<256xf32> to vector<256x1xf32>
    %cst_1 = arith.constant 4.000000e+00 : f32
    %4 = vector.broadcast %cst_1 : f32 to vector<256x1xf32>
    %5 = arith.divf %3, %4 : vector<256x1xf32>
    %6 = vector.broadcast %5 : vector<256x1xf32> to vector<256x4xf32>
    %7 = arith.subf %1, %6 : vector<256x4xf32>
    %8 = arith.mulf %7, %7 : vector<256x4xf32>
    %cst_2 = arith.constant dense<0.000000e+00> : vector<256xf32>
    %9 = vector.multi_reduction <add>, %8, %cst_2 [1] : vector<256x4xf32> to vector<256xf32>
    %10 = vector.shape_cast %9 : vector<256xf32> to vector<256x1xf32>
    %cst_3 = arith.constant 4.000000e+00 : f32
    %11 = vector.broadcast %cst_3 : f32 to vector<256x1xf32>
    %12 = arith.divf %10, %11 : vector<256x1xf32>
    %cst_4 = arith.constant 9.99999997E-7 : f32
    %13 = vector.broadcast %cst_4 : f32 to vector<256x1xf32>
    %14 = arith.addf %12, %13 : vector<256x1xf32>
    %15 = math.rsqrt %14 : vector<256x1xf32>
    %16 = vector.broadcast %15 : vector<256x1xf32> to vector<256x4xf32>
    %17 = arith.mulf %7, %16 : vector<256x4xf32>
    %18 = vector.extract_strided_slice %0 {offsets = [0, 4], sizes = [256, 4], strides = [1, 1]} : vector<256x16xf32> to vector<256x4xf32>
    %cst_5 = arith.constant dense<0.000000e+00> : vector<256xf32>
    %19 = vector.multi_reduction <add>, %18, %cst_5 [1] : vector<256x4xf32> to vector<256xf32>
    %20 = vector.shape_cast %19 : vector<256xf32> to vector<256x1xf32>
    %cst_6 = arith.constant 4.000000e+00 : f32
    %21 = vector.broadcast %cst_6 : f32 to vector<256x1xf32>
    %22 = arith.divf %20, %21 : vector<256x1xf32>
    %23 = vector.broadcast %22 : vector<256x1xf32> to vector<256x4xf32>
    %24 = arith.subf %18, %23 : vector<256x4xf32>
    %25 = arith.mulf %24, %24 : vector<256x4xf32>
    %cst_7 = arith.constant dense<0.000000e+00> : vector<256xf32>
    %26 = vector.multi_reduction <add>, %25, %cst_7 [1] : vector<256x4xf32> to vector<256xf32>
    %27 = vector.shape_cast %26 : vector<256xf32> to vector<256x1xf32>
    %cst_8 = arith.constant 4.000000e+00 : f32
    %28 = vector.broadcast %cst_8 : f32 to vector<256x1xf32>
    %29 = arith.divf %27, %28 : vector<256x1xf32>
    %cst_9 = arith.constant 9.99999997E-7 : f32
    %30 = vector.broadcast %cst_9 : f32 to vector<256x1xf32>
    %31 = arith.addf %29, %30 : vector<256x1xf32>
    %32 = math.rsqrt %31 : vector<256x1xf32>
    %33 = vector.broadcast %32 : vector<256x1xf32> to vector<256x4xf32>
    %34 = arith.mulf %24, %33 : vector<256x4xf32>
    %35 = vector.extract_strided_slice %0 {offsets = [0, 8], sizes = [256, 4], strides = [1, 1]} : vector<256x16xf32> to vector<256x4xf32>
    %cst_10 = arith.constant dense<0.000000e+00> : vector<256xf32>
    %36 = vector.multi_reduction <add>, %35, %cst_10 [1] : vector<256x4xf32> to vector<256xf32>
    %37 = vector.shape_cast %36 : vector<256xf32> to vector<256x1xf32>
    %cst_11 = arith.constant 4.000000e+00 : f32
    %38 = vector.broadcast %cst_11 : f32 to vector<256x1xf32>
    %39 = arith.divf %37, %38 : vector<256x1xf32>
    %40 = vector.broadcast %39 : vector<256x1xf32> to vector<256x4xf32>
    %41 = arith.subf %35, %40 : vector<256x4xf32>
    %42 = arith.mulf %41, %41 : vector<256x4xf32>
    %cst_12 = arith.constant dense<0.000000e+00> : vector<256xf32>
    %43 = vector.multi_reduction <add>, %42, %cst_12 [1] : vector<256x4xf32> to vector<256xf32>
    %44 = vector.shape_cast %43 : vector<256xf32> to vector<256x1xf32>
    %cst_13 = arith.constant 4.000000e+00 : f32
    %45 = vector.broadcast %cst_13 : f32 to vector<256x1xf32>
    %46 = arith.divf %44, %45 : vector<256x1xf32>
    %cst_14 = arith.constant 9.99999997E-7 : f32
    %47 = vector.broadcast %cst_14 : f32 to vector<256x1xf32>
    %48 = arith.addf %46, %47 : vector<256x1xf32>
    %49 = math.rsqrt %48 : vector<256x1xf32>
    %50 = vector.broadcast %49 : vector<256x1xf32> to vector<256x4xf32>
    %51 = arith.mulf %41, %50 : vector<256x4xf32>
    %52 = vector.extract_strided_slice %0 {offsets = [0, 12], sizes = [256, 4], strides = [1, 1]} : vector<256x16xf32> to vector<256x4xf32>
    %cst_15 = arith.constant dense<0.000000e+00> : vector<256xf32>
    %53 = vector.multi_reduction <add>, %52, %cst_15 [1] : vector<256x4xf32> to vector<256xf32>
    %54 = vector.shape_cast %53 : vector<256xf32> to vector<256x1xf32>
    %cst_16 = arith.constant 4.000000e+00 : f32
    %55 = vector.broadcast %cst_16 : f32 to vector<256x1xf32>
    %56 = arith.divf %54, %55 : vector<256x1xf32>
    %57 = vector.broadcast %56 : vector<256x1xf32> to vector<256x4xf32>
    %58 = arith.subf %52, %57 : vector<256x4xf32>
    %59 = arith.mulf %58, %58 : vector<256x4xf32>
    %cst_17 = arith.constant dense<0.000000e+00> : vector<256xf32>
    %60 = vector.multi_reduction <add>, %59, %cst_17 [1] : vector<256x4xf32> to vector<256xf32>
    %61 = vector.shape_cast %60 : vector<256xf32> to vector<256x1xf32>
    %cst_18 = arith.constant 4.000000e+00 : f32
    %62 = vector.broadcast %cst_18 : f32 to vector<256x1xf32>
    %63 = arith.divf %61, %62 : vector<256x1xf32>
    %cst_19 = arith.constant 9.99999997E-7 : f32
    %64 = vector.broadcast %cst_19 : f32 to vector<256x1xf32>
    %65 = arith.addf %63, %64 : vector<256x1xf32>
    %66 = math.rsqrt %65 : vector<256x1xf32>
    %67 = vector.broadcast %66 : vector<256x1xf32> to vector<256x4xf32>
    %68 = arith.mulf %58, %67 : vector<256x4xf32>
    %69 = tpu.concatenate %17, %34, %51, %68 in 1 : vector<256x4xf32>, vector<256x4xf32>, vector<256x4xf32>, vector<256x4xf32> -> vector<256x16xf32>
    %70 = arith.truncf %69 : vector<256x16xf32> to vector<256x16xbf16>
    %c0_20 = arith.constant 0 : index
    %c0_21 = arith.constant 0 : index
    %71 = vector.load %arg2[%c0_20, %c0_21] : memref<16x8xbf16, #tpu.memory_space<vmem>>, vector<16x8xbf16>
    %cst_22 = arith.constant dense<0.000000e+00> : vector<256x8xf32>
    %72 = tpu.matmul %70, %71, %cst_22 {dimension_numbers = #tpu.dot_dimension_numbers<[1], [0], [0], [1], [0, 0, 1, 1], [], []>} : vector<256x16xbf16>, vector<16x8xbf16>, vector<256x8xf32> -> vector<256x8xf32>
    %c0_23 = arith.constant 0 : index
    %c0_24 = arith.constant 0 : index
    %73 = vector.load %arg3[%c0_23, %c0_24] : memref<1x8xf32, #tpu.memory_space<vmem>>, vector<1x8xf32>
    %74 = vector.broadcast %73 : vector<1x8xf32> to vector<256x8xf32>
    %75 = arith.addf %72, %74 : vector<256x8xf32>
    %c0_25 = arith.constant 0 : index
    %c0_26 = arith.constant 0 : index
    %76 = vector.load %arg4[%c0_25, %c0_26] : memref<256x8xf32, #tpu.memory_space<vmem>>, vector<256x8xf32>
    tpu.vector_store %arg4[%c0_25, %c0_26], %75 {strides = array<i32>} : memref<256x8xf32, #tpu.memory_space<vmem>>, vector<256x8xf32>,
    return
  }
  func.func @transform_0(%arg0: i32) -> (i32, i32) {
    %c0_i32 = arith.constant 0 : i32
    %c0_i32_0 = arith.constant 0 : i32
    return %arg0, %c0_i32 : i32, i32
  }
  func.func @transform_1(%arg0: i32) -> (i32, i32) {
    %c0_i32 = arith.constant 0 : i32
    %c0_i32_0 = arith.constant 0 : i32
    %c0_i32_1 = arith.constant 0 : i32
    return %c0_i32, %c0_i32_0 : i32, i32
  }
  func.func @transform_2(%arg0: i32) -> (i32, i32) {
    %c0_i32 = arith.constant 0 : i32
    %c0_i32_0 = arith.constant 0 : i32
    %c0_i32_1 = arith.constant 0 : i32
    return %c0_i32, %c0_i32_0 : i32, i32
  }
  func.func @transform_3(%arg0: i32) -> (i32, i32) {
    %c0_i32 = arith.constant 0 : i32
    %c0_i32_0 = arith.constant 0 : i32
    return %arg0, %c0_i32 : i32, i32
  }
}

</mosaic_0001>

<llo_original>
// kernel: downsample.1
$region0: #{downsample.1}
  #allocation0 [shape = 'u32[]', space=smem, size = 0x4, offset = 0x4, fixed_abs, tag = 'smem constant byte address 0x4 - core index']
  #allocation1 [shape = 'u32[72,128]{1,0:T(1,128)}', space=vmem, size = 0x9000, scoped, tag = 'internal scratch']
  %s0 = inlined_call_operand.vmem [shape: f32[512,16], index: 0, kind: input, shape index: {}]
  %s1 = inlined_call_operand.vmem [shape: bf16[16,8], index: 1, kind: input, shape index: {}]
  %s2 = inlined_call_operand.vmem [shape: f32[1,8], index: 2, kind: input, shape index: {}]
  %s3 = inlined_call_operand.vmem [shape: f32[512,8], index: 3, kind: output, shape index: {}]
  %s4 = sld [smem:[#allocation0]]
  $region45: #{downsample.1} parent=0
    _
  %s6 = ssub.s32 1, %s4
  %s7 = scalar_select 0, %s6, %s4
  loop: start=0, step=1, limit=4
  $region2: #{downsample.1} parent=0 // loop_pre_header
    _
  $region3: #{downsample.1} parent=0 // loop_header
    %s9 = sphi 0, %s13
    %p10 = scmp.ge.s32.totalorder %s9, 4
    %s19 = sphi 0, %s21
    %s22 = sphi 0, %s19
    %s23 = sphi 0, %s22
    %s39 = sphi 0, %s23
    %s43 = sphi 0, %s43
    %s45 = sphi 0, %s43
    %s46 = sphi 0, %s45
    %s60 = sphi 0, %s46
    %s64 = sphi 0, %s64
    %s66 = sphi 0, %s64
    %s67 = sphi 0, %s66
    %s81 = sphi 0, %s67
    %s87 = sphi 0, %s89
    %s90 = sphi 0, %s87
    %s91 = sphi 0, %s90
    %s107 = sphi 0, %s91
  $region4: #{downsample.1} parent=0 // loop_header_branch
    %12 = sbr.rel (%p10) target = $region8
  $region5: #{downsample.1} parent=0 // loop_body
    %s14 = ssub.s32 %s9, 1
    %s15 = ssub.s32 %s9, 2
    %s16 = sadd.s32 %s9, 1
    %s17 = ssub.s32 %s9, %s16
    %p18 = scmp.eq.s32.totalorder %s17, 0
    %s20 = sadd.s32 %s19, 1
    %s21 = scalar_select %p18, %s19, %s20
    %p24 = pneg %p18
    %p25 = scmp.eq.s32.totalorder %s9, 1
    %p26 = por %p24, %p25
    %p27 = scmp.ne.s32.totalorder %s19, %s22
    %p28 = scmp.eq.s32.totalorder %s9, 0
    %p29 = por %p27, %p28
    %p30 = scmp.ne.s32.totalorder %s19, %s22
    %p31 = scmp.eq.s32.totalorder %s14, 1
    %p32 = por %p30, %p31
    %p33 = scmp.ne.s32.totalorder %s22, %s23
    %p34 = scmp.eq.s32.totalorder %s14, 0
    %p35 = por %p33, %p34
    %p36 = scmp.ne.s32.totalorder %s22, %s23
    %p37 = scmp.eq.s32.totalorder %s15, 1
    %p38 = por %p36, %p37
    %p40 = scmp.ne.s32.totalorder %s23, %s39
    %p41 = scmp.eq.s32.totalorder %s15, 0
    %p42 = por %p40, %p41
    %s44 = sadd.s32 %s43, 1
    %p47 = scmp.eq.s32.totalorder %s9, 1
    %p48 = scmp.ne.s32.totalorder %s43, %s45
    %p49 = scmp.eq.s32.totalorder %s9, 0
    %p50 = por %p48, %p49
    %p51 = scmp.ne.s32.totalorder %s43, %s45
    %p52 = scmp.eq.s32.totalorder %s14, 1
    %p53 = por %p51, %p52
    %p54 = scmp.ne.s32.totalorder %s45, %s46
    %p55 = scmp.eq.s32.totalorder %s14, 0
    %p56 = por %p54, %p55
    %p57 = scmp.ne.s32.totalorder %s45, %s46
    %p58 = scmp.eq.s32.totalorder %s15, 1
    %p59 = por %p57, %p58
    %p61 = scmp.ne.s32.totalorder %s46, %s60
    %p62 = scmp.eq.s32.totalorder %s15, 0
    %p63 = por %p61, %p62
    %s65 = sadd.s32 %s64, 1
    %p68 = scmp.eq.s32.totalorder %s9, 1
    %p69 = scmp.ne.s32.totalorder %s64, %s66
    %p70 = scmp.eq.s32.totalorder %s9, 0
    %p71 = por %p69, %p70
    %p72 = scmp.ne.s32.totalorder %s64, %s66
    %p73 = scmp.eq.s32.totalorder %s14, 1
    %p74 = por %p72, %p73
    %p75 = scmp.ne.s32.totalorder %s66, %s67
    %p76 = scmp.eq.s32.totalorder %s14, 0
    %p77 = por %p75, %p76
    %p78 = scmp.ne.s32.totalorder %s66, %s67
    %p79 = scmp.eq.s32.totalorder %s15, 1
    %p80 = por %p78, %p79
    %p82 = scmp.ne.s32.totalorder %s67, %s81
    %p83 = scmp.eq.s32.totalorder %s15, 0
    %p84 = por %p82, %p83
    %s85 = ssub.s32 %s9, %s16
    %p86 = scmp.eq.s32.totalorder %s85, 0
    %s88 = sadd.s32 %s87, 1
    %s89 = scalar_select %p86, %s87, %s88
    %p92 = pneg %p86
    %p93 = scmp.eq.s32.totalorder %s9, 1
    %p94 = por %p92, %p93
    %p95 = scmp.ne.s32.totalorder %s87, %s90
    %p96 = scmp.eq.s32.totalorder %s9, 0
    %p97 = por %p95, %p96
    %p98 = scmp.ne.s32.totalorder %s87, %s90
    %p99 = scmp.eq.s32.totalorder %s14, 1
    %p100 = por %p98, %p99
    %p101 = scmp.ne.s32.totalorder %s90, %s91
    %p102 = scmp.eq.s32.totalorder %s14, 0
    %p103 = por %p101, %p102
    %p104 = scmp.ne.s32.totalorder %s90, %s91
    %p105 = scmp.eq.s32.totalorder %s15, 1
    %p106 = por %p104, %p105
    %p108 = scmp.ne.s32.totalorder %s91, %s107
    %p109 = scmp.eq.s32.totalorder %s15, 0
    %p110 = por %p108, %p109
    %p111 = scmp.le.s32.totalorder 1, %s9
    %p112 = scmp.lt.s32.totalorder %s9, 3
    %p113 = pnand %p111, %p112
    %p114 = pneg %p113
    // Predicated region
    $region9: #{downsample.1} parent=5 // pred_check
      _
    $region10: #{downsample.1} parent=5 // pred_check_branch
      %116 = sbr.rel (%p113) target = $region12
    $region11: #{downsample.1} parent=5 // pred_region
      %s117 = ssub.s32 %s9, 1
      // Predicated region
      $region13: #{downsample.1} parent=11 // pred_check
        %p118 = pneg %p56
      $region14: #{downsample.1} parent=11 // pred_check_branch
        %120 = sbr.rel (%p118) target = $region16
      $region15: #{downsample.1} parent=11 // pred_region
        _
      $region16: #{downsample.1} parent=11 // pred_fallthru
        _
      // Predicated region
      $region17: #{downsample.1} parent=11 // pred_check
        %p121 = pneg %p77
      $region18: #{downsample.1} parent=11 // pred_check_branch
        %123 = sbr.rel (%p121) target = $region20
      $region19: #{downsample.1} parent=11 // pred_region
        _
      $region20: #{downsample.1} parent=11 // pred_fallthru
        _
    $region12: #{downsample.1} parent=5 // pred_fallthru
      _
    %p124 = scmp.lt.s32.totalorder %s9, 2
    // Predicated region
    $region21: #{downsample.1} parent=5 // pred_check
      %p125 = pneg %p124
    $region22: #{downsample.1} parent=5 // pred_check_branch
      %127 = sbr.rel (%p125) target = $region24
    $region23: #{downsample.1} parent=5 // pred_region
      // Predicated region
      $region25: #{downsample.1} parent=23 // pred_check
        %p128 = pneg %p29
      $region26: #{downsample.1} parent=23 // pred_check_branch
        %130 = sbr.rel (%p128) target = $region28
      $region27: #{downsample.1} parent=23 // pred_region
        %s131 = smul.u32 32, %s9
        %p132 = scmp.lt.s32.totalorder %s131, 63
        %s133 = scalar_select %p132, %s131, 63
        %s134 = smul.addr %s133, 8
        %s135 = scalar_lea.vmem %s0, %s134
        %s136 = smul.u32 32, %s9
      $region28: #{downsample.1} parent=23 // pred_fallthru
        _
    $region24: #{downsample.1} parent=5 // pred_fallthru
      _
    %p137 = scmp.le.s32.totalorder 1, %s9
    %p138 = scmp.lt.s32.totalorder %s9, 3
    %p139 = pnand %p137, %p138
    %p140 = pneg %p139
    // Predicated region
    $region29: #{downsample.1} parent=5 // pred_check
      _
    $region30: #{downsample.1} parent=5 // pred_check_branch
      %142 = sbr.rel (%p139) target = $region32
    $region31: #{downsample.1} parent=5 // pred_region
      %s143 = ssub.s32 %s9, 1
      %s144 = smul.u32 32, %s14
      %p145 = scmp.lt.s32.totalorder %s144, 63
      %s146 = scalar_select %p145, %s144, 63
      %s147 = smul.addr %s146, 8
      %s148 = scalar_lea.vmem %s0, %s147
      %p149 = pneg %p35
      %p150 = pneg %p32
      %p151 = pneg %p56
      %p152 = pneg %p53
      %p153 = pneg %p77
      %p154 = pneg %p74
      %p155 = pneg %p103
      %p156 = pneg %p100
      %s157 = smul.u32 32, %s14
      %p158 = scmp.lt.s32.totalorder %s157, 63
      %s159 = scalar_select %p158, %s157, 63
      %s160 = smul.addr %s159, 8
      %s161 = scalar_lea.vmem %s3, %s160
      %s162 = smul.u32 32, %s14
      %p163 = scmp.lt.s32.totalorder %s162, 63
      %s164 = scalar_select %p163, %s162, 63
      %s165 = smul.addr %s164, 8
      %s166 = scalar_lea.vmem %s0, %s165
      %s167 = smul.u32 32, %s14
      %s168 = smul.u32 32, %s14
      %p169 = scmp.lt.s32.totalorder %s168, 63
      %s170 = scalar_select %p169, %s168, 63
      %s171 = smul.addr %s170, 8
      %s172 = scalar_lea.vmem %s3, %s171
      %s173 = smul.u32 32, %s14
      %v175 = vld [vmem:[%s166] sm:$0xff]
      %v176 = vld [vmem:[%s166 + $0x8] sm:$0xff]
      %v177 = vld [vmem:[%s166 + $0x10] sm:$0xff]
      %v178 = vld [vmem:[%s166 + $0x18] sm:$0xff]
      %v179 = vld [vmem:[%s166 + $0x20] sm:$0xff]
      %v180 = vld [vmem:[%s166 + $0x28] sm:$0xff]
      %v181 = vld [vmem:[%s166 + $0x30] sm:$0xff]
      %v182 = vld [vmem:[%s166 + $0x38] sm:$0xff]
      %v183 = vld [vmem:[%s166 + $0x40] sm:$0xff]
      %v184 = vld [vmem:[%s166 + $0x48] sm:$0xff]
      %v185 = vld [vmem:[%s166 + $0x50] sm:$0xff]
      %v186 = vld [vmem:[%s166 + $0x58] sm:$0xff]
      %v187 = vld [vmem:[%s166 + $0x60] sm:$0xff]
      %v188 = vld [vmem:[%s166 + $0x68] sm:$0xff]
      %v189 = vld [vmem:[%s166 + $0x70] sm:$0xff]
      %v190 = vld [vmem:[%s166 + $0x78] sm:$0xff]
      %v191 = vld [vmem:[%s166 + $0x80] sm:$0xff]
      %v192 = vld [vmem:[%s166 + $0x88] sm:$0xff]
      %v193 = vld [vmem:[%s166 + $0x90] sm:$0xff]
      %v194 = vld [vmem:[%s166 + $0x98] sm:$0xff]
      %v195 = vld [vmem:[%s166 + $0xa0] sm:$0xff]
      %v196 = vld [vmem:[%s166 + $0xa8] sm:$0xff]
      %v197 = vld [vmem:[%s166 + $0xb0] sm:$0xff]
      %v198 = vld [vmem:[%s166 + $0xb8] sm:$0xff]
      %v199 = vld [vmem:[%s166 + $0xc0] sm:$0xff]
      %v200 = vld [vmem:[%s166 + $0xc8] sm:$0xff]
      %v201 = vld [vmem:[%s166 + $0xd0] sm:$0xff]
      %v202 = vld [vmem:[%s166 + $0xd8] sm:$0xff]
      %v203 = vld [vmem:[%s166 + $0xe0] sm:$0xff]
      %v204 = vld [vmem:[%s166 + $0xe8] sm:$0xff]
      %v205 = vld [vmem:[%s166 + $0xf0] sm:$0xff]
      %v206 = vld [vmem:[%s166 + $0xf8] sm:$0xff]
      %vm207 = vcmask 31744
      %v208 = vsel %vm207, %v175, 0.0
      %209 = vadd.xlane.f32.xlu0 %v208
      %v210 = vpop.xlane.xlu0 %209
      %v211 = vsel %vm207, %v176, 0.0
      %212 = vadd.xlane.f32.xlu0 %v211
      %v213 = vpop.xlane.xlu0 %212
      %v214 = vsel %vm207, %v177, 0.0
      %215 = vadd.xlane.f32.xlu0 %v214
      %v216 = vpop.xlane.xlu0 %215
      %v217 = vsel %vm207, %v178, 0.0
      %218 = vadd.xlane.f32.xlu0 %v217
      %v219 = vpop.xlane.xlu0 %218
      %v220 = vsel %vm207, %v179, 0.0
      %221 = vadd.xlane.f32.xlu0 %v220
      %v222 = vpop.xlane.xlu0 %221
      %v223 = vsel %vm207, %v180, 0.0
      %224 = vadd.xlane.f32.xlu0 %v223
      %v225 = vpop.xlane.xlu0 %224
      %v226 = vsel %vm207, %v181, 0.0
      %227 = vadd.xlane.f32.xlu0 %v226
      %v228 = vpop.xlane.xlu0 %227
      %v229 = vsel %vm207, %v182, 0.0
      %230 = vadd.xlane.f32.xlu0 %v229
      %v231 = vpop.xlane.xlu0 %230
      %v232 = vsel %vm207, %v183, 0.0
      %233 = vadd.xlane.f32.xlu0 %v232
      %v234 = vpop.xlane.xlu0 %233
      %v235 = vsel %vm207, %v184, 0.0
      %236 = vadd.xlane.f32.xlu0 %v235
      %v237 = vpop.xlane.xlu0 %236
      %v238 = vsel %vm207, %v185, 0.0
      %239 = vadd.xlane.f32.xlu0 %v238
      %v240 = vpop.xlane.xlu0 %239
      %v241 = vsel %vm207, %v186, 0.0
      %242 = vadd.xlane.f32.xlu0 %v241
      %v243 = vpop.xlane.xlu0 %242
      %v244 = vsel %vm207, %v187, 0.0
      %245 = vadd.xlane.f32.xlu0 %v244
      %v246 = vpop.xlane.xlu0 %245
      %v247 = vsel %vm207, %v188, 0.0
      %248 = vadd.xlane.f32.xlu0 %v247
      %v249 = vpop.xlane.xlu0 %248
      %v250 = vsel %vm207, %v189, 0.0
      %251 = vadd.xlane.f32.xlu0 %v250
      %v252 = vpop.xlane.xlu0 %251
      %v253 = vsel %vm207, %v190, 0.0
      %254 = vadd.xlane.f32.xlu0 %v253
      %v255 = vpop.xlane.xlu0 %254
      %v256 = vsel %vm207, %v191, 0.0
      %257 = vadd.xlane.f32.xlu0 %v256
      %v258 = vpop.xlane.xlu0 %257
      %v259 = vsel %vm207, %v192, 0.0
      %260 = vadd.xlane.f32.xlu0 %v259
      %v261 = vpop.xlane.xlu0 %260
      %v262 = vsel %vm207, %v193, 0.0
      %263 = vadd.xlane.f32.xlu0 %v262
      %v264 = vpop.xlane.xlu0 %263
      %v265 = vsel %vm207, %v194, 0.0
      %266 = vadd.xlane.f32.xlu0 %v265
      %v267 = vpop.xlane.xlu0 %266
      %v268 = vsel %vm207, %v195, 0.0
      %269 = vadd.xlane.f32.xlu0 %v268
      %v270 = vpop.xlane.xlu0 %269
      %v271 = vsel %vm207, %v196, 0.0
      %272 = vadd.xlane.f32.xlu0 %v271
      %v273 = vpop.xlane.xlu0 %272
      %v274 = vsel %vm207, %v197, 0.0
      %275 = vadd.xlane.f32.xlu0 %v274
      %v276 = vpop.xlane.xlu0 %275
      %v277 = vsel %vm207, %v198, 0.0
      %278 = vadd.xlane.f32.xlu0 %v277
      %v279 = vpop.xlane.xlu0 %278
      %v280 = vsel %vm207, %v199, 0.0
      %281 = vadd.xlane.f32.xlu0 %v280
      %v282 = vpop.xlane.xlu0 %281
      %v283 = vsel %vm207, %v200, 0.0
      %284 = vadd.xlane.f32.xlu0 %v283
      %v285 = vpop.xlane.xlu0 %284
      %v286 = vsel %vm207, %v201, 0.0
      %287 = vadd.xlane.f32.xlu0 %v286
      %v288 = vpop.xlane.xlu0 %287
      %v289 = vsel %vm207, %v202, 0.0
      %290 = vadd.xlane.f32.xlu0 %v289
      %v291 = vpop.xlane.xlu0 %290
      %v292 = vsel %vm207, %v203, 0.0
      %293 = vadd.xlane.f32.xlu0 %v292
      %v294 = vpop.xlane.xlu0 %293
      %v295 = vsel %vm207, %v204, 0.0
      %296 = vadd.xlane.f32.xlu0 %v295
      %v297 = vpop.xlane.xlu0 %296
      %v298 = vsel %vm207, %v205, 0.0
      %299 = vadd.xlane.f32.xlu0 %v298
      %v300 = vpop.xlane.xlu0 %299
      %v301 = vsel %vm207, %v206, 0.0
      %302 = vadd.xlane.f32.xlu0 %v301
      %v303 = vpop.xlane.xlu0 %302
      %v304 = vrcp.pop 4.0
      %v305 = vmul.f32 4.0, %v304
      %v306 = vsub.f32 1.0, %v305
      %v307 = vmul.f32 %v304, %v306
      %v308 = vadd.f32 %v304, %v307
      %vm309 = vweird.f32 %v304
      %v310 = vsel %vm309, %v304, %v308
      %v311 = vmul.f32 %v210, %v310
      %v312 = vmul.f32 %v213, %v310
      %v313 = vmul.f32 %v216, %v310
      %v314 = vmul.f32 %v219, %v310
      %v315 = vmul.f32 %v222, %v310
      %v316 = vmul.f32 %v225, %v310
      %v317 = vmul.f32 %v228, %v310
      %v318 = vmul.f32 %v231, %v310
      %v319 = vmul.f32 %v234, %v310
      %v320 = vmul.f32 %v237, %v310
      %v321 = vmul.f32 %v240, %v310
      %v322 = vmul.f32 %v243, %v310
      %v323 = vmul.f32 %v246, %v310
      %v324 = vmul.f32 %v249, %v310
      %v325 = vmul.f32 %v252, %v310
      %v326 = vmul.f32 %v255, %v310
      %v327 = vmul.f32 %v258, %v310
      %v328 = vmul.f32 %v261, %v310
      %v329 = vmul.f32 %v264, %v310
      %v330 = vmul.f32 %v267, %v310
      %v331 = vmul.f32 %v270, %v310
      %v332 = vmul.f32 %v273, %v310
      %v333 = vmul.f32 %v276, %v310
      %v334 = vmul.f32 %v279, %v310
      %v335 = vmul.f32 %v282, %v310
      %v336 = vmul.f32 %v285, %v310
      %v337 = vmul.f32 %v288, %v310
      %v338 = vmul.f32 %v291, %v310
      %v339 = vmul.f32 %v294, %v310
      %v340 = vmul.f32 %v297, %v310
      %v341 = vmul.f32 %v300, %v310
      %v342 = vmul.f32 %v303, %v310
      %v343 = vsub.f32 %v175, %v311
      %v344 = vsub.f32 %v176, %v312
      %v345 = vsub.f32 %v177, %v313
      %v346 = vsub.f32 %v178, %v314
      %v347 = vsub.f32 %v179, %v315
      %v348 = vsub.f32 %v180, %v316
      %v349 = vsub.f32 %v181, %v317
      %v350 = vsub.f32 %v182, %v318
      %v351 = vsub.f32 %v183, %v319
      %v352 = vsub.f32 %v184, %v320
      %v353 = vsub.f32 %v185, %v321
      %v354 = vsub.f32 %v186, %v322
      %v355 = vsub.f32 %v187, %v323
      %v356 = vsub.f32 %v188, %v324
      %v357 = vsub.f32 %v189, %v325
      %v358 = vsub.f32 %v190, %v326
      %v359 = vsub.f32 %v191, %v327
      %v360 = vsub.f32 %v192, %v328
      %v361 = vsub.f32 %v193, %v329
      %v362 = vsub.f32 %v194, %v330
      %v363 = vsub.f32 %v195, %v331
      %v364 = vsub.f32 %v196, %v332
      %v365 = vsub.f32 %v197, %v333
      %v366 = vsub.f32 %v198, %v334
      %v367 = vsub.f32 %v199, %v335
      %v368 = vsub.f32 %v200, %v336
      %v369 = vsub.f32 %v201, %v337
      %v370 = vsub.f32 %v202, %v338
      %v371 = vsub.f32 %v203, %v339
      %v372 = vsub.f32 %v204, %v340
      %v373 = vsub.f32 %v205, %v341
      %v374 = vsub.f32 %v206, %v342
      %v375 = vmul.f32 %v343, %v343
      %v376 = vmul.f32 %v344, %v344
      %v377 = vmul.f32 %v345, %v345
      %v378 = vmul.f32 %v346, %v346
      %v379 = vmul.f32 %v347, %v347
      %v380 = vmul.f32 %v348, %v348
      %v381 = vmul.f32 %v349, %v349
      %v382 = vmul.f32 %v350, %v350
      %v383 = vmul.f32 %v351, %v351
      %v384 = vmul.f32 %v352, %v352
      %v385 = vmul.f32 %v353, %v353
      %v386 = vmul.f32 %v354, %v354
      %v387 = vmul.f32 %v355, %v355
      %v388 = vmul.f32 %v356, %v356
      %v389 = vmul.f32 %v357, %v357
      %v390 = vmul.f32 %v358, %v358
      %v391 = vmul.f32 %v359, %v359
      %v392 = vmul.f32 %v360, %v360
      %v393 = vmul.f32 %v361, %v361
      %v394 = vmul.f32 %v362, %v362
      %v395 = vmul.f32 %v363, %v363
      %v396 = vmul.f32 %v364, %v364
      %v397 = vmul.f32 %v365, %v365
      %v398 = vmul.f32 %v366, %v366
      %v399 = vmul.f32 %v367, %v367
      %v400 = vmul.f32 %v368, %v368
      %v401 = vmul.f32 %v369, %v369
      %v402 = vmul.f32 %v370, %v370
      %v403 = vmul.f32 %v371, %v371
      %v404 = vmul.f32 %v372, %v372
      %v405 = vmul.f32 %v373, %v373
      %v406 = vmul.f32 %v374, %v374
      %v407 = vsel %vm207, %v375, 0.0
      %408 = vadd.xlane.f32.xlu0 %v407
      %v409 = vpop.xlane.xlu0 %408
      %v410 = vsel %vm207, %v376, 0.0
      %411 = vadd.xlane.f32.xlu0 %v410
      %v412 = vpop.xlane.xlu0 %411
      %v413 = vsel %vm207, %v377, 0.0
      %414 = vadd.xlane.f32.xlu0 %v413
      %v415 = vpop.xlane.xlu0 %414
      %v416 = vsel %vm207, %v378, 0.0
      %417 = vadd.xlane.f32.xlu0 %v416
      %v418 = vpop.xlane.xlu0 %417
      %v419 = vsel %vm207, %v379, 0.0
      %420 = vadd.xlane.f32.xlu0 %v419
      %v421 = vpop.xlane.xlu0 %420
      %v422 = vsel %vm207, %v380, 0.0
      %423 = vadd.xlane.f32.xlu0 %v422
      %v424 = vpop.xlane.xlu0 %423
      %v425 = vsel %vm207, %v381, 0.0
      %426 = vadd.xlane.f32.xlu0 %v425
      %v427 = vpop.xlane.xlu0 %426
      %v428 = vsel %vm207, %v382, 0.0
      %429 = vadd.xlane.f32.xlu0 %v428
      %v430 = vpop.xlane.xlu0 %429
      %v431 = vsel %vm207, %v383, 0.0
      %432 = vadd.xlane.f32.xlu0 %v431
      %v433 = vpop.xlane.xlu0 %432
      %v434 = vsel %vm207, %v384, 0.0
      %435 = vadd.xlane.f32.xlu0 %v434
      %v436 = vpop.xlane.xlu0 %435
      %v437 = vsel %vm207, %v385, 0.0
      %438 = vadd.xlane.f32.xlu0 %v437
      %v439 = vpop.xlane.xlu0 %438
      %v440 = vsel %vm207, %v386, 0.0
      %441 = vadd.xlane.f32.xlu0 %v440
      %v442 = vpop.xlane.xlu0 %441
      %v443 = vsel %vm207, %v387, 0.0
      %444 = vadd.xlane.f32.xlu0 %v443
      %v445 = vpop.xlane.xlu0 %444
      %v446 = vsel %vm207, %v388, 0.0
      %447 = vadd.xlane.f32.xlu0 %v446
      %v448 = vpop.xlane.xlu0 %447
      %v449 = vsel %vm207, %v389, 0.0
      %450 = vadd.xlane.f32.xlu0 %v449
      %v451 = vpop.xlane.xlu0 %450
      %v452 = vsel %vm207, %v390, 0.0
      %453 = vadd.xlane.f32.xlu0 %v452
      %v454 = vpop.xlane.xlu0 %453
      %v455 = vsel %vm207, %v391, 0.0
      %456 = vadd.xlane.f32.xlu0 %v455
      %v457 = vpop.xlane.xlu0 %456
      %v458 = vsel %vm207, %v392, 0.0
      %459 = vadd.xlane.f32.xlu0 %v458
      %v460 = vpop.xlane.xlu0 %459
      %v461 = vsel %vm207, %v393, 0.0
      %462 = vadd.xlane.f32.xlu0 %v461
      %v463 = vpop.xlane.xlu0 %462
      %v464 = vsel %vm207, %v394, 0.0
      %465 = vadd.xlane.f32.xlu0 %v464
      %v466 = vpop.xlane.xlu0 %465
      %v467 = vsel %vm207, %v395, 0.0
      %468 = vadd.xlane.f32.xlu0 %v467
      %v469 = vpop.xlane.xlu0 %468
      %v470 = vsel %vm207, %v396, 0.0
      %471 = vadd.xlane.f32.xlu0 %v470
      %v472 = vpop.xlane.xlu0 %471
      %v473 = vsel %vm207, %v397, 0.0
      %474 = vadd.xlane.f32.xlu0 %v473
      %v475 = vpop.xlane.xlu0 %474
      %v476 = vsel %vm207, %v398, 0.0
      %477 = vadd.xlane.f32.xlu0 %v476
      %v478 = vpop.xlane.xlu0 %477
      %v479 = vsel %vm207, %v399, 0.0
      %480 = vadd.xlane.f32.xlu0 %v479
      %v481 = vpop.xlane.xlu0 %480
      %v482 = vsel %vm207, %v400, 0.0
      %483 = vadd.xlane.f32.xlu0 %v482
      %v484 = vpop.xlane.xlu0 %483
      %v485 = vsel %vm207, %v401, 0.0
      %486 = vadd.xlane.f32.xlu0 %v485
      %v487 = vpop.xlane.xlu0 %486
      %v488 = vsel %vm207, %v402, 0.0
      %489 = vadd.xlane.f32.xlu0 %v488
      %v490 = vpop.xlane.xlu0 %489
      %v491 = vsel %vm207, %v403, 0.0
      %492 = vadd.xlane.f32.xlu0 %v491
      %v493 = vpop.xlane.xlu0 %492
      %v494 = vsel %vm207, %v404, 0.0
      %495 = vadd.xlane.f32.xlu0 %v494
      %v496 = vpop.xlane.xlu0 %495
      %v497 = vsel %vm207, %v405, 0.0
      %498 = vadd.xlane.f32.xlu0 %v497
      %v499 = vpop.xlane.xlu0 %498
      %v500 = vsel %vm207, %v406, 0.0
      %501 = vadd.xlane.f32.xlu0 %v500
      %v502 = vpop.xlane.xlu0 %501
      %v503 = vmul.f32 %v409, %v310
      %v504 = vmul.f32 %v412, %v310
      %v505 = vmul.f32 %v415, %v310
      %v506 = vmul.f32 %v418, %v310
      %v507 = vmul.f32 %v421, %v310
      %v508 = vmul.f32 %v424, %v310
      %v509 = vmul.f32 %v427, %v310
      %v510 = vmul.f32 %v430, %v310
      %v511 = vmul.f32 %v433, %v310
      %v512 = vmul.f32 %v436, %v310
      %v513 = vmul.f32 %v439, %v310
      %v514 = vmul.f32 %v442, %v310
      %v515 = vmul.f32 %v445, %v310
      %v516 = vmul.f32 %v448, %v310
      %v517 = vmul.f32 %v451, %v310
      %v518 = vmul.f32 %v454, %v310
      %v519 = vmul.f32 %v457, %v310
      %v520 = vmul.f32 %v460, %v310
      %v521 = vmul.f32 %v463, %v310
      %v522 = vmul.f32 %v466, %v310
      %v523 = vmul.f32 %v469, %v310
      %v524 = vmul.f32 %v472, %v310
      %v525 = vmul.f32 %v475, %v310
      %v526 = vmul.f32 %v478, %v310
      %v527 = vmul.f32 %v481, %v310
      %v528 = vmul.f32 %v484, %v310
      %v529 = vmul.f32 %v487, %v310
      %v530 = vmul.f32 %v490, %v310
      %v531 = vmul.f32 %v493, %v310
      %v532 = vmul.f32 %v496, %v310
      %v533 = vmul.f32 %v499, %v310
      %v534 = vmul.f32 %v502, %v310
      %v535 = vadd.f32 %v503, 1e-06
      %v536 = vadd.f32 %v504, 1e-06
      %v537 = vadd.f32 %v505, 1e-06
      %v538 = vadd.f32 %v506, 1e-06
      %v539 = vadd.f32 %v507, 1e-06
      %v540 = vadd.f32 %v508, 1e-06
      %v541 = vadd.f32 %v509, 1e-06
      %v542 = vadd.f32 %v510, 1e-06
      %v543 = vadd.f32 %v511, 1e-06
      %v544 = vadd.f32 %v512, 1e-06
      %v545 = vadd.f32 %v513, 1e-06
      %v546 = vadd.f32 %v514, 1e-06
      %v547 = vadd.f32 %v515, 1e-06
      %v548 = vadd.f32 %v516, 1e-06
      %v549 = vadd.f32 %v517, 1e-06
      %v550 = vadd.f32 %v518, 1e-06
      %v551 = vadd.f32 %v519, 1e-06
      %v552 = vadd.f32 %v520, 1e-06
      %v553 = vadd.f32 %v521, 1e-06
      %v554 = vadd.f32 %v522, 1e-06
      %v555 = vadd.f32 %v523, 1e-06
      %v556 = vadd.f32 %v524, 1e-06
      %v557 = vadd.f32 %v525, 1e-06
      %v558 = vadd.f32 %v526, 1e-06
      %v559 = vadd.f32 %v527, 1e-06
      %v560 = vadd.f32 %v528, 1e-06
      %v561 = vadd.f32 %v529, 1e-06
      %v562 = vadd.f32 %v530, 1e-06
      %v563 = vadd.f32 %v531, 1e-06
      %v564 = vadd.f32 %v532, 1e-06
      %v565 = vadd.f32 %v533, 1e-06
      %v566 = vadd.f32 %v534, 1e-06
      %v567 = vrsqrt.pop %v535
      %v568 = vmul.f32 %v567, %v535
      %v569 = vmul.f32 %v568, %v567
      %v570 = vmul.f32 0.5, %v569
      %v571 = vsub.f32 1.5, %v570
      %v572 = vmul.f32 %v567, %v571
      %vm573 = vweird.f32 %v535
      %vm574 = vweird.f32 %v567
      %vm575 = vmor %vm573, %vm574
      %v576 = vsel %vm575, %v567, %v572
      %v577 = vrsqrt.pop %v536
      %v578 = vmul.f32 %v577, %v536
      %v579 = vmul.f32 %v578, %v577
      %v580 = vmul.f32 0.5, %v579
      %v581 = vsub.f32 1.5, %v580
      %v582 = vmul.f32 %v577, %v581
      %vm583 = vweird.f32 %v536
      %vm584 = vweird.f32 %v577
      %vm585 = vmor %vm583, %vm584
      %v586 = vsel %vm585, %v577, %v582
      %v587 = vrsqrt.pop %v537
      %v588 = vmul.f32 %v587, %v537
      %v589 = vmul.f32 %v588, %v587
      %v590 = vmul.f32 0.5, %v589
      %v591 = vsub.f32 1.5, %v590
      %v592 = vmul.f32 %v587, %v591
      %vm593 = vweird.f32 %v537
      %vm594 = vweird.f32 %v587
      %vm595 = vmor %vm593, %vm594
      %v596 = vsel %vm595, %v587, %v592
      %v597 = vrsqrt.pop %v538
      %v598 = vmul.f32 %v597, %v538
      %v599 = vmul.f32 %v598, %v597
      %v600 = vmul.f32 0.5, %v599
      %v601 = vsub.f32 1.5, %v600
      %v602 = vmul.f32 %v597, %v601
      %vm603 = vweird.f32 %v538
      %vm604 = vweird.f32 %v597
      %vm605 = vmor %vm603, %vm604
      %v606 = vsel %vm605, %v597, %v602
      %v607 = vrsqrt.pop %v539
      %v608 = vmul.f32 %v607, %v539
      %v609 = vmul.f32 %v608, %v607
      %v610 = vmul.f32 0.5, %v609
      %v611 = vsub.f32 1.5, %v610
      %v612 = vmul.f32 %v607, %v611
      %vm613 = vweird.f32 %v539
      %vm614 = vweird.f32 %v607
      %vm615 = vmor %vm613, %vm614
      %v616 = vsel %vm615, %v607, %v612
      %v617 = vrsqrt.pop %v540
      %v618 = vmul.f32 %v617, %v540
      %v619 = vmul.f32 %v618, %v617
      %v620 = vmul.f32 0.5, %v619
      %v621 = vsub.f32 1.5, %v620
      %v622 = vmul.f32 %v617, %v621
      %vm623 = vweird.f32 %v540
      %vm624 = vweird.f32 %v617
      %vm625 = vmor %vm623, %vm624
      %v626 = vsel %vm625, %v617, %v622
      %v627 = vrsqrt.pop %v541
      %v628 = vmul.f32 %v627, %v541
      %v629 = vmul.f32 %v628, %v627
      %v630 = vmul.f32 0.5, %v629
      %v631 = vsub.f32 1.5, %v630
      %v632 = vmul.f32 %v627, %v631
      %vm633 = vweird.f32 %v541
      %vm634 = vweird.f32 %v627
      %vm635 = vmor %vm633, %vm634
      %v636 = vsel %vm635, %v627, %v632
      %v637 = vrsqrt.pop %v542
      %v638 = vmul.f32 %v637, %v542
      %v639 = vmul.f32 %v638, %v637
      %v640 = vmul.f32 0.5, %v639
      %v641 = vsub.f32 1.5, %v640
      %v642 = vmul.f32 %v637, %v641
      %vm643 = vweird.f32 %v542
      %vm644 = vweird.f32 %v637
      %vm645 = vmor %vm643, %vm644
      %v646 = vsel %vm645, %v637, %v642
      %v647 = vrsqrt.pop %v543
      %v648 = vmul.f32 %v647, %v543
      %v649 = vmul.f32 %v648, %v647
      %v650 = vmul.f32 0.5, %v649
      %v651 = vsub.f32 1.5, %v650
      %v652 = vmul.f32 %v647, %v651
      %vm653 = vweird.f32 %v543
      %vm654 = vweird.f32 %v647
      %vm655 = vmor %vm653, %vm654
      %v656 = vsel %vm655, %v647, %v652
      %v657 = vrsqrt.pop %v544
      %v658 = vmul.f32 %v657, %v544
      %v659 = vmul.f32 %v658, %v657
      %v660 = vmul.f32 0.5, %v659
      %v661 = vsub.f32 1.5, %v660
      %v662 = vmul.f32 %v657, %v661
      %vm663 = vweird.f32 %v544
      %vm664 = vweird.f32 %v657
      %vm665 = vmor %vm663, %vm664
      %v666 = vsel %vm665, %v657, %v662
      %v667 = vrsqrt.pop %v545
      %v668 = vmul.f32 %v667, %v545
      %v669 = vmul.f32 %v668, %v667
      %v670 = vmul.f32 0.5, %v669
      %v671 = vsub.f32 1.5, %v670
      %v672 = vmul.f32 %v667, %v671
      %vm673 = vweird.f32 %v545
      %vm674 = vweird.f32 %v667
      %vm675 = vmor %vm673, %vm674
      %v676 = vsel %vm675, %v667, %v672
      %v677 = vrsqrt.pop %v546
      %v678 = vmul.f32 %v677, %v546
      %v679 = vmul.f32 %v678, %v677
      %v680 = vmul.f32 0.5, %v679
      %v681 = vsub.f32 1.5, %v680
      %v682 = vmul.f32 %v677, %v681
      %vm683 = vweird.f32 %v546
      %vm684 = vweird.f32 %v677
      %vm685 = vmor %vm683, %vm684
      %v686 = vsel %vm685, %v677, %v682
      %v687 = vrsqrt.pop %v547
      %v688 = vmul.f32 %v687, %v547
      %v689 = vmul.f32 %v688, %v687
      %v690 = vmul.f32 0.5, %v689
      %v691 = vsub.f32 1.5, %v690
      %v692 = vmul.f32 %v687, %v691
      %vm693 = vweird.f32 %v547
      %vm694 = vweird.f32 %v687
      %vm695 = vmor %vm693, %vm694
      %v696 = vsel %vm695, %v687, %v692
      %v697 = vrsqrt.pop %v548
      %v698 = vmul.f32 %v697, %v548
      %v699 = vmul.f32 %v698, %v697
      %v700 = vmul.f32 0.5, %v699
      %v701 = vsub.f32 1.5, %v700
      %v702 = vmul.f32 %v697, %v701
      %vm703 = vweird.f32 %v548
      %vm704 = vweird.f32 %v697
      %vm705 = vmor %vm703, %vm704
      %v706 = vsel %vm705, %v697, %v702
      %v707 = vrsqrt.pop %v549
      %v708 = vmul.f32 %v707, %v549
      %v709 = vmul.f32 %v708, %v707
      %v710 = vmul.f32 0.5, %v709
      %v711 = vsub.f32 1.5, %v710
      %v712 = vmul.f32 %v707, %v711
      %vm713 = vweird.f32 %v549
      %vm714 = vweird.f32 %v707
      %vm715 = vmor %vm713, %vm714
      %v716 = vsel %vm715, %v707, %v712
      %v717 = vrsqrt.pop %v550
      %v718 = vmul.f32 %v717, %v550
      %v719 = vmul.f32 %v718, %v717
      %v720 = vmul.f32 0.5, %v719
      %v721 = vsub.f32 1.5, %v720
      %v722 = vmul.f32 %v717, %v721
      %vm723 = vweird.f32 %v550
      %vm724 = vweird.f32 %v717
      %vm725 = vmor %vm723, %vm724
      %v726 = vsel %vm725, %v717, %v722
      %v727 = vrsqrt.pop %v551
      %v728 = vmul.f32 %v727, %v551
      %v729 = vmul.f32 %v728, %v727
      %v730 = vmul.f32 0.5, %v729
      %v731 = vsub.f32 1.5, %v730
      %v732 = vmul.f32 %v727, %v731
      %vm733 = vweird.f32 %v551
      %vm734 = vweird.f32 %v727
      %vm735 = vmor %vm733, %vm734
      %v736 = vsel %vm735, %v727, %v732
      %v737 = vrsqrt.pop %v552
      %v738 = vmul.f32 %v737, %v552
      %v739 = vmul.f32 %v738, %v737
      %v740 = vmul.f32 0.5, %v739
      %v741 = vsub.f32 1.5, %v740
      %v742 = vmul.f32 %v737, %v741
      %vm743 = vweird.f32 %v552
      %vm744 = vweird.f32 %v737
      %vm745 = vmor %vm743, %vm744
      %v746 = vsel %vm745, %v737, %v742
      %v747 = vrsqrt.pop %v553
      %v748 = vmul.f32 %v747, %v553
      %v749 = vmul.f32 %v748, %v747
      %v750 = vmul.f32 0.5, %v749
      %v751 = vsub.f32 1.5, %v750
      %v752 = vmul.f32 %v747, %v751
      %vm753 = vweird.f32 %v553
      %vm754 = vweird.f32 %v747
      %vm755 = vmor %vm753, %vm754
      %v756 = vsel %vm755, %v747, %v752
      %v757 = vrsqrt.pop %v554
      %v758 = vmul.f32 %v757, %v554
      %v759 = vmul.f32 %v758, %v757
      %v760 = vmul.f32 0.5, %v759
      %v761 = vsub.f32 1.5, %v760
      %v762 = vmul.f32 %v757, %v761
      %vm763 = vweird.f32 %v554
      %vm764 = vweird.f32 %v757
      %vm765 = vmor %vm763, %vm764
      %v766 = vsel %vm765, %v757, %v762
      %v767 = vrsqrt.pop %v555
      %v768 = vmul.f32 %v767, %v555
      %v769 = vmul.f32 %v768, %v767
      %v770 = vmul.f32 0.5, %v769
      %v771 = vsub.f32 1.5, %v770
      %v772 = vmul.f32 %v767, %v771
      %vm773 = vweird.f32 %v555
      %vm774 = vweird.f32 %v767
      %vm775 = vmor %vm773, %vm774
      %v776 = vsel %vm775, %v767, %v772
      %v777 = vrsqrt.pop %v556
      %v778 = vmul.f32 %v777, %v556
      %v779 = vmul.f32 %v778, %v777
      %v780 = vmul.f32 0.5, %v779
      %v781 = vsub.f32 1.5, %v780
      %v782 = vmul.f32 %v777, %v781
      %vm783 = vweird.f32 %v556
      %vm784 = vweird.f32 %v777
      %vm785 = vmor %vm783, %vm784
      %v786 = vsel %vm785, %v777, %v782
      %v787 = vrsqrt.pop %v557
      %v788 = vmul.f32 %v787, %v557
      %v789 = vmul.f32 %v788, %v787
      %v790 = vmul.f32 0.5, %v789
      %v791 = vsub.f32 1.5, %v790
      %v792 = vmul.f32 %v787, %v791
      %vm793 = vweird.f32 %v557
      %vm794 = vweird.f32 %v787
      %vm795 = vmor %vm793, %vm794
      %v796 = vsel %vm795, %v787, %v792
      %v797 = vrsqrt.pop %v558
      %v798 = vmul.f32 %v797, %v558
      %v799 = vmul.f32 %v798, %v797
      %v800 = vmul.f32 0.5, %v799
      %v801 = vsub.f32 1.5, %v800
      %v802 = vmul.f32 %v797, %v801
      %vm803 = vweird.f32 %v558
      %vm804 = vweird.f32 %v797
      %vm805 = vmor %vm803, %vm804
      %v806 = vsel %vm805, %v797, %v802
      %v807 = vrsqrt.pop %v559
      %v808 = vmul.f32 %v807, %v559
      %v809 = vmul.f32 %v808, %v807
      %v810 = vmul.f32 0.5, %v809
      %v811 = vsub.f32 1.5, %v810
      %v812 = vmul.f32 %v807, %v811
      %vm813 = vweird.f32 %v559
      %vm814 = vweird.f32 %v807
      %vm815 = vmor %vm813, %vm814
      %v816 = vsel %vm815, %v807, %v812
      %v817 = vrsqrt.pop %v560
      %v818 = vmul.f32 %v817, %v560
      %v819 = vmul.f32 %v818, %v817
      %v820 = vmul.f32 0.5, %v819
      %v821 = vsub.f32 1.5, %v820
      %v822 = vmul.f32 %v817, %v821
      %vm823 = vweird.f32 %v560
      %vm824 = vweird.f32 %v817
      %vm825 = vmor %vm823, %vm824
      %v826 = vsel %vm825, %v817, %v822
      %v827 = vrsqrt.pop %v561
      %v828 = vmul.f32 %v827, %v561
      %v829 = vmul.f32 %v828, %v827
      %v830 = vmul.f32 0.5, %v829
      %v831 = vsub.f32 1.5, %v830
      %v832 = vmul.f32 %v827, %v831
      %vm833 = vweird.f32 %v561
      %vm834 = vweird.f32 %v827
      %vm835 = vmor %vm833, %vm834
      %v836 = vsel %vm835, %v827, %v832
      %v837 = vrsqrt.pop %v562
      %v838 = vmul.f32 %v837, %v562
      %v839 = vmul.f32 %v838, %v837
      %v840 = vmul.f32 0.5, %v839
      %v841 = vsub.f32 1.5, %v840
      %v842 = vmul.f32 %v837, %v841
      %vm843 = vweird.f32 %v562
      %vm844 = vweird.f32 %v837
      %vm845 = vmor %vm843, %vm844
      %v846 = vsel %vm845, %v837, %v842
      %v847 = vrsqrt.pop %v563
      %v848 = vmul.f32 %v847, %v563
      %v849 = vmul.f32 %v848, %v847
      %v850 = vmul.f32 0.5, %v849
      %v851 = vsub.f32 1.5, %v850
      %v852 = vmul.f32 %v847, %v851
      %vm853 = vweird.f32 %v563
      %vm854 = vweird.f32 %v847
      %vm855 = vmor %vm853, %vm854
      %v856 = vsel %vm855, %v847, %v852
      %v857 = vrsqrt.pop %v564
      %v858 = vmul.f32 %v857, %v564
      %v859 = vmul.f32 %v858, %v857
      %v860 = vmul.f32 0.5, %v859
      %v861 = vsub.f32 1.5, %v860
      %v862 = vmul.f32 %v857, %v861
      %vm863 = vweird.f32 %v564
      %vm864 = vweird.f32 %v857
      %vm865 = vmor %vm863, %vm864
      %v866 = vsel %vm865, %v857, %v862
      %v867 = vrsqrt.pop %v565
      %v868 = vmul.f32 %v867, %v565
      %v869 = vmul.f32 %v868, %v867
      %v870 = vmul.f32 0.5, %v869
      %v871 = vsub.f32 1.5, %v870
      %v872 = vmul.f32 %v867, %v871
      %vm873 = vweird.f32 %v565
      %vm874 = vweird.f32 %v867
      %vm875 = vmor %vm873, %vm874
      %v876 = vsel %vm875, %v867, %v872
      %v877 = vrsqrt.pop %v566
      %v878 = vmul.f32 %v877, %v566
      %v879 = vmul.f32 %v878, %v877
      %v880 = vmul.f32 0.5, %v879
      %v881 = vsub.f32 1.5, %v880
      %v882 = vmul.f32 %v877, %v881
      %vm883 = vweird.f32 %v566
      %vm884 = vweird.f32 %v877
      %vm885 = vmor %vm883, %vm884
      %v886 = vsel %vm885, %v877, %v882
      %v887 = vmul.f32 %v343, %v576
      %v888 = vmul.f32 %v344, %v586
      %v889 = vmul.f32 %v345, %v596
      %v890 = vmul.f32 %v346, %v606
      %v891 = vmul.f32 %v347, %v616
      %v892 = vmul.f32 %v348, %v626
      %v893 = vmul.f32 %v349, %v636
      %v894 = vmul.f32 %v350, %v646
      %v895 = vmul.f32 %v351, %v656
      %v896 = vmul.f32 %v352, %v666
      %v897 = vmul.f32 %v353, %v676
      %v898 = vmul.f32 %v354, %v686
      %v899 = vmul.f32 %v355, %v696
      %v900 = vmul.f32 %v356, %v706
      %v901 = vmul.f32 %v357, %v716
      %v902 = vmul.f32 %v358, %v726
      %v903 = vmul.f32 %v359, %v736
      %v904 = vmul.f32 %v360, %v746
      %v905 = vmul.f32 %v361, %v756
      %v906 = vmul.f32 %v362, %v766
      %v907 = vmul.f32 %v363, %v776
      %v908 = vmul.f32 %v364, %v786
      %v909 = vmul.f32 %v365, %v796
      %v910 = vmul.f32 %v366, %v806
      %v911 = vmul.f32 %v367, %v816
      %v912 = vmul.f32 %v368, %v826
      %v913 = vmul.f32 %v369, %v836
      %v914 = vmul.f32 %v370, %v846
      %v915 = vmul.f32 %v371, %v856
      %v916 = vmul.f32 %v372, %v866
      %v917 = vmul.f32 %v373, %v876
      %v918 = vmul.f32 %v374, %v886
      %951 = vrot.lane.b32.xlu0 %v175, 124
      %v952 = vpop.permute.xlu0 %951
      %953 = vrot.lane.b32.xlu0 %v176, 124
      %v954 = vpop.permute.xlu0 %953
      %955 = vrot.lane.b32.xlu0 %v177, 124
      %v956 = vpop.permute.xlu0 %955
      %957 = vrot.lane.b32.xlu0 %v178, 124
      %v958 = vpop.permute.xlu0 %957
      %959 = vrot.lane.b32.xlu0 %v179, 124
      %v960 = vpop.permute.xlu0 %959
      %961 = vrot.lane.b32.xlu0 %v180, 124
      %v962 = vpop.permute.xlu0 %961
      %963 = vrot.lane.b32.xlu0 %v181, 124
      %v964 = vpop.permute.xlu0 %963
      %965 = vrot.lane.b32.xlu0 %v182, 124
      %v966 = vpop.permute.xlu0 %965
      %967 = vrot.lane.b32.xlu0 %v183, 124
      %v968 = vpop.permute.xlu0 %967
      %969 = vrot.lane.b32.xlu0 %v184, 124
      %v970 = vpop.permute.xlu0 %969
      %971 = vrot.lane.b32.xlu0 %v185, 124
      %v972 = vpop.permute.xlu0 %971
      %973 = vrot.lane.b32.xlu0 %v186, 124
      %v974 = vpop.permute.xlu0 %973
      %975 = vrot.lane.b32.xlu0 %v187, 124
      %v976 = vpop.permute.xlu0 %975
      %977 = vrot.lane.b32.xlu0 %v188, 124
      %v978 = vpop.permute.xlu0 %977
      %979 = vrot.lane.b32.xlu0 %v189, 124
      %v980 = vpop.permute.xlu0 %979
      %981 = vrot.lane.b32.xlu0 %v190, 124
      %v982 = vpop.permute.xlu0 %981
      %983 = vrot.lane.b32.xlu0 %v191, 124
      %v984 = vpop.permute.xlu0 %983
      %985 = vrot.lane.b32.xlu0 %v192, 124
      %v986 = vpop.permute.xlu0 %985
      %987 = vrot.lane.b32.xlu0 %v193, 124
      %v988 = vpop.permute.xlu0 %987
      %989 = vrot.lane.b32.xlu0 %v194, 124
      %v990 = vpop.permute.xlu0 %989
      %991 = vrot.lane.b32.xlu0 %v195, 124
      %v992 = vpop.permute.xlu0 %991
      %993 = vrot.lane.b32.xlu0 %v196, 124
      %v994 = vpop.permute.xlu0 %993
      %995 = vrot.lane.b32.xlu0 %v197, 124
      %v996 = vpop.permute.xlu0 %995
      %997 = vrot.lane.b32.xlu0 %v198, 124
      %v998 = vpop.permute.xlu0 %997
      %999 = vrot.lane.b32.xlu0 %v199, 124
      %v1000 = vpop.permute.xlu0 %999
      %1001 = vrot.lane.b32.xlu0 %v200, 124
      %v1002 = vpop.permute.xlu0 %1001
      %1003 = vrot.lane.b32.xlu0 %v201, 124
      %v1004 = vpop.permute.xlu0 %1003
      %1005 = vrot.lane.b32.xlu0 %v202, 124
      %v1006 = vpop.permute.xlu0 %1005
      %1007 = vrot.lane.b32.xlu0 %v203, 124
      %v1008 = vpop.permute.xlu0 %1007
      %1009 = vrot.lane.b32.xlu0 %v204, 124
      %v1010 = vpop.permute.xlu0 %1009
      %1011 = vrot.lane.b32.xlu0 %v205, 124
      %v1012 = vpop.permute.xlu0 %1011
      %1013 = vrot.lane.b32.xlu0 %v206, 124
      %v1014 = vpop.permute.xlu0 %1013
      %v1047 = vsel %vm207, %v952, 0.0
      %1048 = vadd.xlane.f32.xlu0 %v1047
      %v1049 = vpop.xlane.xlu0 %1048
      %v1050 = vsel %vm207, %v954, 0.0
      %1051 = vadd.xlane.f32.xlu0 %v1050
      %v1052 = vpop.xlane.xlu0 %1051
      %v1053 = vsel %vm207, %v956, 0.0
      %1054 = vadd.xlane.f32.xlu0 %v1053
      %v1055 = vpop.xlane.xlu0 %1054
      %v1056 = vsel %vm207, %v958, 0.0
      %1057 = vadd.xlane.f32.xlu0 %v1056
      %v1058 = vpop.xlane.xlu0 %1057
      %v1059 = vsel %vm207, %v960, 0.0
      %1060 = vadd.xlane.f32.xlu0 %v1059
      %v1061 = vpop.xlane.xlu0 %1060
      %v1062 = vsel %vm207, %v962, 0.0
      %1063 = vadd.xlane.f32.xlu0 %v1062
      %v1064 = vpop.xlane.xlu0 %1063
      %v1065 = vsel %vm207, %v964, 0.0
      %1066 = vadd.xlane.f32.xlu0 %v1065
      %v1067 = vpop.xlane.xlu0 %1066
      %v1068 = vsel %vm207, %v966, 0.0
      %1069 = vadd.xlane.f32.xlu0 %v1068
      %v1070 = vpop.xlane.xlu0 %1069
      %v1071 = vsel %vm207, %v968, 0.0
      %1072 = vadd.xlane.f32.xlu0 %v1071
      %v1073 = vpop.xlane.xlu0 %1072
      %v1074 = vsel %vm207, %v970, 0.0
      %1075 = vadd.xlane.f32.xlu0 %v1074
      %v1076 = vpop.xlane.xlu0 %1075
      %v1077 = vsel %vm207, %v972, 0.0
      %1078 = vadd.xlane.f32.xlu0 %v1077
      %v1079 = vpop.xlane.xlu0 %1078
      %v1080 = vsel %vm207, %v974, 0.0
      %1081 = vadd.xlane.f32.xlu0 %v1080
      %v1082 = vpop.xlane.xlu0 %1081
      %v1083 = vsel %vm207, %v976, 0.0
      %1084 = vadd.xlane.f32.xlu0 %v1083
      %v1085 = vpop.xlane.xlu0 %1084
      %v1086 = vsel %vm207, %v978, 0.0
      %1087 = vadd.xlane.f32.xlu0 %v1086
      %v1088 = vpop.xlane.xlu0 %1087
      %v1089 = vsel %vm207, %v980, 0.0
      %1090 = vadd.xlane.f32.xlu0 %v1089
      %v1091 = vpop.xlane.xlu0 %1090
      %v1092 = vsel %vm207, %v982, 0.0
      %1093 = vadd.xlane.f32.xlu0 %v1092
      %v1094 = vpop.xlane.xlu0 %1093
      %v1095 = vsel %vm207, %v984, 0.0
      %1096 = vadd.xlane.f32.xlu0 %v1095
      %v1097 = vpop.xlane.xlu0 %1096
      %v1098 = vsel %vm207, %v986, 0.0
      %1099 = vadd.xlane.f32.xlu0 %v1098
      %v1100 = vpop.xlane.xlu0 %1099
      %v1101 = vsel %vm207, %v988, 0.0
      %1102 = vadd.xlane.f32.xlu0 %v1101
      %v1103 = vpop.xlane.xlu0 %1102
      %v1104 = vsel %vm207, %v990, 0.0
      %1105 = vadd.xlane.f32.xlu0 %v1104
      %v1106 = vpop.xlane.xlu0 %1105
      %v1107 = vsel %vm207, %v992, 0.0
      %1108 = vadd.xlane.f32.xlu0 %v1107
      %v1109 = vpop.xlane.xlu0 %1108
      %v1110 = vsel %vm207, %v994, 0.0
      %1111 = vadd.xlane.f32.xlu0 %v1110
      %v1112 = vpop.xlane.xlu0 %1111
      %v1113 = vsel %vm207, %v996, 0.0
      %1114 = vadd.xlane.f32.xlu0 %v1113
      %v1115 = vpop.xlane.xlu0 %1114
      %v1116 = vsel %vm207, %v998, 0.0
      %1117 = vadd.xlane.f32.xlu0 %v1116
      %v1118 = vpop.xlane.xlu0 %1117
      %v1119 = vsel %vm207, %v1000, 0.0
      %1120 = vadd.xlane.f32.xlu0 %v1119
      %v1121 = vpop.xlane.xlu0 %1120
      %v1122 = vsel %vm207, %v1002, 0.0
      %1123 = vadd.xlane.f32.xlu0 %v1122
      %v1124 = vpop.xlane.xlu0 %1123
      %v1125 = vsel %vm207, %v1004, 0.0
      %1126 = vadd.xlane.f32.xlu0 %v1125
      %v1127 = vpop.xlane.xlu0 %1126
      %v1128 = vsel %vm207, %v1006, 0.0
      %1129 = vadd.xlane.f32.xlu0 %v1128
      %v1130 = vpop.xlane.xlu0 %1129
      %v1131 = vsel %vm207, %v1008, 0.0
      %1132 = vadd.xlane.f32.xlu0 %v1131
      %v1133 = vpop.xlane.xlu0 %1132
      %v1134 = vsel %vm207, %v1010, 0.0
      %1135 = vadd.xlane.f32.xlu0 %v1134
      %v1136 = vpop.xlane.xlu0 %1135
      %v1137 = vsel %vm207, %v1012, 0.0
      %1138 = vadd.xlane.f32.xlu0 %v1137
      %v1139 = vpop.xlane.xlu0 %1138
      %v1140 = vsel %vm207, %v1014, 0.0
      %1141 = vadd.xlane.f32.xlu0 %v1140
      %v1142 = vpop.xlane.xlu0 %1141
      %v1143 = vmul.f32 %v1049, %v310
      %v1144 = vmul.f32 %v1052, %v310
      %v1145 = vmul.f32 %v1055, %v310
      %v1146 = vmul.f32 %v1058, %v310
      %v1147 = vmul.f32 %v1061, %v310
      %v1148 = vmul.f32 %v1064, %v310
      %v1149 = vmul.f32 %v1067, %v310
      %v1150 = vmul.f32 %v1070, %v310
      %v1151 = vmul.f32 %v1073, %v310
      %v1152 = vmul.f32 %v1076, %v310
      %v1153 = vmul.f32 %v1079, %v310
      %v1154 = vmul.f32 %v1082, %v310
      %v1155 = vmul.f32 %v1085, %v310
      %v1156 = vmul.f32 %v1088, %v310
      %v1157 = vmul.f32 %v1091, %v310
      %v1158 = vmul.f32 %v1094, %v310
      %v1159 = vmul.f32 %v1097, %v310
      %v1160 = vmul.f32 %v1100, %v310
      %v1161 = vmul.f32 %v1103, %v310
      %v1162 = vmul.f32 %v1106, %v310
      %v1163 = vmul.f32 %v1109, %v310
      %v1164 = vmul.f32 %v1112, %v310
      %v1165 = vmul.f32 %v1115, %v310
      %v1166 = vmul.f32 %v1118, %v310
      %v1167 = vmul.f32 %v1121, %v310
      %v1168 = vmul.f32 %v1124, %v310
      %v1169 = vmul.f32 %v1127, %v310
      %v1170 = vmul.f32 %v1130, %v310
      %v1171 = vmul.f32 %v1133, %v310
      %v1172 = vmul.f32 %v1136, %v310
      %v1173 = vmul.f32 %v1139, %v310
      %v1174 = vmul.f32 %v1142, %v310
      %v1175 = vsub.f32 %v175, %v1143
      %v1176 = vsub.f32 %v176, %v1144
      %v1177 = vsub.f32 %v177, %v1145
      %v1178 = vsub.f32 %v178, %v1146
      %v1179 = vsub.f32 %v179, %v1147
      %v1180 = vsub.f32 %v180, %v1148
      %v1181 = vsub.f32 %v181, %v1149
      %v1182 = vsub.f32 %v182, %v1150
      %v1183 = vsub.f32 %v183, %v1151
      %v1184 = vsub.f32 %v184, %v1152
      %v1185 = vsub.f32 %v185, %v1153
      %v1186 = vsub.f32 %v186, %v1154
      %v1187 = vsub.f32 %v187, %v1155
      %v1188 = vsub.f32 %v188, %v1156
      %v1189 = vsub.f32 %v189, %v1157
      %v1190 = vsub.f32 %v190, %v1158
      %v1191 = vsub.f32 %v191, %v1159
      %v1192 = vsub.f32 %v192, %v1160
      %v1193 = vsub.f32 %v193, %v1161
      %v1194 = vsub.f32 %v194, %v1162
      %v1195 = vsub.f32 %v195, %v1163
      %v1196 = vsub.f32 %v196, %v1164
      %v1197 = vsub.f32 %v197, %v1165
      %v1198 = vsub.f32 %v198, %v1166
      %v1199 = vsub.f32 %v199, %v1167
      %v1200 = vsub.f32 %v200, %v1168
      %v1201 = vsub.f32 %v201, %v1169
      %v1202 = vsub.f32 %v202, %v1170
      %v1203 = vsub.f32 %v203, %v1171
      %v1204 = vsub.f32 %v204, %v1172
      %v1205 = vsub.f32 %v205, %v1173
      %v1206 = vsub.f32 %v206, %v1174
      %v1207 = vmul.f32 %v1175, %v1175
      %v1208 = vmul.f32 %v1176, %v1176
      %v1209 = vmul.f32 %v1177, %v1177
      %v1210 = vmul.f32 %v1178, %v1178
      %v1211 = vmul.f32 %v1179, %v1179
      %v1212 = vmul.f32 %v1180, %v1180
      %v1213 = vmul.f32 %v1181, %v1181
      %v1214 = vmul.f32 %v1182, %v1182
      %v1215 = vmul.f32 %v1183, %v1183
      %v1216 = vmul.f32 %v1184, %v1184
      %v1217 = vmul.f32 %v1185, %v1185
      %v1218 = vmul.f32 %v1186, %v1186
      %v1219 = vmul.f32 %v1187, %v1187
      %v1220 = vmul.f32 %v1188, %v1188
      %v1221 = vmul.f32 %v1189, %v1189
      %v1222 = vmul.f32 %v1190, %v1190
      %v1223 = vmul.f32 %v1191, %v1191
      %v1224 = vmul.f32 %v1192, %v1192
      %v1225 = vmul.f32 %v1193, %v1193
      %v1226 = vmul.f32 %v1194, %v1194
      %v1227 = vmul.f32 %v1195, %v1195
      %v1228 = vmul.f32 %v1196, %v1196
      %v1229 = vmul.f32 %v1197, %v1197
      %v1230 = vmul.f32 %v1198, %v1198
      %v1231 = vmul.f32 %v1199, %v1199
      %v1232 = vmul.f32 %v1200, %v1200
      %v1233 = vmul.f32 %v1201, %v1201
      %v1234 = vmul.f32 %v1202, %v1202
      %v1235 = vmul.f32 %v1203, %v1203
      %v1236 = vmul.f32 %v1204, %v1204
      %v1237 = vmul.f32 %v1205, %v1205
      %v1238 = vmul.f32 %v1206, %v1206
      %1271 = vrot.lane.b32.xlu0 %v1207, 124
      %v1272 = vpop.permute.xlu0 %1271
      %1273 = vrot.lane.b32.xlu0 %v1208, 124
      %v1274 = vpop.permute.xlu0 %1273
      %1275 = vrot.lane.b32.xlu0 %v1209, 124
      %v1276 = vpop.permute.xlu0 %1275
      %1277 = vrot.lane.b32.xlu0 %v1210, 124
      %v1278 = vpop.permute.xlu0 %1277
      %1279 = vrot.lane.b32.xlu0 %v1211, 124
      %v1280 = vpop.permute.xlu0 %1279
      %1281 = vrot.lane.b32.xlu0 %v1212, 124
      %v1282 = vpop.permute.xlu0 %1281
      %1283 = vrot.lane.b32.xlu0 %v1213, 124
      %v1284 = vpop.permute.xlu0 %1283
      %1285 = vrot.lane.b32.xlu0 %v1214, 124
      %v1286 = vpop.permute.xlu0 %1285
      %1287 = vrot.lane.b32.xlu0 %v1215, 124
      %v1288 = vpop.permute.xlu0 %1287
      %1289 = vrot.lane.b32.xlu0 %v1216, 124
      %v1290 = vpop.permute.xlu0 %1289
      %1291 = vrot.lane.b32.xlu0 %v1217, 124
      %v1292 = vpop.permute.xlu0 %1291
      %1293 = vrot.lane.b32.xlu0 %v1218, 124
      %v1294 = vpop.permute.xlu0 %1293
      %1295 = vrot.lane.b32.xlu0 %v1219, 124
      %v1296 = vpop.permute.xlu0 %1295
      %1297 = vrot.lane.b32.xlu0 %v1220, 124
      %v1298 = vpop.permute.xlu0 %1297
      %1299 = vrot.lane.b32.xlu0 %v1221, 124
      %v1300 = vpop.permute.xlu0 %1299
      %1301 = vrot.lane.b32.xlu0 %v1222, 124
      %v1302 = vpop.permute.xlu0 %1301
      %1303 = vrot.lane.b32.xlu0 %v1223, 124
      %v1304 = vpop.permute.xlu0 %1303
      %1305 = vrot.lane.b32.xlu0 %v1224, 124
      %v1306 = vpop.permute.xlu0 %1305
      %1307 = vrot.lane.b32.xlu0 %v1225, 124
      %v1308 = vpop.permute.xlu0 %1307
      %1309 = vrot.lane.b32.xlu0 %v1226, 124
      %v1310 = vpop.permute.xlu0 %1309
      %1311 = vrot.lane.b32.xlu0 %v1227, 124
      %v1312 = vpop.permute.xlu0 %1311
      %1313 = vrot.lane.b32.xlu0 %v1228, 124
      %v1314 = vpop.permute.xlu0 %1313
      %1315 = vrot.lane.b32.xlu0 %v1229, 124
      %v1316 = vpop.permute.xlu0 %1315
      %1317 = vrot.lane.b32.xlu0 %v1230, 124
      %v1318 = vpop.permute.xlu0 %1317
      %1319 = vrot.lane.b32.xlu0 %v1231, 124
      %v1320 = vpop.permute.xlu0 %1319
      %1321 = vrot.lane.b32.xlu0 %v1232, 124
      %v1322 = vpop.permute.xlu0 %1321
      %1323 = vrot.lane.b32.xlu0 %v1233, 124
      %v1324 = vpop.permute.xlu0 %1323
      %1325 = vrot.lane.b32.xlu0 %v1234, 124
      %v1326 = vpop.permute.xlu0 %1325
      %1327 = vrot.lane.b32.xlu0 %v1235, 124
      %v1328 = vpop.permute.xlu0 %1327
      %1329 = vrot.lane.b32.xlu0 %v1236, 124
      %v1330 = vpop.permute.xlu0 %1329
      %1331 = vrot.lane.b32.xlu0 %v1237, 124
      %v1332 = vpop.permute.xlu0 %1331
      %1333 = vrot.lane.b32.xlu0 %v1238, 124
      %v1334 = vpop.permute.xlu0 %1333
      %v1367 = vsel %vm207, %v1272, 0.0
      %1368 = vadd.xlane.f32.xlu0 %v1367
      %v1369 = vpop.xlane.xlu0 %1368
      %v1370 = vsel %vm207, %v1274, 0.0
      %1371 = vadd.xlane.f32.xlu0 %v1370
      %v1372 = vpop.xlane.xlu0 %1371
      %v1373 = vsel %vm207, %v1276, 0.0
      %1374 = vadd.xlane.f32.xlu0 %v1373
      %v1375 = vpop.xlane.xlu0 %1374
      %v1376 = vsel %vm207, %v1278, 0.0
      %1377 = vadd.xlane.f32.xlu0 %v1376
      %v1378 = vpop.xlane.xlu0 %1377
      %v1379 = vsel %vm207, %v1280, 0.0
      %1380 = vadd.xlane.f32.xlu0 %v1379
      %v1381 = vpop.xlane.xlu0 %1380
      %v1382 = vsel %vm207, %v1282, 0.0
      %1383 = vadd.xlane.f32.xlu0 %v1382
      %v1384 = vpop.xlane.xlu0 %1383
      %v1385 = vsel %vm207, %v1284, 0.0
      %1386 = vadd.xlane.f32.xlu0 %v1385
      %v1387 = vpop.xlane.xlu0 %1386
      %v1388 = vsel %vm207, %v1286, 0.0
      %1389 = vadd.xlane.f32.xlu0 %v1388
      %v1390 = vpop.xlane.xlu0 %1389
      %v1391 = vsel %vm207, %v1288, 0.0
      %1392 = vadd.xlane.f32.xlu0 %v1391
      %v1393 = vpop.xlane.xlu0 %1392
      %v1394 = vsel %vm207, %v1290, 0.0
      %1395 = vadd.xlane.f32.xlu0 %v1394
      %v1396 = vpop.xlane.xlu0 %1395
      %v1397 = vsel %vm207, %v1292, 0.0
      %1398 = vadd.xlane.f32.xlu0 %v1397
      %v1399 = vpop.xlane.xlu0 %1398
      %v1400 = vsel %vm207, %v1294, 0.0
      %1401 = vadd.xlane.f32.xlu0 %v1400
      %v1402 = vpop.xlane.xlu0 %1401
      %v1403 = vsel %vm207, %v1296, 0.0
      %1404 = vadd.xlane.f32.xlu0 %v1403
      %v1405 = vpop.xlane.xlu0 %1404
      %v1406 = vsel %vm207, %v1298, 0.0
      %1407 = vadd.xlane.f32.xlu0 %v1406
      %v1408 = vpop.xlane.xlu0 %1407
      %v1409 = vsel %vm207, %v1300, 0.0
      %1410 = vadd.xlane.f32.xlu0 %v1409
      %v1411 = vpop.xlane.xlu0 %1410
      %v1412 = vsel %vm207, %v1302, 0.0
      %1413 = vadd.xlane.f32.xlu0 %v1412
      %v1414 = vpop.xlane.xlu0 %1413
      %v1415 = vsel %vm207, %v1304, 0.0
      %1416 = vadd.xlane.f32.xlu0 %v1415
      %v1417 = vpop.xlane.xlu0 %1416
      %v1418 = vsel %vm207, %v1306, 0.0
      %1419 = vadd.xlane.f32.xlu0 %v1418
      %v1420 = vpop.xlane.xlu0 %1419
      %v1421 = vsel %vm207, %v1308, 0.0
      %1422 = vadd.xlane.f32.xlu0 %v1421
      %v1423 = vpop.xlane.xlu0 %1422
      %v1424 = vsel %vm207, %v1310, 0.0
      %1425 = vadd.xlane.f32.xlu0 %v1424
      %v1426 = vpop.xlane.xlu0 %1425
      %v1427 = vsel %vm207, %v1312, 0.0
      %1428 = vadd.xlane.f32.xlu0 %v1427
      %v1429 = vpop.xlane.xlu0 %1428
      %v1430 = vsel %vm207, %v1314, 0.0
      %1431 = vadd.xlane.f32.xlu0 %v1430
      %v1432 = vpop.xlane.xlu0 %1431
      %v1433 = vsel %vm207, %v1316, 0.0
      %1434 = vadd.xlane.f32.xlu0 %v1433
      %v1435 = vpop.xlane.xlu0 %1434
      %v1436 = vsel %vm207, %v1318, 0.0
      %1437 = vadd.xlane.f32.xlu0 %v1436
      %v1438 = vpop.xlane.xlu0 %1437
      %v1439 = vsel %vm207, %v1320, 0.0
      %1440 = vadd.xlane.f32.xlu0 %v1439
      %v1441 = vpop.xlane.xlu0 %1440
      %v1442 = vsel %vm207, %v1322, 0.0
      %1443 = vadd.xlane.f32.xlu0 %v1442
      %v1444 = vpop.xlane.xlu0 %1443
      %v1445 = vsel %vm207, %v1324, 0.0
      %1446 = vadd.xlane.f32.xlu0 %v1445
      %v1447 = vpop.xlane.xlu0 %1446
      %v1448 = vsel %vm207, %v1326, 0.0
      %1449 = vadd.xlane.f32.xlu0 %v1448
      %v1450 = vpop.xlane.xlu0 %1449
      %v1451 = vsel %vm207, %v1328, 0.0
      %1452 = vadd.xlane.f32.xlu0 %v1451
      %v1453 = vpop.xlane.xlu0 %1452
      %v1454 = vsel %vm207, %v1330, 0.0
      %1455 = vadd.xlane.f32.xlu0 %v1454
      %v1456 = vpop.xlane.xlu0 %1455
      %v1457 = vsel %vm207, %v1332, 0.0
      %1458 = vadd.xlane.f32.xlu0 %v1457
      %v1459 = vpop.xlane.xlu0 %1458
      %v1460 = vsel %vm207, %v1334, 0.0
      %1461 = vadd.xlane.f32.xlu0 %v1460
      %v1462 = vpop.xlane.xlu0 %1461
      %v1463 = vmul.f32 %v1369, %v310
      %v1464 = vmul.f32 %v1372, %v310
      %v1465 = vmul.f32 %v1375, %v310
      %v1466 = vmul.f32 %v1378, %v310
      %v1467 = vmul.f32 %v1381, %v310
      %v1468 = vmul.f32 %v1384, %v310
      %v1469 = vmul.f32 %v1387, %v310
      %v1470 = vmul.f32 %v1390, %v310
      %v1471 = vmul.f32 %v1393, %v310
      %v1472 = vmul.f32 %v1396, %v310
      %v1473 = vmul.f32 %v1399, %v310
      %v1474 = vmul.f32 %v1402, %v310
      %v1475 = vmul.f32 %v1405, %v310
      %v1476 = vmul.f32 %v1408, %v310
      %v1477 = vmul.f32 %v1411, %v310
      %v1478 = vmul.f32 %v1414, %v310
      %v1479 = vmul.f32 %v1417, %v310
      %v1480 = vmul.f32 %v1420, %v310
      %v1481 = vmul.f32 %v1423, %v310
      %v1482 = vmul.f32 %v1426, %v310
      %v1483 = vmul.f32 %v1429, %v310
      %v1484 = vmul.f32 %v1432, %v310
      %v1485 = vmul.f32 %v1435, %v310
      %v1486 = vmul.f32 %v1438, %v310
      %v1487 = vmul.f32 %v1441, %v310
      %v1488 = vmul.f32 %v1444, %v310
      %v1489 = vmul.f32 %v1447, %v310
      %v1490 = vmul.f32 %v1450, %v310
      %v1491 = vmul.f32 %v1453, %v310
      %v1492 = vmul.f32 %v1456, %v310
      %v1493 = vmul.f32 %v1459, %v310
      %v1494 = vmul.f32 %v1462, %v310
      %v1495 = vadd.f32 %v1463, 1e-06
      %v1496 = vadd.f32 %v1464, 1e-06
      %v1497 = vadd.f32 %v1465, 1e-06
      %v1498 = vadd.f32 %v1466, 1e-06
      %v1499 = vadd.f32 %v1467, 1e-06
      %v1500 = vadd.f32 %v1468, 1e-06
      %v1501 = vadd.f32 %v1469, 1e-06
      %v1502 = vadd.f32 %v1470, 1e-06
      %v1503 = vadd.f32 %v1471, 1e-06
      %v1504 = vadd.f32 %v1472, 1e-06
      %v1505 = vadd.f32 %v1473, 1e-06
      %v1506 = vadd.f32 %v1474, 1e-06
      %v1507 = vadd.f32 %v1475, 1e-06
      %v1508 = vadd.f32 %v1476, 1e-06
      %v1509 = vadd.f32 %v1477, 1e-06
      %v1510 = vadd.f32 %v1478, 1e-06
      %v1511 = vadd.f32 %v1479, 1e-06
      %v1512 = vadd.f32 %v1480, 1e-06
      %v1513 = vadd.f32 %v1481, 1e-06
      %v1514 = vadd.f32 %v1482, 1e-06
      %v1515 = vadd.f32 %v1483, 1e-06
      %v1516 = vadd.f32 %v1484, 1e-06
      %v1517 = vadd.f32 %v1485, 1e-06
      %v1518 = vadd.f32 %v1486, 1e-06
      %v1519 = vadd.f32 %v1487, 1e-06
      %v1520 = vadd.f32 %v1488, 1e-06
      %v1521 = vadd.f32 %v1489, 1e-06
      %v1522 = vadd.f32 %v1490, 1e-06
      %v1523 = vadd.f32 %v1491, 1e-06
      %v1524 = vadd.f32 %v1492, 1e-06
      %v1525 = vadd.f32 %v1493, 1e-06
      %v1526 = vadd.f32 %v1494, 1e-06
      %v1527 = vrsqrt.pop %v1495
      %v1528 = vmul.f32 %v1527, %v1495
      %v1529 = vmul.f32 %v1528, %v1527
      %v1530 = vmul.f32 0.5, %v1529
      %v1531 = vsub.f32 1.5, %v1530
      %v1532 = vmul.f32 %v1527, %v1531
      %vm1533 = vweird.f32 %v1495
      %vm1534 = vweird.f32 %v1527
      %vm1535 = vmor %vm1533, %vm1534
      %v1536 = vsel %vm1535, %v1527, %v1532
      %v1537 = vrsqrt.pop %v1496
      %v1538 = vmul.f32 %v1537, %v1496
      %v1539 = vmul.f32 %v1538, %v1537
      %v1540 = vmul.f32 0.5, %v1539
      %v1541 = vsub.f32 1.5, %v1540
      %v1542 = vmul.f32 %v1537, %v1541
      %vm1543 = vweird.f32 %v1496
      %vm1544 = vweird.f32 %v1537
      %vm1545 = vmor %vm1543, %vm1544
      %v1546 = vsel %vm1545, %v1537, %v1542
      %v1547 = vrsqrt.pop %v1497
      %v1548 = vmul.f32 %v1547, %v1497
      %v1549 = vmul.f32 %v1548, %v1547
      %v1550 = vmul.f32 0.5, %v1549
      %v1551 = vsub.f32 1.5, %v1550
      %v1552 = vmul.f32 %v1547, %v1551
      %vm1553 = vweird.f32 %v1497
      %vm1554 = vweird.f32 %v1547
      %vm1555 = vmor %vm1553, %vm1554
      %v1556 = vsel %vm1555, %v1547, %v1552
      %v1557 = vrsqrt.pop %v1498
      %v1558 = vmul.f32 %v1557, %v1498
      %v1559 = vmul.f32 %v1558, %v1557
      %v1560 = vmul.f32 0.5, %v1559
      %v1561 = vsub.f32 1.5, %v1560
      %v1562 = vmul.f32 %v1557, %v1561
      %vm1563 = vweird.f32 %v1498
      %vm1564 = vweird.f32 %v1557
      %vm1565 = vmor %vm1563, %vm1564
      %v1566 = vsel %vm1565, %v1557, %v1562
      %v1567 = vrsqrt.pop %v1499
      %v1568 = vmul.f32 %v1567, %v1499
      %v1569 = vmul.f32 %v1568, %v1567
      %v1570 = vmul.f32 0.5, %v1569
      %v1571 = vsub.f32 1.5, %v1570
      %v1572 = vmul.f32 %v1567, %v1571
      %vm1573 = vweird.f32 %v1499
      %vm1574 = vweird.f32 %v1567
      %vm1575 = vmor %vm1573, %vm1574
      %v1576 = vsel %vm1575, %v1567, %v1572
      %v1577 = vrsqrt.pop %v1500
      %v1578 = vmul.f32 %v1577, %v1500
      %v1579 = vmul.f32 %v1578, %v1577
      %v1580 = vmul.f32 0.5, %v1579
      %v1581 = vsub.f32 1.5, %v1580
      %v1582 = vmul.f32 %v1577, %v1581
      %vm1583 = vweird.f32 %v1500
      %vm1584 = vweird.f32 %v1577
      %vm1585 = vmor %vm1583, %vm1584
      %v1586 = vsel %vm1585, %v1577, %v1582
      %v1587 = vrsqrt.pop %v1501
      %v1588 = vmul.f32 %v1587, %v1501
      %v1589 = vmul.f32 %v1588, %v1587
      %v1590 = vmul.f32 0.5, %v1589
      %v1591 = vsub.f32 1.5, %v1590
      %v1592 = vmul.f32 %v1587, %v1591
      %vm1593 = vweird.f32 %v1501
      %vm1594 = vweird.f32 %v1587
      %vm1595 = vmor %vm1593, %vm1594
      %v1596 = vsel %vm1595, %v1587, %v1592
      %v1597 = vrsqrt.pop %v1502
      %v1598 = vmul.f32 %v1597, %v1502
      %v1599 = vmul.f32 %v1598, %v1597
      %v1600 = vmul.f32 0.5, %v1599
      %v1601 = vsub.f32 1.5, %v1600
      %v1602 = vmul.f32 %v1597, %v1601
      %vm1603 = vweird.f32 %v1502
      %vm1604 = vweird.f32 %v1597
      %vm1605 = vmor %vm1603, %vm1604
      %v1606 = vsel %vm1605, %v1597, %v1602
      %v1607 = vrsqrt.pop %v1503
      %v1608 = vmul.f32 %v1607, %v1503
      %v1609 = vmul.f32 %v1608, %v1607
      %v1610 = vmul.f32 0.5, %v1609
      %v1611 = vsub.f32 1.5, %v1610
      %v1612 = vmul.f32 %v1607, %v1611
      %vm1613 = vweird.f32 %v1503
      %vm1614 = vweird.f32 %v1607
      %vm1615 = vmor %vm1613, %vm1614
      %v1616 = vsel %vm1615, %v1607, %v1612
      %v1617 = vrsqrt.pop %v1504
      %v1618 = vmul.f32 %v1617, %v1504
      %v1619 = vmul.f32 %v1618, %v1617
      %v1620 = vmul.f32 0.5, %v1619
      %v1621 = vsub.f32 1.5, %v1620
      %v1622 = vmul.f32 %v1617, %v1621
      %vm1623 = vweird.f32 %v1504
      %vm1624 = vweird.f32 %v1617
      %vm1625 = vmor %vm1623, %vm1624
      %v1626 = vsel %vm1625, %v1617, %v1622
      %v1627 = vrsqrt.pop %v1505
      %v1628 = vmul.f32 %v1627, %v1505
      %v1629 = vmul.f32 %v1628, %v1627
      %v1630 = vmul.f32 0.5, %v1629
      %v1631 = vsub.f32 1.5, %v1630
      %v1632 = vmul.f32 %v1627, %v1631
      %vm1633 = vweird.f32 %v1505
      %vm1634 = vweird.f32 %v1627
      %vm1635 = vmor %vm1633, %vm1634
      %v1636 = vsel %vm1635, %v1627, %v1632
      %v1637 = vrsqrt.pop %v1506
      %v1638 = vmul.f32 %v1637, %v1506
      %v1639 = vmul.f32 %v1638, %v1637
      %v1640 = vmul.f32 0.5, %v1639
      %v1641 = vsub.f32 1.5, %v1640
      %v1642 = vmul.f32 %v1637, %v1641
      %vm1643 = vweird.f32 %v1506
      %vm1644 = vweird.f32 %v1637
      %vm1645 = vmor %vm1643, %vm1644
      %v1646 = vsel %vm1645, %v1637, %v1642
      %v1647 = vrsqrt.pop %v1507
      %v1648 = vmul.f32 %v1647, %v1507
      %v1649 = vmul.f32 %v1648, %v1647
      %v1650 = vmul.f32 0.5, %v1649
      %v1651 = vsub.f32 1.5, %v1650
      %v1652 = vmul.f32 %v1647, %v1651
      %vm1653 = vweird.f32 %v1507
      %vm1654 = vweird.f32 %v1647
      %vm1655 = vmor %vm1653, %vm1654
      %v1656 = vsel %vm1655, %v1647, %v1652
      %v1657 = vrsqrt.pop %v1508
      %v1658 = vmul.f32 %v1657, %v1508
      %v1659 = vmul.f32 %v1658, %v1657
      %v1660 = vmul.f32 0.5, %v1659
      %v1661 = vsub.f32 1.5, %v1660
      %v1662 = vmul.f32 %v1657, %v1661
      %vm1663 = vweird.f32 %v1508
      %vm1664 = vweird.f32 %v1657
      %vm1665 = vmor %vm1663, %vm1664
      %v1666 = vsel %vm1665, %v1657, %v1662
      %v1667 = vrsqrt.pop %v1509
      %v1668 = vmul.f32 %v1667, %v1509
      %v1669 = vmul.f32 %v1668, %v1667
      %v1670 = vmul.f32 0.5, %v1669
      %v1671 = vsub.f32 1.5, %v1670
      %v1672 = vmul.f32 %v1667, %v1671
      %vm1673 = vweird.f32 %v1509
      %vm1674 = vweird.f32 %v1667
      %vm1675 = vmor %vm1673, %vm1674
      %v1676 = vsel %vm1675, %v1667, %v1672
      %v1677 = vrsqrt.pop %v1510
      %v1678 = vmul.f32 %v1677, %v1510
      %v1679 = vmul.f32 %v1678, %v1677
      %v1680 = vmul.f32 0.5, %v1679
      %v1681 = vsub.f32 1.5, %v1680
      %v1682 = vmul.f32 %v1677, %v1681
      %vm1683 = vweird.f32 %v1510
      %vm1684 = vweird.f32 %v1677
      %vm1685 = vmor %vm1683, %vm1684
      %v1686 = vsel %vm1685, %v1677, %v1682
      %v1687 = vrsqrt.pop %v1511
      %v1688 = vmul.f32 %v1687, %v1511
      %v1689 = vmul.f32 %v1688, %v1687
      %v1690 = vmul.f32 0.5, %v1689
      %v1691 = vsub.f32 1.5, %v1690
      %v1692 = vmul.f32 %v1687, %v1691
      %vm1693 = vweird.f32 %v1511
      %vm1694 = vweird.f32 %v1687
      %vm1695 = vmor %vm1693, %vm1694
      %v1696 = vsel %vm1695, %v1687, %v1692
      %v1697 = vrsqrt.pop %v1512
      %v1698 = vmul.f32 %v1697, %v1512
      %v1699 = vmul.f32 %v1698, %v1697
      %v1700 = vmul.f32 0.5, %v1699
      %v1701 = vsub.f32 1.5, %v1700
      %v1702 = vmul.f32 %v1697, %v1701
      %vm1703 = vweird.f32 %v1512
      %vm1704 = vweird.f32 %v1697
      %vm1705 = vmor %vm1703, %vm1704
      %v1706 = vsel %vm1705, %v1697, %v1702
      %v1707 = vrsqrt.pop %v1513
      %v1708 = vmul.f32 %v1707, %v1513
      %v1709 = vmul.f32 %v1708, %v1707
      %v1710 = vmul.f32 0.5, %v1709
      %v1711 = vsub.f32 1.5, %v1710
      %v1712 = vmul.f32 %v1707, %v1711
      %vm1713 = vweird.f32 %v1513
      %vm1714 = vweird.f32 %v1707
      %vm1715 = vmor %vm1713, %vm1714
      %v1716 = vsel %vm1715, %v1707, %v1712
      %v1717 = vrsqrt.pop %v1514
      %v1718 = vmul.f32 %v1717, %v1514
      %v1719 = vmul.f32 %v1718, %v1717
      %v1720 = vmul.f32 0.5, %v1719
      %v1721 = vsub.f32 1.5, %v1720
      %v1722 = vmul.f32 %v1717, %v1721
      %vm1723 = vweird.f32 %v1514
      %vm1724 = vweird.f32 %v1717
      %vm1725 = vmor %vm1723, %vm1724
      %v1726 = vsel %vm1725, %v1717, %v1722
      %v1727 = vrsqrt.pop %v1515
      %v1728 = vmul.f32 %v1727, %v1515
      %v1729 = vmul.f32 %v1728, %v1727
      %v1730 = vmul.f32 0.5, %v1729
      %v1731 = vsub.f32 1.5, %v1730
      %v1732 = vmul.f32 %v1727, %v1731
      %vm1733 = vweird.f32 %v1515
      %vm1734 = vweird.f32 %v1727
      %vm1735 = vmor %vm1733, %vm1734
      %v1736 = vsel %vm1735, %v1727, %v1732
      %v1737 = vrsqrt.pop %v1516
      %v1738 = vmul.f32 %v1737, %v1516
      %v1739 = vmul.f32 %v1738, %v1737
      %v1740 = vmul.f32 0.5, %v1739
      %v1741 = vsub.f32 1.5, %v1740
      %v1742 = vmul.f32 %v1737, %v1741
      %vm1743 = vweird.f32 %v1516
      %vm1744 = vweird.f32 %v1737
      %vm1745 = vmor %vm1743, %vm1744
      %v1746 = vsel %vm1745, %v1737, %v1742
      %v1747 = vrsqrt.pop %v1517
      %v1748 = vmul.f32 %v1747, %v1517
      %v1749 = vmul.f32 %v1748, %v1747
      %v1750 = vmul.f32 0.5, %v1749
      %v1751 = vsub.f32 1.5, %v1750
      %v1752 = vmul.f32 %v1747, %v1751
      %vm1753 = vweird.f32 %v1517
      %vm1754 = vweird.f32 %v1747
      %vm1755 = vmor %vm1753, %vm1754
      %v1756 = vsel %vm1755, %v1747, %v1752
      %v1757 = vrsqrt.pop %v1518
      %v1758 = vmul.f32 %v1757, %v1518
      %v1759 = vmul.f32 %v1758, %v1757
      %v1760 = vmul.f32 0.5, %v1759
      %v1761 = vsub.f32 1.5, %v1760
      %v1762 = vmul.f32 %v1757, %v1761
      %vm1763 = vweird.f32 %v1518
      %vm1764 = vweird.f32 %v1757
      %vm1765 = vmor %vm1763, %vm1764
      %v1766 = vsel %vm1765, %v1757, %v1762
      %v1767 = vrsqrt.pop %v1519
      %v1768 = vmul.f32 %v1767, %v1519
      %v1769 = vmul.f32 %v1768, %v1767
      %v1770 = vmul.f32 0.5, %v1769
      %v1771 = vsub.f32 1.5, %v1770
      %v1772 = vmul.f32 %v1767, %v1771
      %vm1773 = vweird.f32 %v1519
      %vm1774 = vweird.f32 %v1767
      %vm1775 = vmor %vm1773, %vm1774
      %v1776 = vsel %vm1775, %v1767, %v1772
      %v1777 = vrsqrt.pop %v1520
      %v1778 = vmul.f32 %v1777, %v1520
      %v1779 = vmul.f32 %v1778, %v1777
      %v1780 = vmul.f32 0.5, %v1779
      %v1781 = vsub.f32 1.5, %v1780
      %v1782 = vmul.f32 %v1777, %v1781
      %vm1783 = vweird.f32 %v1520
      %vm1784 = vweird.f32 %v1777
      %vm1785 = vmor %vm1783, %vm1784
      %v1786 = vsel %vm1785, %v1777, %v1782
      %v1787 = vrsqrt.pop %v1521
      %v1788 = vmul.f32 %v1787, %v1521
      %v1789 = vmul.f32 %v1788, %v1787
      %v1790 = vmul.f32 0.5, %v1789
      %v1791 = vsub.f32 1.5, %v1790
      %v1792 = vmul.f32 %v1787, %v1791
      %vm1793 = vweird.f32 %v1521
      %vm1794 = vweird.f32 %v1787
      %vm1795 = vmor %vm1793, %vm1794
      %v1796 = vsel %vm1795, %v1787, %v1792
      %v1797 = vrsqrt.pop %v1522
      %v1798 = vmul.f32 %v1797, %v1522
      %v1799 = vmul.f32 %v1798, %v1797
      %v1800 = vmul.f32 0.5, %v1799
      %v1801 = vsub.f32 1.5, %v1800
      %v1802 = vmul.f32 %v1797, %v1801
      %vm1803 = vweird.f32 %v1522
      %vm1804 = vweird.f32 %v1797
      %vm1805 = vmor %vm1803, %vm1804
      %v1806 = vsel %vm1805, %v1797, %v1802
      %v1807 = vrsqrt.pop %v1523
      %v1808 = vmul.f32 %v1807, %v1523
      %v1809 = vmul.f32 %v1808, %v1807
      %v1810 = vmul.f32 0.5, %v1809
      %v1811 = vsub.f32 1.5, %v1810
      %v1812 = vmul.f32 %v1807, %v1811
      %vm1813 = vweird.f32 %v1523
      %vm1814 = vweird.f32 %v1807
      %vm1815 = vmor %vm1813, %vm1814
      %v1816 = vsel %vm1815, %v1807, %v1812
      %v1817 = vrsqrt.pop %v1524
      %v1818 = vmul.f32 %v1817, %v1524
      %v1819 = vmul.f32 %v1818, %v1817
      %v1820 = vmul.f32 0.5, %v1819
      %v1821 = vsub.f32 1.5, %v1820
      %v1822 = vmul.f32 %v1817, %v1821
      %vm1823 = vweird.f32 %v1524
      %vm1824 = vweird.f32 %v1817
      %vm1825 = vmor %vm1823, %vm1824
      %v1826 = vsel %vm1825, %v1817, %v1822
      %v1827 = vrsqrt.pop %v1525
      %v1828 = vmul.f32 %v1827, %v1525
      %v1829 = vmul.f32 %v1828, %v1827
      %v1830 = vmul.f32 0.5, %v1829
      %v1831 = vsub.f32 1.5, %v1830
      %v1832 = vmul.f32 %v1827, %v1831
      %vm1833 = vweird.f32 %v1525
      %vm1834 = vweird.f32 %v1827
      %vm1835 = vmor %vm1833, %vm1834
      %v1836 = vsel %vm1835, %v1827, %v1832
      %v1837 = vrsqrt.pop %v1526
      %v1838 = vmul.f32 %v1837, %v1526
      %v1839 = vmul.f32 %v1838, %v1837
      %v1840 = vmul.f32 0.5, %v1839
      %v1841 = vsub.f32 1.5, %v1840
      %v1842 = vmul.f32 %v1837, %v1841
      %vm1843 = vweird.f32 %v1526
      %vm1844 = vweird.f32 %v1837
      %vm1845 = vmor %vm1843, %vm1844
      %v1846 = vsel %vm1845, %v1837, %v1842
      %v1847 = vmul.f32 %v1175, %v1536
      %v1848 = vmul.f32 %v1176, %v1546
      %v1849 = vmul.f32 %v1177, %v1556
      %v1850 = vmul.f32 %v1178, %v1566
      %v1851 = vmul.f32 %v1179, %v1576
      %v1852 = vmul.f32 %v1180, %v1586
      %v1853 = vmul.f32 %v1181, %v1596
      %v1854 = vmul.f32 %v1182, %v1606
      %v1855 = vmul.f32 %v1183, %v1616
      %v1856 = vmul.f32 %v1184, %v1626
      %v1857 = vmul.f32 %v1185, %v1636
      %v1858 = vmul.f32 %v1186, %v1646
      %v1859 = vmul.f32 %v1187, %v1656
      %v1860 = vmul.f32 %v1188, %v1666
      %v1861 = vmul.f32 %v1189, %v1676
      %v1862 = vmul.f32 %v1190, %v1686
      %v1863 = vmul.f32 %v1191, %v1696
      %v1864 = vmul.f32 %v1192, %v1706
      %v1865 = vmul.f32 %v1193, %v1716
      %v1866 = vmul.f32 %v1194, %v1726
      %v1867 = vmul.f32 %v1195, %v1736
      %v1868 = vmul.f32 %v1196, %v1746
      %v1869 = vmul.f32 %v1197, %v1756
      %v1870 = vmul.f32 %v1198, %v1766
      %v1871 = vmul.f32 %v1199, %v1776
      %v1872 = vmul.f32 %v1200, %v1786
      %v1873 = vmul.f32 %v1201, %v1796
      %v1874 = vmul.f32 %v1202, %v1806
      %v1875 = vmul.f32 %v1203, %v1816
      %v1876 = vmul.f32 %v1204, %v1826
      %v1877 = vmul.f32 %v1205, %v1836
      %v1878 = vmul.f32 %v1206, %v1846
      %1879 = vrot.lane.b32.xlu0 %v175, 120
      %v1880 = vpop.permute.xlu0 %1879
      %1881 = vrot.lane.b32.xlu0 %v176, 120
      %v1882 = vpop.permute.xlu0 %1881
      %1883 = vrot.lane.b32.xlu0 %v177, 120
      %v1884 = vpop.permute.xlu0 %1883
      %1885 = vrot.lane.b32.xlu0 %v178, 120
      %v1886 = vpop.permute.xlu0 %1885
      %1887 = vrot.lane.b32.xlu0 %v179, 120
      %v1888 = vpop.permute.xlu0 %1887
      %1889 = vrot.lane.b32.xlu0 %v180, 120
      %v1890 = vpop.permute.xlu0 %1889
      %1891 = vrot.lane.b32.xlu0 %v181, 120
      %v1892 = vpop.permute.xlu0 %1891
      %1893 = vrot.lane.b32.xlu0 %v182, 120
      %v1894 = vpop.permute.xlu0 %1893
      %1895 = vrot.lane.b32.xlu0 %v183, 120
      %v1896 = vpop.permute.xlu0 %1895
      %1897 = vrot.lane.b32.xlu0 %v184, 120
      %v1898 = vpop.permute.xlu0 %1897
      %1899 = vrot.lane.b32.xlu0 %v185, 120
      %v1900 = vpop.permute.xlu0 %1899
      %1901 = vrot.lane.b32.xlu0 %v186, 120
      %v1902 = vpop.permute.xlu0 %1901
      %1903 = vrot.lane.b32.xlu0 %v187, 120
      %v1904 = vpop.permute.xlu0 %1903
      %1905 = vrot.lane.b32.xlu0 %v188, 120
      %v1906 = vpop.permute.xlu0 %1905
      %1907 = vrot.lane.b32.xlu0 %v189, 120
      %v1908 = vpop.permute.xlu0 %1907
      %1909 = vrot.lane.b32.xlu0 %v190, 120
      %v1910 = vpop.permute.xlu0 %1909
      %1911 = vrot.lane.b32.xlu0 %v191, 120
      %v1912 = vpop.permute.xlu0 %1911
      %1913 = vrot.lane.b32.xlu0 %v192, 120
      %v1914 = vpop.permute.xlu0 %1913
      %1915 = vrot.lane.b32.xlu0 %v193, 120
      %v1916 = vpop.permute.xlu0 %1915
      %1917 = vrot.lane.b32.xlu0 %v194, 120
      %v1918 = vpop.permute.xlu0 %1917
      %1919 = vrot.lane.b32.xlu0 %v195, 120
      %v1920 = vpop.permute.xlu0 %1919
      %1921 = vrot.lane.b32.xlu0 %v196, 120
      %v1922 = vpop.permute.xlu0 %1921
      %1923 = vrot.lane.b32.xlu0 %v197, 120
      %v1924 = vpop.permute.xlu0 %1923
      %1925 = vrot.lane.b32.xlu0 %v198, 120
      %v1926 = vpop.permute.xlu0 %1925
      %1927 = vrot.lane.b32.xlu0 %v199, 120
      %v1928 = vpop.permute.xlu0 %1927
      %1929 = vrot.lane.b32.xlu0 %v200, 120
      %v1930 = vpop.permute.xlu0 %1929
      %1931 = vrot.lane.b32.xlu0 %v201, 120
      %v1932 = vpop.permute.xlu0 %1931
      %1933 = vrot.lane.b32.xlu0 %v202, 120
      %v1934 = vpop.permute.xlu0 %1933
      %1935 = vrot.lane.b32.xlu0 %v203, 120
      %v1936 = vpop.permute.xlu0 %1935
      %1937 = vrot.lane.b32.xlu0 %v204, 120
      %v1938 = vpop.permute.xlu0 %1937
      %1939 = vrot.lane.b32.xlu0 %v205, 120
      %v1940 = vpop.permute.xlu0 %1939
      %1941 = vrot.lane.b32.xlu0 %v206, 120
      %v1942 = vpop.permute.xlu0 %1941
      %v1975 = vsel %vm207, %v1880, 0.0
      %1976 = vadd.xlane.f32.xlu0 %v1975
      %v1977 = vpop.xlane.xlu0 %1976
      %v1978 = vsel %vm207, %v1882, 0.0
      %1979 = vadd.xlane.f32.xlu0 %v1978
      %v1980 = vpop.xlane.xlu0 %1979
      %v1981 = vsel %vm207, %v1884, 0.0
      %1982 = vadd.xlane.f32.xlu0 %v1981
      %v1983 = vpop.xlane.xlu0 %1982
      %v1984 = vsel %vm207, %v1886, 0.0
      %1985 = vadd.xlane.f32.xlu0 %v1984
      %v1986 = vpop.xlane.xlu0 %1985
      %v1987 = vsel %vm207, %v1888, 0.0
      %1988 = vadd.xlane.f32.xlu0 %v1987
      %v1989 = vpop.xlane.xlu0 %1988
      %v1990 = vsel %vm207, %v1890, 0.0
      %1991 = vadd.xlane.f32.xlu0 %v1990
      %v1992 = vpop.xlane.xlu0 %1991
      %v1993 = vsel %vm207, %v1892, 0.0
      %1994 = vadd.xlane.f32.xlu0 %v1993
      %v1995 = vpop.xlane.xlu0 %1994
      %v1996 = vsel %vm207, %v1894, 0.0
      %1997 = vadd.xlane.f32.xlu0 %v1996
      %v1998 = vpop.xlane.xlu0 %1997
      %v1999 = vsel %vm207, %v1896, 0.0
      %2000 = vadd.xlane.f32.xlu0 %v1999
      %v2001 = vpop.xlane.xlu0 %2000
      %v2002 = vsel %vm207, %v1898, 0.0
      %2003 = vadd.xlane.f32.xlu0 %v2002
      %v2004 = vpop.xlane.xlu0 %2003
      %v2005 = vsel %vm207, %v1900, 0.0
      %2006 = vadd.xlane.f32.xlu0 %v2005
      %v2007 = vpop.xlane.xlu0 %2006
      %v2008 = vsel %vm207, %v1902, 0.0
      %2009 = vadd.xlane.f32.xlu0 %v2008
      %v2010 = vpop.xlane.xlu0 %2009
      %v2011 = vsel %vm207, %v1904, 0.0
      %2012 = vadd.xlane.f32.xlu0 %v2011
      %v2013 = vpop.xlane.xlu0 %2012
      %v2014 = vsel %vm207, %v1906, 0.0
      %2015 = vadd.xlane.f32.xlu0 %v2014
      %v2016 = vpop.xlane.xlu0 %2015
      %v2017 = vsel %vm207, %v1908, 0.0
      %2018 = vadd.xlane.f32.xlu0 %v2017
      %v2019 = vpop.xlane.xlu0 %2018
      %v2020 = vsel %vm207, %v1910, 0.0
      %2021 = vadd.xlane.f32.xlu0 %v2020
      %v2022 = vpop.xlane.xlu0 %2021
      %v2023 = vsel %vm207, %v1912, 0.0
      %2024 = vadd.xlane.f32.xlu0 %v2023
      %v2025 = vpop.xlane.xlu0 %2024
      %v2026 = vsel %vm207, %v1914, 0.0
      %2027 = vadd.xlane.f32.xlu0 %v2026
      %v2028 = vpop.xlane.xlu0 %2027
      %v2029 = vsel %vm207, %v1916, 0.0
      %2030 = vadd.xlane.f32.xlu0 %v2029
      %v2031 = vpop.xlane.xlu0 %2030
      %v2032 = vsel %vm207, %v1918, 0.0
      %2033 = vadd.xlane.f32.xlu0 %v2032
      %v2034 = vpop.xlane.xlu0 %2033
      %v2035 = vsel %vm207, %v1920, 0.0
      %2036 = vadd.xlane.f32.xlu0 %v2035
      %v2037 = vpop.xlane.xlu0 %2036
      %v2038 = vsel %vm207, %v1922, 0.0
      %2039 = vadd.xlane.f32.xlu0 %v2038
      %v2040 = vpop.xlane.xlu0 %2039
      %v2041 = vsel %vm207, %v1924, 0.0
      %2042 = vadd.xlane.f32.xlu0 %v2041
      %v2043 = vpop.xlane.xlu0 %2042
      %v2044 = vsel %vm207, %v1926, 0.0
      %2045 = vadd.xlane.f32.xlu0 %v2044
      %v2046 = vpop.xlane.xlu0 %2045
      %v2047 = vsel %vm207, %v1928, 0.0
      %2048 = vadd.xlane.f32.xlu0 %v2047
      %v2049 = vpop.xlane.xlu0 %2048
      %v2050 = vsel %vm207, %v1930, 0.0
      %2051 = vadd.xlane.f32.xlu0 %v2050
      %v2052 = vpop.xlane.xlu0 %2051
      %v2053 = vsel %vm207, %v1932, 0.0
      %2054 = vadd.xlane.f32.xlu0 %v2053
      %v2055 = vpop.xlane.xlu0 %2054
      %v2056 = vsel %vm207, %v1934, 0.0
      %2057 = vadd.xlane.f32.xlu0 %v2056
      %v2058 = vpop.xlane.xlu0 %2057
      %v2059 = vsel %vm207, %v1936, 0.0
      %2060 = vadd.xlane.f32.xlu0 %v2059
      %v2061 = vpop.xlane.xlu0 %2060
      %v2062 = vsel %vm207, %v1938, 0.0
      %2063 = vadd.xlane.f32.xlu0 %v2062
      %v2064 = vpop.xlane.xlu0 %2063
      %v2065 = vsel %vm207, %v1940, 0.0
      %2066 = vadd.xlane.f32.xlu0 %v2065
      %v2067 = vpop.xlane.xlu0 %2066
      %v2068 = vsel %vm207, %v1942, 0.0
      %2069 = vadd.xlane.f32.xlu0 %v2068
      %v2070 = vpop.xlane.xlu0 %2069
      %v2071 = vmul.f32 %v1977, %v310
      %v2072 = vmul.f32 %v1980, %v310
      %v2073 = vmul.f32 %v1983, %v310
      %v2074 = vmul.f32 %v1986, %v310
      %v2075 = vmul.f32 %v1989, %v310
      %v2076 = vmul.f32 %v1992, %v310
      %v2077 = vmul.f32 %v1995, %v310
      %v2078 = vmul.f32 %v1998, %v310
      %v2079 = vmul.f32 %v2001, %v310
      %v2080 = vmul.f32 %v2004, %v310
      %v2081 = vmul.f32 %v2007, %v310
      %v2082 = vmul.f32 %v2010, %v310
      %v2083 = vmul.f32 %v2013, %v310
      %v2084 = vmul.f32 %v2016, %v310
      %v2085 = vmul.f32 %v2019, %v310
      %v2086 = vmul.f32 %v2022, %v310
      %v2087 = vmul.f32 %v2025, %v310
      %v2088 = vmul.f32 %v2028, %v310
      %v2089 = vmul.f32 %v2031, %v310
      %v2090 = vmul.f32 %v2034, %v310
      %v2091 = vmul.f32 %v2037, %v310
      %v2092 = vmul.f32 %v2040, %v310
      %v2093 = vmul.f32 %v2043, %v310
      %v2094 = vmul.f32 %v2046, %v310
      %v2095 = vmul.f32 %v2049, %v310
      %v2096 = vmul.f32 %v2052, %v310
      %v2097 = vmul.f32 %v2055, %v310
      %v2098 = vmul.f32 %v2058, %v310
      %v2099 = vmul.f32 %v2061, %v310
      %v2100 = vmul.f32 %v2064, %v310
      %v2101 = vmul.f32 %v2067, %v310
      %v2102 = vmul.f32 %v2070, %v310
      %v2103 = vsub.f32 %v175, %v2071
      %v2104 = vsub.f32 %v176, %v2072
      %v2105 = vsub.f32 %v177, %v2073
      %v2106 = vsub.f32 %v178, %v2074
      %v2107 = vsub.f32 %v179, %v2075
      %v2108 = vsub.f32 %v180, %v2076
      %v2109 = vsub.f32 %v181, %v2077
      %v2110 = vsub.f32 %v182, %v2078
      %v2111 = vsub.f32 %v183, %v2079
      %v2112 = vsub.f32 %v184, %v2080
      %v2113 = vsub.f32 %v185, %v2081
      %v2114 = vsub.f32 %v186, %v2082
      %v2115 = vsub.f32 %v187, %v2083
      %v2116 = vsub.f32 %v188, %v2084
      %v2117 = vsub.f32 %v189, %v2085
      %v2118 = vsub.f32 %v190, %v2086
      %v2119 = vsub.f32 %v191, %v2087
      %v2120 = vsub.f32 %v192, %v2088
      %v2121 = vsub.f32 %v193, %v2089
      %v2122 = vsub.f32 %v194, %v2090
      %v2123 = vsub.f32 %v195, %v2091
      %v2124 = vsub.f32 %v196, %v2092
      %v2125 = vsub.f32 %v197, %v2093
      %v2126 = vsub.f32 %v198, %v2094
      %v2127 = vsub.f32 %v199, %v2095
      %v2128 = vsub.f32 %v200, %v2096
      %v2129 = vsub.f32 %v201, %v2097
      %v2130 = vsub.f32 %v202, %v2098
      %v2131 = vsub.f32 %v203, %v2099
      %v2132 = vsub.f32 %v204, %v2100
      %v2133 = vsub.f32 %v205, %v2101
      %v2134 = vsub.f32 %v206, %v2102
      %v2135 = vmul.f32 %v2103, %v2103
      %v2136 = vmul.f32 %v2104, %v2104
      %v2137 = vmul.f32 %v2105, %v2105
      %v2138 = vmul.f32 %v2106, %v2106
      %v2139 = vmul.f32 %v2107, %v2107
      %v2140 = vmul.f32 %v2108, %v2108
      %v2141 = vmul.f32 %v2109, %v2109
      %v2142 = vmul.f32 %v2110, %v2110
      %v2143 = vmul.f32 %v2111, %v2111
      %v2144 = vmul.f32 %v2112, %v2112
      %v2145 = vmul.f32 %v2113, %v2113
      %v2146 = vmul.f32 %v2114, %v2114
      %v2147 = vmul.f32 %v2115, %v2115
      %v2148 = vmul.f32 %v2116, %v2116
      %v2149 = vmul.f32 %v2117, %v2117
      %v2150 = vmul.f32 %v2118, %v2118
      %v2151 = vmul.f32 %v2119, %v2119
      %v2152 = vmul.f32 %v2120, %v2120
      %v2153 = vmul.f32 %v2121, %v2121
      %v2154 = vmul.f32 %v2122, %v2122
      %v2155 = vmul.f32 %v2123, %v2123
      %v2156 = vmul.f32 %v2124, %v2124
      %v2157 = vmul.f32 %v2125, %v2125
      %v2158 = vmul.f32 %v2126, %v2126
      %v2159 = vmul.f32 %v2127, %v2127
      %v2160 = vmul.f32 %v2128, %v2128
      %v2161 = vmul.f32 %v2129, %v2129
      %v2162 = vmul.f32 %v2130, %v2130
      %v2163 = vmul.f32 %v2131, %v2131
      %v2164 = vmul.f32 %v2132, %v2132
      %v2165 = vmul.f32 %v2133, %v2133
      %v2166 = vmul.f32 %v2134, %v2134
      %2199 = vrot.lane.b32.xlu0 %v2135, 120
      %v2200 = vpop.permute.xlu0 %2199
      %2201 = vrot.lane.b32.xlu0 %v2136, 120
      %v2202 = vpop.permute.xlu0 %2201
      %2203 = vrot.lane.b32.xlu0 %v2137, 120
      %v2204 = vpop.permute.xlu0 %2203
      %2205 = vrot.lane.b32.xlu0 %v2138, 120
      %v2206 = vpop.permute.xlu0 %2205
      %2207 = vrot.lane.b32.xlu0 %v2139, 120
      %v2208 = vpop.permute.xlu0 %2207
      %2209 = vrot.lane.b32.xlu0 %v2140, 120
      %v2210 = vpop.permute.xlu0 %2209
      %2211 = vrot.lane.b32.xlu0 %v2141, 120
      %v2212 = vpop.permute.xlu0 %2211
      %2213 = vrot.lane.b32.xlu0 %v2142, 120
      %v2214 = vpop.permute.xlu0 %2213
      %2215 = vrot.lane.b32.xlu0 %v2143, 120
      %v2216 = vpop.permute.xlu0 %2215
      %2217 = vrot.lane.b32.xlu0 %v2144, 120
      %v2218 = vpop.permute.xlu0 %2217
      %2219 = vrot.lane.b32.xlu0 %v2145, 120
      %v2220 = vpop.permute.xlu0 %2219
      %2221 = vrot.lane.b32.xlu0 %v2146, 120
      %v2222 = vpop.permute.xlu0 %2221
      %2223 = vrot.lane.b32.xlu0 %v2147, 120
      %v2224 = vpop.permute.xlu0 %2223
      %2225 = vrot.lane.b32.xlu0 %v2148, 120
      %v2226 = vpop.permute.xlu0 %2225
      %2227 = vrot.lane.b32.xlu0 %v2149, 120
      %v2228 = vpop.permute.xlu0 %2227
      %2229 = vrot.lane.b32.xlu0 %v2150, 120
      %v2230 = vpop.permute.xlu0 %2229
      %2231 = vrot.lane.b32.xlu0 %v2151, 120
      %v2232 = vpop.permute.xlu0 %2231
      %2233 = vrot.lane.b32.xlu0 %v2152, 120
      %v2234 = vpop.permute.xlu0 %2233
      %2235 = vrot.lane.b32.xlu0 %v2153, 120
      %v2236 = vpop.permute.xlu0 %2235
      %2237 = vrot.lane.b32.xlu0 %v2154, 120
      %v2238 = vpop.permute.xlu0 %2237
      %2239 = vrot.lane.b32.xlu0 %v2155, 120
      %v2240 = vpop.permute.xlu0 %2239
      %2241 = vrot.lane.b32.xlu0 %v2156, 120
      %v2242 = vpop.permute.xlu0 %2241
      %2243 = vrot.lane.b32.xlu0 %v2157, 120
      %v2244 = vpop.permute.xlu0 %2243
      %2245 = vrot.lane.b32.xlu0 %v2158, 120
      %v2246 = vpop.permute.xlu0 %2245
      %2247 = vrot.lane.b32.xlu0 %v2159, 120
      %v2248 = vpop.permute.xlu0 %2247
      %2249 = vrot.lane.b32.xlu0 %v2160, 120
      %v2250 = vpop.permute.xlu0 %2249
      %2251 = vrot.lane.b32.xlu0 %v2161, 120
      %v2252 = vpop.permute.xlu0 %2251
      %2253 = vrot.lane.b32.xlu0 %v2162, 120
      %v2254 = vpop.permute.xlu0 %2253
      %2255 = vrot.lane.b32.xlu0 %v2163, 120
      %v2256 = vpop.permute.xlu0 %2255
      %2257 = vrot.lane.b32.xlu0 %v2164, 120
      %v2258 = vpop.permute.xlu0 %2257
      %2259 = vrot.lane.b32.xlu0 %v2165, 120
      %v2260 = vpop.permute.xlu0 %2259
      %2261 = vrot.lane.b32.xlu0 %v2166, 120
      %v2262 = vpop.permute.xlu0 %2261
      %v2295 = vsel %vm207, %v2200, 0.0
      %2296 = vadd.xlane.f32.xlu0 %v2295
      %v2297 = vpop.xlane.xlu0 %2296
      %v2298 = vsel %vm207, %v2202, 0.0
      %2299 = vadd.xlane.f32.xlu0 %v2298
      %v2300 = vpop.xlane.xlu0 %2299
      %v2301 = vsel %vm207, %v2204, 0.0
      %2302 = vadd.xlane.f32.xlu0 %v2301
      %v2303 = vpop.xlane.xlu0 %2302
      %v2304 = vsel %vm207, %v2206, 0.0
      %2305 = vadd.xlane.f32.xlu0 %v2304
      %v2306 = vpop.xlane.xlu0 %2305
      %v2307 = vsel %vm207, %v2208, 0.0
      %2308 = vadd.xlane.f32.xlu0 %v2307
      %v2309 = vpop.xlane.xlu0 %2308
      %v2310 = vsel %vm207, %v2210, 0.0
      %2311 = vadd.xlane.f32.xlu0 %v2310
      %v2312 = vpop.xlane.xlu0 %2311
      %v2313 = vsel %vm207, %v2212, 0.0
      %2314 = vadd.xlane.f32.xlu0 %v2313
      %v2315 = vpop.xlane.xlu0 %2314
      %v2316 = vsel %vm207, %v2214, 0.0
      %2317 = vadd.xlane.f32.xlu0 %v2316
      %v2318 = vpop.xlane.xlu0 %2317
      %v2319 = vsel %vm207, %v2216, 0.0
      %2320 = vadd.xlane.f32.xlu0 %v2319
      %v2321 = vpop.xlane.xlu0 %2320
      %v2322 = vsel %vm207, %v2218, 0.0
      %2323 = vadd.xlane.f32.xlu0 %v2322
      %v2324 = vpop.xlane.xlu0 %2323
      %v2325 = vsel %vm207, %v2220, 0.0
      %2326 = vadd.xlane.f32.xlu0 %v2325
      %v2327 = vpop.xlane.xlu0 %2326
      %v2328 = vsel %vm207, %v2222, 0.0
      %2329 = vadd.xlane.f32.xlu0 %v2328
      %v2330 = vpop.xlane.xlu0 %2329
      %v2331 = vsel %vm207, %v2224, 0.0
      %2332 = vadd.xlane.f32.xlu0 %v2331
      %v2333 = vpop.xlane.xlu0 %2332
      %v2334 = vsel %vm207, %v2226, 0.0
      %2335 = vadd.xlane.f32.xlu0 %v2334
      %v2336 = vpop.xlane.xlu0 %2335
      %v2337 = vsel %vm207, %v2228, 0.0
      %2338 = vadd.xlane.f32.xlu0 %v2337
      %v2339 = vpop.xlane.xlu0 %2338
      %v2340 = vsel %vm207, %v2230, 0.0
      %2341 = vadd.xlane.f32.xlu0 %v2340
      %v2342 = vpop.xlane.xlu0 %2341
      %v2343 = vsel %vm207, %v2232, 0.0
      %2344 = vadd.xlane.f32.xlu0 %v2343
      %v2345 = vpop.xlane.xlu0 %2344
      %v2346 = vsel %vm207, %v2234, 0.0
      %2347 = vadd.xlane.f32.xlu0 %v2346
      %v2348 = vpop.xlane.xlu0 %2347
      %v2349 = vsel %vm207, %v2236, 0.0
      %2350 = vadd.xlane.f32.xlu0 %v2349
      %v2351 = vpop.xlane.xlu0 %2350
      %v2352 = vsel %vm207, %v2238, 0.0
      %2353 = vadd.xlane.f32.xlu0 %v2352
      %v2354 = vpop.xlane.xlu0 %2353
      %v2355 = vsel %vm207, %v2240, 0.0
      %2356 = vadd.xlane.f32.xlu0 %v2355
      %v2357 = vpop.xlane.xlu0 %2356
      %v2358 = vsel %vm207, %v2242, 0.0
      %2359 = vadd.xlane.f32.xlu0 %v2358
      %v2360 = vpop.xlane.xlu0 %2359
      %v2361 = vsel %vm207, %v2244, 0.0
      %2362 = vadd.xlane.f32.xlu0 %v2361
      %v2363 = vpop.xlane.xlu0 %2362
      %v2364 = vsel %vm207, %v2246, 0.0
      %2365 = vadd.xlane.f32.xlu0 %v2364
      %v2366 = vpop.xlane.xlu0 %2365
      %v2367 = vsel %vm207, %v2248, 0.0
      %2368 = vadd.xlane.f32.xlu0 %v2367
      %v2369 = vpop.xlane.xlu0 %2368
      %v2370 = vsel %vm207, %v2250, 0.0
      %2371 = vadd.xlane.f32.xlu0 %v2370
      %v2372 = vpop.xlane.xlu0 %2371
      %v2373 = vsel %vm207, %v2252, 0.0
      %2374 = vadd.xlane.f32.xlu0 %v2373
      %v2375 = vpop.xlane.xlu0 %2374
      %v2376 = vsel %vm207, %v2254, 0.0
      %2377 = vadd.xlane.f32.xlu0 %v2376
      %v2378 = vpop.xlane.xlu0 %2377
      %v2379 = vsel %vm207, %v2256, 0.0
      %2380 = vadd.xlane.f32.xlu0 %v2379
      %v2381 = vpop.xlane.xlu0 %2380
      %v2382 = vsel %vm207, %v2258, 0.0
      %2383 = vadd.xlane.f32.xlu0 %v2382
      %v2384 = vpop.xlane.xlu0 %2383
      %v2385 = vsel %vm207, %v2260, 0.0
      %2386 = vadd.xlane.f32.xlu0 %v2385
      %v2387 = vpop.xlane.xlu0 %2386
      %v2388 = vsel %vm207, %v2262, 0.0
      %2389 = vadd.xlane.f32.xlu0 %v2388
      %v2390 = vpop.xlane.xlu0 %2389
      %v2391 = vmul.f32 %v2297, %v310
      %v2392 = vmul.f32 %v2300, %v310
      %v2393 = vmul.f32 %v2303, %v310
      %v2394 = vmul.f32 %v2306, %v310
      %v2395 = vmul.f32 %v2309, %v310
      %v2396 = vmul.f32 %v2312, %v310
      %v2397 = vmul.f32 %v2315, %v310
      %v2398 = vmul.f32 %v2318, %v310
      %v2399 = vmul.f32 %v2321, %v310
      %v2400 = vmul.f32 %v2324, %v310
      %v2401 = vmul.f32 %v2327, %v310
      %v2402 = vmul.f32 %v2330, %v310
      %v2403 = vmul.f32 %v2333, %v310
      %v2404 = vmul.f32 %v2336, %v310
      %v2405 = vmul.f32 %v2339, %v310
      %v2406 = vmul.f32 %v2342, %v310
      %v2407 = vmul.f32 %v2345, %v310
      %v2408 = vmul.f32 %v2348, %v310
      %v2409 = vmul.f32 %v2351, %v310
      %v2410 = vmul.f32 %v2354, %v310
      %v2411 = vmul.f32 %v2357, %v310
      %v2412 = vmul.f32 %v2360, %v310
      %v2413 = vmul.f32 %v2363, %v310
      %v2414 = vmul.f32 %v2366, %v310
      %v2415 = vmul.f32 %v2369, %v310
      %v2416 = vmul.f32 %v2372, %v310
      %v2417 = vmul.f32 %v2375, %v310
      %v2418 = vmul.f32 %v2378, %v310
      %v2419 = vmul.f32 %v2381, %v310
      %v2420 = vmul.f32 %v2384, %v310
      %v2421 = vmul.f32 %v2387, %v310
      %v2422 = vmul.f32 %v2390, %v310
      %v2423 = vadd.f32 %v2391, 1e-06
      %v2424 = vadd.f32 %v2392, 1e-06
      %v2425 = vadd.f32 %v2393, 1e-06
      %v2426 = vadd.f32 %v2394, 1e-06
      %v2427 = vadd.f32 %v2395, 1e-06
      %v2428 = vadd.f32 %v2396, 1e-06
      %v2429 = vadd.f32 %v2397, 1e-06
      %v2430 = vadd.f32 %v2398, 1e-06
      %v2431 = vadd.f32 %v2399, 1e-06
      %v2432 = vadd.f32 %v2400, 1e-06
      %v2433 = vadd.f32 %v2401, 1e-06
      %v2434 = vadd.f32 %v2402, 1e-06
      %v2435 = vadd.f32 %v2403, 1e-06
      %v2436 = vadd.f32 %v2404, 1e-06
      %v2437 = vadd.f32 %v2405, 1e-06
      %v2438 = vadd.f32 %v2406, 1e-06
      %v2439 = vadd.f32 %v2407, 1e-06
      %v2440 = vadd.f32 %v2408, 1e-06
      %v2441 = vadd.f32 %v2409, 1e-06
      %v2442 = vadd.f32 %v2410, 1e-06
      %v2443 = vadd.f32 %v2411, 1e-06
      %v2444 = vadd.f32 %v2412, 1e-06
      %v2445 = vadd.f32 %v2413, 1e-06
      %v2446 = vadd.f32 %v2414, 1e-06
      %v2447 = vadd.f32 %v2415, 1e-06
      %v2448 = vadd.f32 %v2416, 1e-06
      %v2449 = vadd.f32 %v2417, 1e-06
      %v2450 = vadd.f32 %v2418, 1e-06
      %v2451 = vadd.f32 %v2419, 1e-06
      %v2452 = vadd.f32 %v2420, 1e-06
      %v2453 = vadd.f32 %v2421, 1e-06
      %v2454 = vadd.f32 %v2422, 1e-06
      %v2455 = vrsqrt.pop %v2423
      %v2456 = vmul.f32 %v2455, %v2423
      %v2457 = vmul.f32 %v2456, %v2455
      %v2458 = vmul.f32 0.5, %v2457
      %v2459 = vsub.f32 1.5, %v2458
      %v2460 = vmul.f32 %v2455, %v2459
      %vm2461 = vweird.f32 %v2423
      %vm2462 = vweird.f32 %v2455
      %vm2463 = vmor %vm2461, %vm2462
      %v2464 = vsel %vm2463, %v2455, %v2460
      %v2465 = vrsqrt.pop %v2424
      %v2466 = vmul.f32 %v2465, %v2424
      %v2467 = vmul.f32 %v2466, %v2465
      %v2468 = vmul.f32 0.5, %v2467
      %v2469 = vsub.f32 1.5, %v2468
      %v2470 = vmul.f32 %v2465, %v2469
      %vm2471 = vweird.f32 %v2424
      %vm2472 = vweird.f32 %v2465
      %vm2473 = vmor %vm2471, %vm2472
      %v2474 = vsel %vm2473, %v2465, %v2470
      %v2475 = vrsqrt.pop %v2425
      %v2476 = vmul.f32 %v2475, %v2425
      %v2477 = vmul.f32 %v2476, %v2475
      %v2478 = vmul.f32 0.5, %v2477
      %v2479 = vsub.f32 1.5, %v2478
      %v2480 = vmul.f32 %v2475, %v2479
      %vm2481 = vweird.f32 %v2425
      %vm2482 = vweird.f32 %v2475
      %vm2483 = vmor %vm2481, %vm2482
      %v2484 = vsel %vm2483, %v2475, %v2480
      %v2485 = vrsqrt.pop %v2426
      %v2486 = vmul.f32 %v2485, %v2426
      %v2487 = vmul.f32 %v2486, %v2485
      %v2488 = vmul.f32 0.5, %v2487
      %v2489 = vsub.f32 1.5, %v2488
      %v2490 = vmul.f32 %v2485, %v2489
      %vm2491 = vweird.f32 %v2426
      %vm2492 = vweird.f32 %v2485
      %vm2493 = vmor %vm2491, %vm2492
      %v2494 = vsel %vm2493, %v2485, %v2490
      %v2495 = vrsqrt.pop %v2427
      %v2496 = vmul.f32 %v2495, %v2427
      %v2497 = vmul.f32 %v2496, %v2495
      %v2498 = vmul.f32 0.5, %v2497
      %v2499 = vsub.f32 1.5, %v2498
      %v2500 = vmul.f32 %v2495, %v2499
      %vm2501 = vweird.f32 %v2427
      %vm2502 = vweird.f32 %v2495
      %vm2503 = vmor %vm2501, %vm2502
      %v2504 = vsel %vm2503, %v2495, %v2500
      %v2505 = vrsqrt.pop %v2428
      %v2506 = vmul.f32 %v2505, %v2428
      %v2507 = vmul.f32 %v2506, %v2505
      %v2508 = vmul.f32 0.5, %v2507
      %v2509 = vsub.f32 1.5, %v2508
      %v2510 = vmul.f32 %v2505, %v2509
      %vm2511 = vweird.f32 %v2428
      %vm2512 = vweird.f32 %v2505
      %vm2513 = vmor %vm2511, %vm2512
      %v2514 = vsel %vm2513, %v2505, %v2510
      %v2515 = vrsqrt.pop %v2429
      %v2516 = vmul.f32 %v2515, %v2429
      %v2517 = vmul.f32 %v2516, %v2515
      %v2518 = vmul.f32 0.5, %v2517
      %v2519 = vsub.f32 1.5, %v2518
      %v2520 = vmul.f32 %v2515, %v2519
      %vm2521 = vweird.f32 %v2429
      %vm2522 = vweird.f32 %v2515
      %vm2523 = vmor %vm2521, %vm2522
      %v2524 = vsel %vm2523, %v2515, %v2520
      %v2525 = vrsqrt.pop %v2430
      %v2526 = vmul.f32 %v2525, %v2430
      %v2527 = vmul.f32 %v2526, %v2525
      %v2528 = vmul.f32 0.5, %v2527
      %v2529 = vsub.f32 1.5, %v2528
      %v2530 = vmul.f32 %v2525, %v2529
      %vm2531 = vweird.f32 %v2430
      %vm2532 = vweird.f32 %v2525
      %vm2533 = vmor %vm2531, %vm2532
      %v2534 = vsel %vm2533, %v2525, %v2530
      %v2535 = vrsqrt.pop %v2431
      %v2536 = vmul.f32 %v2535, %v2431
      %v2537 = vmul.f32 %v2536, %v2535
      %v2538 = vmul.f32 0.5, %v2537
      %v2539 = vsub.f32 1.5, %v2538
      %v2540 = vmul.f32 %v2535, %v2539
      %vm2541 = vweird.f32 %v2431
      %vm2542 = vweird.f32 %v2535
      %vm2543 = vmor %vm2541, %vm2542
      %v2544 = vsel %vm2543, %v2535, %v2540
      %v2545 = vrsqrt.pop %v2432
      %v2546 = vmul.f32 %v2545, %v2432
      %v2547 = vmul.f32 %v2546, %v2545
      %v2548 = vmul.f32 0.5, %v2547
      %v2549 = vsub.f32 1.5, %v2548
      %v2550 = vmul.f32 %v2545, %v2549
      %vm2551 = vweird.f32 %v2432
      %vm2552 = vweird.f32 %v2545
      %vm2553 = vmor %vm2551, %vm2552
      %v2554 = vsel %vm2553, %v2545, %v2550
      %v2555 = vrsqrt.pop %v2433
      %v2556 = vmul.f32 %v2555, %v2433
      %v2557 = vmul.f32 %v2556, %v2555
      %v2558 = vmul.f32 0.5, %v2557
      %v2559 = vsub.f32 1.5, %v2558
      %v2560 = vmul.f32 %v2555, %v2559
      %vm2561 = vweird.f32 %v2433
      %vm2562 = vweird.f32 %v2555
      %vm2563 = vmor %vm2561, %vm2562
      %v2564 = vsel %vm2563, %v2555, %v2560
      %v2565 = vrsqrt.pop %v2434
      %v2566 = vmul.f32 %v2565, %v2434
      %v2567 = vmul.f32 %v2566, %v2565
      %v2568 = vmul.f32 0.5, %v2567
      %v2569 = vsub.f32 1.5, %v2568
      %v2570 = vmul.f32 %v2565, %v2569
      %vm2571 = vweird.f32 %v2434
      %vm2572 = vweird.f32 %v2565
      %vm2573 = vmor %vm2571, %vm2572
      %v2574 = vsel %vm2573, %v2565, %v2570
      %v2575 = vrsqrt.pop %v2435
      %v2576 = vmul.f32 %v2575, %v2435
      %v2577 = vmul.f32 %v2576, %v2575
      %v2578 = vmul.f32 0.5, %v2577
      %v2579 = vsub.f32 1.5, %v2578
      %v2580 = vmul.f32 %v2575, %v2579
      %vm2581 = vweird.f32 %v2435
      %vm2582 = vweird.f32 %v2575
      %vm2583 = vmor %vm2581, %vm2582
      %v2584 = vsel %vm2583, %v2575, %v2580
      %v2585 = vrsqrt.pop %v2436
      %v2586 = vmul.f32 %v2585, %v2436
      %v2587 = vmul.f32 %v2586, %v2585
      %v2588 = vmul.f32 0.5, %v2587
      %v2589 = vsub.f32 1.5, %v2588
      %v2590 = vmul.f32 %v2585, %v2589
      %vm2591 = vweird.f32 %v2436
      %vm2592 = vweird.f32 %v2585
      %vm2593 = vmor %vm2591, %vm2592
      %v2594 = vsel %vm2593, %v2585, %v2590
      %v2595 = vrsqrt.pop %v2437
      %v2596 = vmul.f32 %v2595, %v2437
      %v2597 = vmul.f32 %v2596, %v2595
      %v2598 = vmul.f32 0.5, %v2597
      %v2599 = vsub.f32 1.5, %v2598
      %v2600 = vmul.f32 %v2595, %v2599
      %vm2601 = vweird.f32 %v2437
      %vm2602 = vweird.f32 %v2595
      %vm2603 = vmor %vm2601, %vm2602
      %v2604 = vsel %vm2603, %v2595, %v2600
      %v2605 = vrsqrt.pop %v2438
      %v2606 = vmul.f32 %v2605, %v2438
      %v2607 = vmul.f32 %v2606, %v2605
      %v2608 = vmul.f32 0.5, %v2607
      %v2609 = vsub.f32 1.5, %v2608
      %v2610 = vmul.f32 %v2605, %v2609
      %vm2611 = vweird.f32 %v2438
      %vm2612 = vweird.f32 %v2605
      %vm2613 = vmor %vm2611, %vm2612
      %v2614 = vsel %vm2613, %v2605, %v2610
      %v2615 = vrsqrt.pop %v2439
      %v2616 = vmul.f32 %v2615, %v2439
      %v2617 = vmul.f32 %v2616, %v2615
      %v2618 = vmul.f32 0.5, %v2617
      %v2619 = vsub.f32 1.5, %v2618
      %v2620 = vmul.f32 %v2615, %v2619
      %vm2621 = vweird.f32 %v2439
      %vm2622 = vweird.f32 %v2615
      %vm2623 = vmor %vm2621, %vm2622
      %v2624 = vsel %vm2623, %v2615, %v2620
      %v2625 = vrsqrt.pop %v2440
      %v2626 = vmul.f32 %v2625, %v2440
      %v2627 = vmul.f32 %v2626, %v2625
      %v2628 = vmul.f32 0.5, %v2627
      %v2629 = vsub.f32 1.5, %v2628
      %v2630 = vmul.f32 %v2625, %v2629
      %vm2631 = vweird.f32 %v2440
      %vm2632 = vweird.f32 %v2625
      %vm2633 = vmor %vm2631, %vm2632
      %v2634 = vsel %vm2633, %v2625, %v2630
      %v2635 = vrsqrt.pop %v2441
      %v2636 = vmul.f32 %v2635, %v2441
      %v2637 = vmul.f32 %v2636, %v2635
      %v2638 = vmul.f32 0.5, %v2637
      %v2639 = vsub.f32 1.5, %v2638
      %v2640 = vmul.f32 %v2635, %v2639
      %vm2641 = vweird.f32 %v2441
      %vm2642 = vweird.f32 %v2635
      %vm2643 = vmor %vm2641, %vm2642
      %v2644 = vsel %vm2643, %v2635, %v2640
      %v2645 = vrsqrt.pop %v2442
      %v2646 = vmul.f32 %v2645, %v2442
      %v2647 = vmul.f32 %v2646, %v2645
      %v2648 = vmul.f32 0.5, %v2647
      %v2649 = vsub.f32 1.5, %v2648
      %v2650 = vmul.f32 %v2645, %v2649
      %vm2651 = vweird.f32 %v2442
      %vm2652 = vweird.f32 %v2645
      %vm2653 = vmor %vm2651, %vm2652
      %v2654 = vsel %vm2653, %v2645, %v2650
      %v2655 = vrsqrt.pop %v2443
      %v2656 = vmul.f32 %v2655, %v2443
      %v2657 = vmul.f32 %v2656, %v2655
      %v2658 = vmul.f32 0.5, %v2657
      %v2659 = vsub.f32 1.5, %v2658
      %v2660 = vmul.f32 %v2655, %v2659
      %vm2661 = vweird.f32 %v2443
      %vm2662 = vweird.f32 %v2655
      %vm2663 = vmor %vm2661, %vm2662
      %v2664 = vsel %vm2663, %v2655, %v2660
      %v2665 = vrsqrt.pop %v2444
      %v2666 = vmul.f32 %v2665, %v2444
      %v2667 = vmul.f32 %v2666, %v2665
      %v2668 = vmul.f32 0.5, %v2667
      %v2669 = vsub.f32 1.5, %v2668
      %v2670 = vmul.f32 %v2665, %v2669
      %vm2671 = vweird.f32 %v2444
      %vm2672 = vweird.f32 %v2665
      %vm2673 = vmor %vm2671, %vm2672
      %v2674 = vsel %vm2673, %v2665, %v2670
      %v2675 = vrsqrt.pop %v2445
      %v2676 = vmul.f32 %v2675, %v2445
      %v2677 = vmul.f32 %v2676, %v2675
      %v2678 = vmul.f32 0.5, %v2677
      %v2679 = vsub.f32 1.5, %v2678
      %v2680 = vmul.f32 %v2675, %v2679
      %vm2681 = vweird.f32 %v2445
      %vm2682 = vweird.f32 %v2675
      %vm2683 = vmor %vm2681, %vm2682
      %v2684 = vsel %vm2683, %v2675, %v2680
      %v2685 = vrsqrt.pop %v2446
      %v2686 = vmul.f32 %v2685, %v2446
      %v2687 = vmul.f32 %v2686, %v2685
      %v2688 = vmul.f32 0.5, %v2687
      %v2689 = vsub.f32 1.5, %v2688
      %v2690 = vmul.f32 %v2685, %v2689
      %vm2691 = vweird.f32 %v2446
      %vm2692 = vweird.f32 %v2685
      %vm2693 = vmor %vm2691, %vm2692
      %v2694 = vsel %vm2693, %v2685, %v2690
      %v2695 = vrsqrt.pop %v2447
      %v2696 = vmul.f32 %v2695, %v2447
      %v2697 = vmul.f32 %v2696, %v2695
      %v2698 = vmul.f32 0.5, %v2697
      %v2699 = vsub.f32 1.5, %v2698
      %v2700 = vmul.f32 %v2695, %v2699
      %vm2701 = vweird.f32 %v2447
      %vm2702 = vweird.f32 %v2695
      %vm2703 = vmor %vm2701, %vm2702
      %v2704 = vsel %vm2703, %v2695, %v2700
      %v2705 = vrsqrt.pop %v2448
      %v2706 = vmul.f32 %v2705, %v2448
      %v2707 = vmul.f32 %v2706, %v2705
      %v2708 = vmul.f32 0.5, %v2707
      %v2709 = vsub.f32 1.5, %v2708
      %v2710 = vmul.f32 %v2705, %v2709
      %vm2711 = vweird.f32 %v2448
      %vm2712 = vweird.f32 %v2705
      %vm2713 = vmor %vm2711, %vm2712
      %v2714 = vsel %vm2713, %v2705, %v2710
      %v2715 = vrsqrt.pop %v2449
      %v2716 = vmul.f32 %v2715, %v2449
      %v2717 = vmul.f32 %v2716, %v2715
      %v2718 = vmul.f32 0.5, %v2717
      %v2719 = vsub.f32 1.5, %v2718
      %v2720 = vmul.f32 %v2715, %v2719
      %vm2721 = vweird.f32 %v2449
      %vm2722 = vweird.f32 %v2715
      %vm2723 = vmor %vm2721, %vm2722
      %v2724 = vsel %vm2723, %v2715, %v2720
      %v2725 = vrsqrt.pop %v2450
      %v2726 = vmul.f32 %v2725, %v2450
      %v2727 = vmul.f32 %v2726, %v2725
      %v2728 = vmul.f32 0.5, %v2727
      %v2729 = vsub.f32 1.5, %v2728
      %v2730 = vmul.f32 %v2725, %v2729
      %vm2731 = vweird.f32 %v2450
      %vm2732 = vweird.f32 %v2725
      %vm2733 = vmor %vm2731, %vm2732
      %v2734 = vsel %vm2733, %v2725, %v2730
      %v2735 = vrsqrt.pop %v2451
      %v2736 = vmul.f32 %v2735, %v2451
      %v2737 = vmul.f32 %v2736, %v2735
      %v2738 = vmul.f32 0.5, %v2737
      %v2739 = vsub.f32 1.5, %v2738
      %v2740 = vmul.f32 %v2735, %v2739
      %vm2741 = vweird.f32 %v2451
      %vm2742 = vweird.f32 %v2735
      %vm2743 = vmor %vm2741, %vm2742
      %v2744 = vsel %vm2743, %v2735, %v2740
      %v2745 = vrsqrt.pop %v2452
      %v2746 = vmul.f32 %v2745, %v2452
      %v2747 = vmul.f32 %v2746, %v2745
      %v2748 = vmul.f32 0.5, %v2747
      %v2749 = vsub.f32 1.5, %v2748
      %v2750 = vmul.f32 %v2745, %v2749
      %vm2751 = vweird.f32 %v2452
      %vm2752 = vweird.f32 %v2745
      %vm2753 = vmor %vm2751, %vm2752
      %v2754 = vsel %vm2753, %v2745, %v2750
      %v2755 = vrsqrt.pop %v2453
      %v2756 = vmul.f32 %v2755, %v2453
      %v2757 = vmul.f32 %v2756, %v2755
      %v2758 = vmul.f32 0.5, %v2757
      %v2759 = vsub.f32 1.5, %v2758
      %v2760 = vmul.f32 %v2755, %v2759
      %vm2761 = vweird.f32 %v2453
      %vm2762 = vweird.f32 %v2755
      %vm2763 = vmor %vm2761, %vm2762
      %v2764 = vsel %vm2763, %v2755, %v2760
      %v2765 = vrsqrt.pop %v2454
      %v2766 = vmul.f32 %v2765, %v2454
      %v2767 = vmul.f32 %v2766, %v2765
      %v2768 = vmul.f32 0.5, %v2767
      %v2769 = vsub.f32 1.5, %v2768
      %v2770 = vmul.f32 %v2765, %v2769
      %vm2771 = vweird.f32 %v2454
      %vm2772 = vweird.f32 %v2765
      %vm2773 = vmor %vm2771, %vm2772
      %v2774 = vsel %vm2773, %v2765, %v2770
      %v2775 = vmul.f32 %v2103, %v2464
      %v2776 = vmul.f32 %v2104, %v2474
      %v2777 = vmul.f32 %v2105, %v2484
      %v2778 = vmul.f32 %v2106, %v2494
      %v2779 = vmul.f32 %v2107, %v2504
      %v2780 = vmul.f32 %v2108, %v2514
      %v2781 = vmul.f32 %v2109, %v2524
      %v2782 = vmul.f32 %v2110, %v2534
      %v2783 = vmul.f32 %v2111, %v2544
      %v2784 = vmul.f32 %v2112, %v2554
      %v2785 = vmul.f32 %v2113, %v2564
      %v2786 = vmul.f32 %v2114, %v2574
      %v2787 = vmul.f32 %v2115, %v2584
      %v2788 = vmul.f32 %v2116, %v2594
      %v2789 = vmul.f32 %v2117, %v2604
      %v2790 = vmul.f32 %v2118, %v2614
      %v2791 = vmul.f32 %v2119, %v2624
      %v2792 = vmul.f32 %v2120, %v2634
      %v2793 = vmul.f32 %v2121, %v2644
      %v2794 = vmul.f32 %v2122, %v2654
      %v2795 = vmul.f32 %v2123, %v2664
      %v2796 = vmul.f32 %v2124, %v2674
      %v2797 = vmul.f32 %v2125, %v2684
      %v2798 = vmul.f32 %v2126, %v2694
      %v2799 = vmul.f32 %v2127, %v2704
      %v2800 = vmul.f32 %v2128, %v2714
      %v2801 = vmul.f32 %v2129, %v2724
      %v2802 = vmul.f32 %v2130, %v2734
      %v2803 = vmul.f32 %v2131, %v2744
      %v2804 = vmul.f32 %v2132, %v2754
      %v2805 = vmul.f32 %v2133, %v2764
      %v2806 = vmul.f32 %v2134, %v2774
      %2807 = vrot.lane.b32.xlu0 %v175, 116
      %v2808 = vpop.permute.xlu0 %2807
      %2809 = vrot.lane.b32.xlu0 %v176, 116
      %v2810 = vpop.permute.xlu0 %2809
      %2811 = vrot.lane.b32.xlu0 %v177, 116
      %v2812 = vpop.permute.xlu0 %2811
      %2813 = vrot.lane.b32.xlu0 %v178, 116
      %v2814 = vpop.permute.xlu0 %2813
      %2815 = vrot.lane.b32.xlu0 %v179, 116
      %v2816 = vpop.permute.xlu0 %2815
      %2817 = vrot.lane.b32.xlu0 %v180, 116
      %v2818 = vpop.permute.xlu0 %2817
      %2819 = vrot.lane.b32.xlu0 %v181, 116
      %v2820 = vpop.permute.xlu0 %2819
      %2821 = vrot.lane.b32.xlu0 %v182, 116
      %v2822 = vpop.permute.xlu0 %2821
      %2823 = vrot.lane.b32.xlu0 %v183, 116
      %v2824 = vpop.permute.xlu0 %2823
      %2825 = vrot.lane.b32.xlu0 %v184, 116
      %v2826 = vpop.permute.xlu0 %2825
      %2827 = vrot.lane.b32.xlu0 %v185, 116
      %v2828 = vpop.permute.xlu0 %2827
      %2829 = vrot.lane.b32.xlu0 %v186, 116
      %v2830 = vpop.permute.xlu0 %2829
      %2831 = vrot.lane.b32.xlu0 %v187, 116
      %v2832 = vpop.permute.xlu0 %2831
      %2833 = vrot.lane.b32.xlu0 %v188, 116
      %v2834 = vpop.permute.xlu0 %2833
      %2835 = vrot.lane.b32.xlu0 %v189, 116
      %v2836 = vpop.permute.xlu0 %2835
      %2837 = vrot.lane.b32.xlu0 %v190, 116
      %v2838 = vpop.permute.xlu0 %2837
      %2839 = vrot.lane.b32.xlu0 %v191, 116
      %v2840 = vpop.permute.xlu0 %2839
      %2841 = vrot.lane.b32.xlu0 %v192, 116
      %v2842 = vpop.permute.xlu0 %2841
      %2843 = vrot.lane.b32.xlu0 %v193, 116
      %v2844 = vpop.permute.xlu0 %2843
      %2845 = vrot.lane.b32.xlu0 %v194, 116
      %v2846 = vpop.permute.xlu0 %2845
      %2847 = vrot.lane.b32.xlu0 %v195, 116
      %v2848 = vpop.permute.xlu0 %2847
      %2849 = vrot.lane.b32.xlu0 %v196, 116
      %v2850 = vpop.permute.xlu0 %2849
      %2851 = vrot.lane.b32.xlu0 %v197, 116
      %v2852 = vpop.permute.xlu0 %2851
      %2853 = vrot.lane.b32.xlu0 %v198, 116
      %v2854 = vpop.permute.xlu0 %2853
      %2855 = vrot.lane.b32.xlu0 %v199, 116
      %v2856 = vpop.permute.xlu0 %2855
      %2857 = vrot.lane.b32.xlu0 %v200, 116
      %v2858 = vpop.permute.xlu0 %2857
      %2859 = vrot.lane.b32.xlu0 %v201, 116
      %v2860 = vpop.permute.xlu0 %2859
      %2861 = vrot.lane.b32.xlu0 %v202, 116
      %v2862 = vpop.permute.xlu0 %2861
      %2863 = vrot.lane.b32.xlu0 %v203, 116
      %v2864 = vpop.permute.xlu0 %2863
      %2865 = vrot.lane.b32.xlu0 %v204, 116
      %v2866 = vpop.permute.xlu0 %2865
      %2867 = vrot.lane.b32.xlu0 %v205, 116
      %v2868 = vpop.permute.xlu0 %2867
      %2869 = vrot.lane.b32.xlu0 %v206, 116
      %v2870 = vpop.permute.xlu0 %2869
      %v2903 = vsel %vm207, %v2808, 0.0
      %2904 = vadd.xlane.f32.xlu0 %v2903
      %v2905 = vpop.xlane.xlu0 %2904
      %v2906 = vsel %vm207, %v2810, 0.0
      %2907 = vadd.xlane.f32.xlu0 %v2906
      %v2908 = vpop.xlane.xlu0 %2907
      %v2909 = vsel %vm207, %v2812, 0.0
      %2910 = vadd.xlane.f32.xlu0 %v2909
      %v2911 = vpop.xlane.xlu0 %2910
      %v2912 = vsel %vm207, %v2814, 0.0
      %2913 = vadd.xlane.f32.xlu0 %v2912
      %v2914 = vpop.xlane.xlu0 %2913
      %v2915 = vsel %vm207, %v2816, 0.0
      %2916 = vadd.xlane.f32.xlu0 %v2915
      %v2917 = vpop.xlane.xlu0 %2916
      %v2918 = vsel %vm207, %v2818, 0.0
      %2919 = vadd.xlane.f32.xlu0 %v2918
      %v2920 = vpop.xlane.xlu0 %2919
      %v2921 = vsel %vm207, %v2820, 0.0
      %2922 = vadd.xlane.f32.xlu0 %v2921
      %v2923 = vpop.xlane.xlu0 %2922
      %v2924 = vsel %vm207, %v2822, 0.0
      %2925 = vadd.xlane.f32.xlu0 %v2924
      %v2926 = vpop.xlane.xlu0 %2925
      %v2927 = vsel %vm207, %v2824, 0.0
      %2928 = vadd.xlane.f32.xlu0 %v2927
      %v2929 = vpop.xlane.xlu0 %2928
      %v2930 = vsel %vm207, %v2826, 0.0
      %2931 = vadd.xlane.f32.xlu0 %v2930
      %v2932 = vpop.xlane.xlu0 %2931
      %v2933 = vsel %vm207, %v2828, 0.0
      %2934 = vadd.xlane.f32.xlu0 %v2933
      %v2935 = vpop.xlane.xlu0 %2934
      %v2936 = vsel %vm207, %v2830, 0.0
      %2937 = vadd.xlane.f32.xlu0 %v2936
      %v2938 = vpop.xlane.xlu0 %2937
      %v2939 = vsel %vm207, %v2832, 0.0
      %2940 = vadd.xlane.f32.xlu0 %v2939
      %v2941 = vpop.xlane.xlu0 %2940
      %v2942 = vsel %vm207, %v2834, 0.0
      %2943 = vadd.xlane.f32.xlu0 %v2942
      %v2944 = vpop.xlane.xlu0 %2943
      %v2945 = vsel %vm207, %v2836, 0.0
      %2946 = vadd.xlane.f32.xlu0 %v2945
      %v2947 = vpop.xlane.xlu0 %2946
      %v2948 = vsel %vm207, %v2838, 0.0
      %2949 = vadd.xlane.f32.xlu0 %v2948
      %v2950 = vpop.xlane.xlu0 %2949
      %v2951 = vsel %vm207, %v2840, 0.0
      %2952 = vadd.xlane.f32.xlu0 %v2951
      %v2953 = vpop.xlane.xlu0 %2952
      %v2954 = vsel %vm207, %v2842, 0.0
      %2955 = vadd.xlane.f32.xlu0 %v2954
      %v2956 = vpop.xlane.xlu0 %2955
      %v2957 = vsel %vm207, %v2844, 0.0
      %2958 = vadd.xlane.f32.xlu0 %v2957
      %v2959 = vpop.xlane.xlu0 %2958
      %v2960 = vsel %vm207, %v2846, 0.0
      %2961 = vadd.xlane.f32.xlu0 %v2960
      %v2962 = vpop.xlane.xlu0 %2961
      %v2963 = vsel %vm207, %v2848, 0.0
      %2964 = vadd.xlane.f32.xlu0 %v2963
      %v2965 = vpop.xlane.xlu0 %2964
      %v2966 = vsel %vm207, %v2850, 0.0
      %2967 = vadd.xlane.f32.xlu0 %v2966
      %v2968 = vpop.xlane.xlu0 %2967
      %v2969 = vsel %vm207, %v2852, 0.0
      %2970 = vadd.xlane.f32.xlu0 %v2969
      %v2971 = vpop.xlane.xlu0 %2970
      %v2972 = vsel %vm207, %v2854, 0.0
      %2973 = vadd.xlane.f32.xlu0 %v2972
      %v2974 = vpop.xlane.xlu0 %2973
      %v2975 = vsel %vm207, %v2856, 0.0
      %2976 = vadd.xlane.f32.xlu0 %v2975
      %v2977 = vpop.xlane.xlu0 %2976
      %v2978 = vsel %vm207, %v2858, 0.0
      %2979 = vadd.xlane.f32.xlu0 %v2978
      %v2980 = vpop.xlane.xlu0 %2979
      %v2981 = vsel %vm207, %v2860, 0.0
      %2982 = vadd.xlane.f32.xlu0 %v2981
      %v2983 = vpop.xlane.xlu0 %2982
      %v2984 = vsel %vm207, %v2862, 0.0
      %2985 = vadd.xlane.f32.xlu0 %v2984
      %v2986 = vpop.xlane.xlu0 %2985
      %v2987 = vsel %vm207, %v2864, 0.0
      %2988 = vadd.xlane.f32.xlu0 %v2987
      %v2989 = vpop.xlane.xlu0 %2988
      %v2990 = vsel %vm207, %v2866, 0.0
      %2991 = vadd.xlane.f32.xlu0 %v2990
      %v2992 = vpop.xlane.xlu0 %2991
      %v2993 = vsel %vm207, %v2868, 0.0
      %2994 = vadd.xlane.f32.xlu0 %v2993
      %v2995 = vpop.xlane.xlu0 %2994
      %v2996 = vsel %vm207, %v2870, 0.0
      %2997 = vadd.xlane.f32.xlu0 %v2996
      %v2998 = vpop.xlane.xlu0 %2997
      %v2999 = vmul.f32 %v2905, %v310
      %v3000 = vmul.f32 %v2908, %v310
      %v3001 = vmul.f32 %v2911, %v310
      %v3002 = vmul.f32 %v2914, %v310
      %v3003 = vmul.f32 %v2917, %v310
      %v3004 = vmul.f32 %v2920, %v310
      %v3005 = vmul.f32 %v2923, %v310
      %v3006 = vmul.f32 %v2926, %v310
      %v3007 = vmul.f32 %v2929, %v310
      %v3008 = vmul.f32 %v2932, %v310
      %v3009 = vmul.f32 %v2935, %v310
      %v3010 = vmul.f32 %v2938, %v310
      %v3011 = vmul.f32 %v2941, %v310
      %v3012 = vmul.f32 %v2944, %v310
      %v3013 = vmul.f32 %v2947, %v310
      %v3014 = vmul.f32 %v2950, %v310
      %v3015 = vmul.f32 %v2953, %v310
      %v3016 = vmul.f32 %v2956, %v310
      %v3017 = vmul.f32 %v2959, %v310
      %v3018 = vmul.f32 %v2962, %v310
      %v3019 = vmul.f32 %v2965, %v310
      %v3020 = vmul.f32 %v2968, %v310
      %v3021 = vmul.f32 %v2971, %v310
      %v3022 = vmul.f32 %v2974, %v310
      %v3023 = vmul.f32 %v2977, %v310
      %v3024 = vmul.f32 %v2980, %v310
      %v3025 = vmul.f32 %v2983, %v310
      %v3026 = vmul.f32 %v2986, %v310
      %v3027 = vmul.f32 %v2989, %v310
      %v3028 = vmul.f32 %v2992, %v310
      %v3029 = vmul.f32 %v2995, %v310
      %v3030 = vmul.f32 %v2998, %v310
      %v3031 = vsub.f32 %v175, %v2999
      %v3032 = vsub.f32 %v176, %v3000
      %v3033 = vsub.f32 %v177, %v3001
      %v3034 = vsub.f32 %v178, %v3002
      %v3035 = vsub.f32 %v179, %v3003
      %v3036 = vsub.f32 %v180, %v3004
      %v3037 = vsub.f32 %v181, %v3005
      %v3038 = vsub.f32 %v182, %v3006
      %v3039 = vsub.f32 %v183, %v3007
      %v3040 = vsub.f32 %v184, %v3008
      %v3041 = vsub.f32 %v185, %v3009
      %v3042 = vsub.f32 %v186, %v3010
      %v3043 = vsub.f32 %v187, %v3011
      %v3044 = vsub.f32 %v188, %v3012
      %v3045 = vsub.f32 %v189, %v3013
      %v3046 = vsub.f32 %v190, %v3014
      %v3047 = vsub.f32 %v191, %v3015
      %v3048 = vsub.f32 %v192, %v3016
      %v3049 = vsub.f32 %v193, %v3017
      %v3050 = vsub.f32 %v194, %v3018
      %v3051 = vsub.f32 %v195, %v3019
      %v3052 = vsub.f32 %v196, %v3020
      %v3053 = vsub.f32 %v197, %v3021
      %v3054 = vsub.f32 %v198, %v3022
      %v3055 = vsub.f32 %v199, %v3023
      %v3056 = vsub.f32 %v200, %v3024
      %v3057 = vsub.f32 %v201, %v3025
      %v3058 = vsub.f32 %v202, %v3026
      %v3059 = vsub.f32 %v203, %v3027
      %v3060 = vsub.f32 %v204, %v3028
      %v3061 = vsub.f32 %v205, %v3029
      %v3062 = vsub.f32 %v206, %v3030
      %v3063 = vmul.f32 %v3031, %v3031
      %v3064 = vmul.f32 %v3032, %v3032
      %v3065 = vmul.f32 %v3033, %v3033
      %v3066 = vmul.f32 %v3034, %v3034
      %v3067 = vmul.f32 %v3035, %v3035
      %v3068 = vmul.f32 %v3036, %v3036
      %v3069 = vmul.f32 %v3037, %v3037
      %v3070 = vmul.f32 %v3038, %v3038
      %v3071 = vmul.f32 %v3039, %v3039
      %v3072 = vmul.f32 %v3040, %v3040
      %v3073 = vmul.f32 %v3041, %v3041
      %v3074 = vmul.f32 %v3042, %v3042
      %v3075 = vmul.f32 %v3043, %v3043
      %v3076 = vmul.f32 %v3044, %v3044
      %v3077 = vmul.f32 %v3045, %v3045
      %v3078 = vmul.f32 %v3046, %v3046
      %v3079 = vmul.f32 %v3047, %v3047
      %v3080 = vmul.f32 %v3048, %v3048
      %v3081 = vmul.f32 %v3049, %v3049
      %v3082 = vmul.f32 %v3050, %v3050
      %v3083 = vmul.f32 %v3051, %v3051
      %v3084 = vmul.f32 %v3052, %v3052
      %v3085 = vmul.f32 %v3053, %v3053
      %v3086 = vmul.f32 %v3054, %v3054
      %v3087 = vmul.f32 %v3055, %v3055
      %v3088 = vmul.f32 %v3056, %v3056
      %v3089 = vmul.f32 %v3057, %v3057
      %v3090 = vmul.f32 %v3058, %v3058
      %v3091 = vmul.f32 %v3059, %v3059
      %v3092 = vmul.f32 %v3060, %v3060
      %v3093 = vmul.f32 %v3061, %v3061
      %v3094 = vmul.f32 %v3062, %v3062
      %3127 = vrot.lane.b32.xlu0 %v3063, 116
      %v3128 = vpop.permute.xlu0 %3127
      %3129 = vrot.lane.b32.xlu0 %v3064, 116
      %v3130 = vpop.permute.xlu0 %3129
      %3131 = vrot.lane.b32.xlu0 %v3065, 116
      %v3132 = vpop.permute.xlu0 %3131
      %3133 = vrot.lane.b32.xlu0 %v3066, 116
      %v3134 = vpop.permute.xlu0 %3133
      %3135 = vrot.lane.b32.xlu0 %v3067, 116
      %v3136 = vpop.permute.xlu0 %3135
      %3137 = vrot.lane.b32.xlu0 %v3068, 116
      %v3138 = vpop.permute.xlu0 %3137
      %3139 = vrot.lane.b32.xlu0 %v3069, 116
      %v3140 = vpop.permute.xlu0 %3139
      %3141 = vrot.lane.b32.xlu0 %v3070, 116
      %v3142 = vpop.permute.xlu0 %3141
      %3143 = vrot.lane.b32.xlu0 %v3071, 116
      %v3144 = vpop.permute.xlu0 %3143
      %3145 = vrot.lane.b32.xlu0 %v3072, 116
      %v3146 = vpop.permute.xlu0 %3145
      %3147 = vrot.lane.b32.xlu0 %v3073, 116
      %v3148 = vpop.permute.xlu0 %3147
      %3149 = vrot.lane.b32.xlu0 %v3074, 116
      %v3150 = vpop.permute.xlu0 %3149
      %3151 = vrot.lane.b32.xlu0 %v3075, 116
      %v3152 = vpop.permute.xlu0 %3151
      %3153 = vrot.lane.b32.xlu0 %v3076, 116
      %v3154 = vpop.permute.xlu0 %3153
      %3155 = vrot.lane.b32.xlu0 %v3077, 116
      %v3156 = vpop.permute.xlu0 %3155
      %3157 = vrot.lane.b32.xlu0 %v3078, 116
      %v3158 = vpop.permute.xlu0 %3157
      %3159 = vrot.lane.b32.xlu0 %v3079, 116
      %v3160 = vpop.permute.xlu0 %3159
      %3161 = vrot.lane.b32.xlu0 %v3080, 116
      %v3162 = vpop.permute.xlu0 %3161
      %3163 = vrot.lane.b32.xlu0 %v3081, 116
      %v3164 = vpop.permute.xlu0 %3163
      %3165 = vrot.lane.b32.xlu0 %v3082, 116
      %v3166 = vpop.permute.xlu0 %3165
      %3167 = vrot.lane.b32.xlu0 %v3083, 116
      %v3168 = vpop.permute.xlu0 %3167
      %3169 = vrot.lane.b32.xlu0 %v3084, 116
      %v3170 = vpop.permute.xlu0 %3169
      %3171 = vrot.lane.b32.xlu0 %v3085, 116
      %v3172 = vpop.permute.xlu0 %3171
      %3173 = vrot.lane.b32.xlu0 %v3086, 116
      %v3174 = vpop.permute.xlu0 %3173
      %3175 = vrot.lane.b32.xlu0 %v3087, 116
      %v3176 = vpop.permute.xlu0 %3175
      %3177 = vrot.lane.b32.xlu0 %v3088, 116
      %v3178 = vpop.permute.xlu0 %3177
      %3179 = vrot.lane.b32.xlu0 %v3089, 116
      %v3180 = vpop.permute.xlu0 %3179
      %3181 = vrot.lane.b32.xlu0 %v3090, 116
      %v3182 = vpop.permute.xlu0 %3181
      %3183 = vrot.lane.b32.xlu0 %v3091, 116
      %v3184 = vpop.permute.xlu0 %3183
      %3185 = vrot.lane.b32.xlu0 %v3092, 116
      %v3186 = vpop.permute.xlu0 %3185
      %3187 = vrot.lane.b32.xlu0 %v3093, 116
      %v3188 = vpop.permute.xlu0 %3187
      %3189 = vrot.lane.b32.xlu0 %v3094, 116
      %v3190 = vpop.permute.xlu0 %3189
      %v3223 = vsel %vm207, %v3128, 0.0
      %3224 = vadd.xlane.f32.xlu0 %v3223
      %v3225 = vpop.xlane.xlu0 %3224
      %v3226 = vsel %vm207, %v3130, 0.0
      %3227 = vadd.xlane.f32.xlu0 %v3226
      %v3228 = vpop.xlane.xlu0 %3227
      %v3229 = vsel %vm207, %v3132, 0.0
      %3230 = vadd.xlane.f32.xlu0 %v3229
      %v3231 = vpop.xlane.xlu0 %3230
      %v3232 = vsel %vm207, %v3134, 0.0
      %3233 = vadd.xlane.f32.xlu0 %v3232
      %v3234 = vpop.xlane.xlu0 %3233
      %v3235 = vsel %vm207, %v3136, 0.0
      %3236 = vadd.xlane.f32.xlu0 %v3235
      %v3237 = vpop.xlane.xlu0 %3236
      %v3238 = vsel %vm207, %v3138, 0.0
      %3239 = vadd.xlane.f32.xlu0 %v3238
      %v3240 = vpop.xlane.xlu0 %3239
      %v3241 = vsel %vm207, %v3140, 0.0
      %3242 = vadd.xlane.f32.xlu0 %v3241
      %v3243 = vpop.xlane.xlu0 %3242
      %v3244 = vsel %vm207, %v3142, 0.0
      %3245 = vadd.xlane.f32.xlu0 %v3244
      %v3246 = vpop.xlane.xlu0 %3245
      %v3247 = vsel %vm207, %v3144, 0.0
      %3248 = vadd.xlane.f32.xlu0 %v3247
      %v3249 = vpop.xlane.xlu0 %3248
      %v3250 = vsel %vm207, %v3146, 0.0
      %3251 = vadd.xlane.f32.xlu0 %v3250
      %v3252 = vpop.xlane.xlu0 %3251
      %v3253 = vsel %vm207, %v3148, 0.0
      %3254 = vadd.xlane.f32.xlu0 %v3253
      %v3255 = vpop.xlane.xlu0 %3254
      %v3256 = vsel %vm207, %v3150, 0.0
      %3257 = vadd.xlane.f32.xlu0 %v3256
      %v3258 = vpop.xlane.xlu0 %3257
      %v3259 = vsel %vm207, %v3152, 0.0
      %3260 = vadd.xlane.f32.xlu0 %v3259
      %v3261 = vpop.xlane.xlu0 %3260
      %v3262 = vsel %vm207, %v3154, 0.0
      %3263 = vadd.xlane.f32.xlu0 %v3262
      %v3264 = vpop.xlane.xlu0 %3263
      %v3265 = vsel %vm207, %v3156, 0.0
      %3266 = vadd.xlane.f32.xlu0 %v3265
      %v3267 = vpop.xlane.xlu0 %3266
      %v3268 = vsel %vm207, %v3158, 0.0
      %3269 = vadd.xlane.f32.xlu0 %v3268
      %v3270 = vpop.xlane.xlu0 %3269
      %v3271 = vsel %vm207, %v3160, 0.0
      %3272 = vadd.xlane.f32.xlu0 %v3271
      %v3273 = vpop.xlane.xlu0 %3272
      %v3274 = vsel %vm207, %v3162, 0.0
      %3275 = vadd.xlane.f32.xlu0 %v3274
      %v3276 = vpop.xlane.xlu0 %3275
      %v3277 = vsel %vm207, %v3164, 0.0
      %3278 = vadd.xlane.f32.xlu0 %v3277
      %v3279 = vpop.xlane.xlu0 %3278
      %v3280 = vsel %vm207, %v3166, 0.0
      %3281 = vadd.xlane.f32.xlu0 %v3280
      %v3282 = vpop.xlane.xlu0 %3281
      %v3283 = vsel %vm207, %v3168, 0.0
      %3284 = vadd.xlane.f32.xlu0 %v3283
      %v3285 = vpop.xlane.xlu0 %3284
      %v3286 = vsel %vm207, %v3170, 0.0
      %3287 = vadd.xlane.f32.xlu0 %v3286
      %v3288 = vpop.xlane.xlu0 %3287
      %v3289 = vsel %vm207, %v3172, 0.0
      %3290 = vadd.xlane.f32.xlu0 %v3289
      %v3291 = vpop.xlane.xlu0 %3290
      %v3292 = vsel %vm207, %v3174, 0.0
      %3293 = vadd.xlane.f32.xlu0 %v3292
      %v3294 = vpop.xlane.xlu0 %3293
      %v3295 = vsel %vm207, %v3176, 0.0
      %3296 = vadd.xlane.f32.xlu0 %v3295
      %v3297 = vpop.xlane.xlu0 %3296
      %v3298 = vsel %vm207, %v3178, 0.0
      %3299 = vadd.xlane.f32.xlu0 %v3298
      %v3300 = vpop.xlane.xlu0 %3299
      %v3301 = vsel %vm207, %v3180, 0.0
      %3302 = vadd.xlane.f32.xlu0 %v3301
      %v3303 = vpop.xlane.xlu0 %3302
      %v3304 = vsel %vm207, %v3182, 0.0
      %3305 = vadd.xlane.f32.xlu0 %v3304
      %v3306 = vpop.xlane.xlu0 %3305
      %v3307 = vsel %vm207, %v3184, 0.0
      %3308 = vadd.xlane.f32.xlu0 %v3307
      %v3309 = vpop.xlane.xlu0 %3308
      %v3310 = vsel %vm207, %v3186, 0.0
      %3311 = vadd.xlane.f32.xlu0 %v3310
      %v3312 = vpop.xlane.xlu0 %3311
      %v3313 = vsel %vm207, %v3188, 0.0
      %3314 = vadd.xlane.f32.xlu0 %v3313
      %v3315 = vpop.xlane.xlu0 %3314
      %v3316 = vsel %vm207, %v3190, 0.0
      %3317 = vadd.xlane.f32.xlu0 %v3316
      %v3318 = vpop.xlane.xlu0 %3317
      %v3319 = vmul.f32 %v3225, %v310
      %v3320 = vmul.f32 %v3228, %v310
      %v3321 = vmul.f32 %v3231, %v310
      %v3322 = vmul.f32 %v3234, %v310
      %v3323 = vmul.f32 %v3237, %v310
      %v3324 = vmul.f32 %v3240, %v310
      %v3325 = vmul.f32 %v3243, %v310
      %v3326 = vmul.f32 %v3246, %v310
      %v3327 = vmul.f32 %v3249, %v310
      %v3328 = vmul.f32 %v3252, %v310
      %v3329 = vmul.f32 %v3255, %v310
      %v3330 = vmul.f32 %v3258, %v310
      %v3331 = vmul.f32 %v3261, %v310
      %v3332 = vmul.f32 %v3264, %v310
      %v3333 = vmul.f32 %v3267, %v310
      %v3334 = vmul.f32 %v3270, %v310
      %v3335 = vmul.f32 %v3273, %v310
      %v3336 = vmul.f32 %v3276, %v310
      %v3337 = vmul.f32 %v3279, %v310
      %v3338 = vmul.f32 %v3282, %v310
      %v3339 = vmul.f32 %v3285, %v310
      %v3340 = vmul.f32 %v3288, %v310
      %v3341 = vmul.f32 %v3291, %v310
      %v3342 = vmul.f32 %v3294, %v310
      %v3343 = vmul.f32 %v3297, %v310
      %v3344 = vmul.f32 %v3300, %v310
      %v3345 = vmul.f32 %v3303, %v310
      %v3346 = vmul.f32 %v3306, %v310
      %v3347 = vmul.f32 %v3309, %v310
      %v3348 = vmul.f32 %v3312, %v310
      %v3349 = vmul.f32 %v3315, %v310
      %v3350 = vmul.f32 %v3318, %v310
      %v3351 = vadd.f32 %v3319, 1e-06
      %v3352 = vadd.f32 %v3320, 1e-06
      %v3353 = vadd.f32 %v3321, 1e-06
      %v3354 = vadd.f32 %v3322, 1e-06
      %v3355 = vadd.f32 %v3323, 1e-06
      %v3356 = vadd.f32 %v3324, 1e-06
      %v3357 = vadd.f32 %v3325, 1e-06
      %v3358 = vadd.f32 %v3326, 1e-06
      %v3359 = vadd.f32 %v3327, 1e-06
      %v3360 = vadd.f32 %v3328, 1e-06
      %v3361 = vadd.f32 %v3329, 1e-06
      %v3362 = vadd.f32 %v3330, 1e-06
      %v3363 = vadd.f32 %v3331, 1e-06
      %v3364 = vadd.f32 %v3332, 1e-06
      %v3365 = vadd.f32 %v3333, 1e-06
      %v3366 = vadd.f32 %v3334, 1e-06
      %v3367 = vadd.f32 %v3335, 1e-06
      %v3368 = vadd.f32 %v3336, 1e-06
      %v3369 = vadd.f32 %v3337, 1e-06
      %v3370 = vadd.f32 %v3338, 1e-06
      %v3371 = vadd.f32 %v3339, 1e-06
      %v3372 = vadd.f32 %v3340, 1e-06
      %v3373 = vadd.f32 %v3341, 1e-06
      %v3374 = vadd.f32 %v3342, 1e-06
      %v3375 = vadd.f32 %v3343, 1e-06
      %v3376 = vadd.f32 %v3344, 1e-06
      %v3377 = vadd.f32 %v3345, 1e-06
      %v3378 = vadd.f32 %v3346, 1e-06
      %v3379 = vadd.f32 %v3347, 1e-06
      %v3380 = vadd.f32 %v3348, 1e-06
      %v3381 = vadd.f32 %v3349, 1e-06
      %v3382 = vadd.f32 %v3350, 1e-06
      %v3383 = vrsqrt.pop %v3351
      %v3384 = vmul.f32 %v3383, %v3351
      %v3385 = vmul.f32 %v3384, %v3383
      %v3386 = vmul.f32 0.5, %v3385
      %v3387 = vsub.f32 1.5, %v3386
      %v3388 = vmul.f32 %v3383, %v3387
      %vm3389 = vweird.f32 %v3351
      %vm3390 = vweird.f32 %v3383
      %vm3391 = vmor %vm3389, %vm3390
      %v3392 = vsel %vm3391, %v3383, %v3388
      %v3393 = vrsqrt.pop %v3352
      %v3394 = vmul.f32 %v3393, %v3352
      %v3395 = vmul.f32 %v3394, %v3393
      %v3396 = vmul.f32 0.5, %v3395
      %v3397 = vsub.f32 1.5, %v3396
      %v3398 = vmul.f32 %v3393, %v3397
      %vm3399 = vweird.f32 %v3352
      %vm3400 = vweird.f32 %v3393
      %vm3401 = vmor %vm3399, %vm3400
      %v3402 = vsel %vm3401, %v3393, %v3398
      %v3403 = vrsqrt.pop %v3353
      %v3404 = vmul.f32 %v3403, %v3353
      %v3405 = vmul.f32 %v3404, %v3403
      %v3406 = vmul.f32 0.5, %v3405
      %v3407 = vsub.f32 1.5, %v3406
      %v3408 = vmul.f32 %v3403, %v3407
      %vm3409 = vweird.f32 %v3353
      %vm3410 = vweird.f32 %v3403
      %vm3411 = vmor %vm3409, %vm3410
      %v3412 = vsel %vm3411, %v3403, %v3408
      %v3413 = vrsqrt.pop %v3354
      %v3414 = vmul.f32 %v3413, %v3354
      %v3415 = vmul.f32 %v3414, %v3413
      %v3416 = vmul.f32 0.5, %v3415
      %v3417 = vsub.f32 1.5, %v3416
      %v3418 = vmul.f32 %v3413, %v3417
      %vm3419 = vweird.f32 %v3354
      %vm3420 = vweird.f32 %v3413
      %vm3421 = vmor %vm3419, %vm3420
      %v3422 = vsel %vm3421, %v3413, %v3418
      %v3423 = vrsqrt.pop %v3355
      %v3424 = vmul.f32 %v3423, %v3355
      %v3425 = vmul.f32 %v3424, %v3423
      %v3426 = vmul.f32 0.5, %v3425
      %v3427 = vsub.f32 1.5, %v3426
      %v3428 = vmul.f32 %v3423, %v3427
      %vm3429 = vweird.f32 %v3355
      %vm3430 = vweird.f32 %v3423
      %vm3431 = vmor %vm3429, %vm3430
      %v3432 = vsel %vm3431, %v3423, %v3428
      %v3433 = vrsqrt.pop %v3356
      %v3434 = vmul.f32 %v3433, %v3356
      %v3435 = vmul.f32 %v3434, %v3433
      %v3436 = vmul.f32 0.5, %v3435
      %v3437 = vsub.f32 1.5, %v3436
      %v3438 = vmul.f32 %v3433, %v3437
      %vm3439 = vweird.f32 %v3356
      %vm3440 = vweird.f32 %v3433
      %vm3441 = vmor %vm3439, %vm3440
      %v3442 = vsel %vm3441, %v3433, %v3438
      %v3443 = vrsqrt.pop %v3357
      %v3444 = vmul.f32 %v3443, %v3357
      %v3445 = vmul.f32 %v3444, %v3443
      %v3446 = vmul.f32 0.5, %v3445
      %v3447 = vsub.f32 1.5, %v3446
      %v3448 = vmul.f32 %v3443, %v3447
      %vm3449 = vweird.f32 %v3357
      %vm3450 = vweird.f32 %v3443
      %vm3451 = vmor %vm3449, %vm3450
      %v3452 = vsel %vm3451, %v3443, %v3448
      %v3453 = vrsqrt.pop %v3358
      %v3454 = vmul.f32 %v3453, %v3358
      %v3455 = vmul.f32 %v3454, %v3453
      %v3456 = vmul.f32 0.5, %v3455
      %v3457 = vsub.f32 1.5, %v3456
      %v3458 = vmul.f32 %v3453, %v3457
      %vm3459 = vweird.f32 %v3358
      %vm3460 = vweird.f32 %v3453
      %vm3461 = vmor %vm3459, %vm3460
      %v3462 = vsel %vm3461, %v3453, %v3458
      %v3463 = vrsqrt.pop %v3359
      %v3464 = vmul.f32 %v3463, %v3359
      %v3465 = vmul.f32 %v3464, %v3463
      %v3466 = vmul.f32 0.5, %v3465
      %v3467 = vsub.f32 1.5, %v3466
      %v3468 = vmul.f32 %v3463, %v3467
      %vm3469 = vweird.f32 %v3359
      %vm3470 = vweird.f32 %v3463
      %vm3471 = vmor %vm3469, %vm3470
      %v3472 = vsel %vm3471, %v3463, %v3468
      %v3473 = vrsqrt.pop %v3360
      %v3474 = vmul.f32 %v3473, %v3360
      %v3475 = vmul.f32 %v3474, %v3473
      %v3476 = vmul.f32 0.5, %v3475
      %v3477 = vsub.f32 1.5, %v3476
      %v3478 = vmul.f32 %v3473, %v3477
      %vm3479 = vweird.f32 %v3360
      %vm3480 = vweird.f32 %v3473
      %vm3481 = vmor %vm3479, %vm3480
      %v3482 = vsel %vm3481, %v3473, %v3478
      %v3483 = vrsqrt.pop %v3361
      %v3484 = vmul.f32 %v3483, %v3361
      %v3485 = vmul.f32 %v3484, %v3483
      %v3486 = vmul.f32 0.5, %v3485
      %v3487 = vsub.f32 1.5, %v3486
      %v3488 = vmul.f32 %v3483, %v3487
      %vm3489 = vweird.f32 %v3361
      %vm3490 = vweird.f32 %v3483
      %vm3491 = vmor %vm3489, %vm3490
      %v3492 = vsel %vm3491, %v3483, %v3488
      %v3493 = vrsqrt.pop %v3362
      %v3494 = vmul.f32 %v3493, %v3362
      %v3495 = vmul.f32 %v3494, %v3493
      %v3496 = vmul.f32 0.5, %v3495
      %v3497 = vsub.f32 1.5, %v3496
      %v3498 = vmul.f32 %v3493, %v3497
      %vm3499 = vweird.f32 %v3362
      %vm3500 = vweird.f32 %v3493
      %vm3501 = vmor %vm3499, %vm3500
      %v3502 = vsel %vm3501, %v3493, %v3498
      %v3503 = vrsqrt.pop %v3363
      %v3504 = vmul.f32 %v3503, %v3363
      %v3505 = vmul.f32 %v3504, %v3503
      %v3506 = vmul.f32 0.5, %v3505
      %v3507 = vsub.f32 1.5, %v3506
      %v3508 = vmul.f32 %v3503, %v3507
      %vm3509 = vweird.f32 %v3363
      %vm3510 = vweird.f32 %v3503
      %vm3511 = vmor %vm3509, %vm3510
      %v3512 = vsel %vm3511, %v3503, %v3508
      %v3513 = vrsqrt.pop %v3364
      %v3514 = vmul.f32 %v3513, %v3364
      %v3515 = vmul.f32 %v3514, %v3513
      %v3516 = vmul.f32 0.5, %v3515
      %v3517 = vsub.f32 1.5, %v3516
      %v3518 = vmul.f32 %v3513, %v3517
      %vm3519 = vweird.f32 %v3364
      %vm3520 = vweird.f32 %v3513
      %vm3521 = vmor %vm3519, %vm3520
      %v3522 = vsel %vm3521, %v3513, %v3518
      %v3523 = vrsqrt.pop %v3365
      %v3524 = vmul.f32 %v3523, %v3365
      %v3525 = vmul.f32 %v3524, %v3523
      %v3526 = vmul.f32 0.5, %v3525
      %v3527 = vsub.f32 1.5, %v3526
      %v3528 = vmul.f32 %v3523, %v3527
      %vm3529 = vweird.f32 %v3365
      %vm3530 = vweird.f32 %v3523
      %vm3531 = vmor %vm3529, %vm3530
      %v3532 = vsel %vm3531, %v3523, %v3528
      %v3533 = vrsqrt.pop %v3366
      %v3534 = vmul.f32 %v3533, %v3366
      %v3535 = vmul.f32 %v3534, %v3533
      %v3536 = vmul.f32 0.5, %v3535
      %v3537 = vsub.f32 1.5, %v3536
      %v3538 = vmul.f32 %v3533, %v3537
      %vm3539 = vweird.f32 %v3366
      %vm3540 = vweird.f32 %v3533
      %vm3541 = vmor %vm3539, %vm3540
      %v3542 = vsel %vm3541, %v3533, %v3538
      %v3543 = vrsqrt.pop %v3367
      %v3544 = vmul.f32 %v3543, %v3367
      %v3545 = vmul.f32 %v3544, %v3543
      %v3546 = vmul.f32 0.5, %v3545
      %v3547 = vsub.f32 1.5, %v3546
      %v3548 = vmul.f32 %v3543, %v3547
      %vm3549 = vweird.f32 %v3367
      %vm3550 = vweird.f32 %v3543
      %vm3551 = vmor %vm3549, %vm3550
      %v3552 = vsel %vm3551, %v3543, %v3548
      %v3553 = vrsqrt.pop %v3368
      %v3554 = vmul.f32 %v3553, %v3368
      %v3555 = vmul.f32 %v3554, %v3553
      %v3556 = vmul.f32 0.5, %v3555
      %v3557 = vsub.f32 1.5, %v3556
      %v3558 = vmul.f32 %v3553, %v3557
      %vm3559 = vweird.f32 %v3368
      %vm3560 = vweird.f32 %v3553
      %vm3561 = vmor %vm3559, %vm3560
      %v3562 = vsel %vm3561, %v3553, %v3558
      %v3563 = vrsqrt.pop %v3369
      %v3564 = vmul.f32 %v3563, %v3369
      %v3565 = vmul.f32 %v3564, %v3563
      %v3566 = vmul.f32 0.5, %v3565
      %v3567 = vsub.f32 1.5, %v3566
      %v3568 = vmul.f32 %v3563, %v3567
      %vm3569 = vweird.f32 %v3369
      %vm3570 = vweird.f32 %v3563
      %vm3571 = vmor %vm3569, %vm3570
      %v3572 = vsel %vm3571, %v3563, %v3568
      %v3573 = vrsqrt.pop %v3370
      %v3574 = vmul.f32 %v3573, %v3370
      %v3575 = vmul.f32 %v3574, %v3573
      %v3576 = vmul.f32 0.5, %v3575
      %v3577 = vsub.f32 1.5, %v3576
      %v3578 = vmul.f32 %v3573, %v3577
      %vm3579 = vweird.f32 %v3370
      %vm3580 = vweird.f32 %v3573
      %vm3581 = vmor %vm3579, %vm3580
      %v3582 = vsel %vm3581, %v3573, %v3578
      %v3583 = vrsqrt.pop %v3371
      %v3584 = vmul.f32 %v3583, %v3371
      %v3585 = vmul.f32 %v3584, %v3583
      %v3586 = vmul.f32 0.5, %v3585
      %v3587 = vsub.f32 1.5, %v3586
      %v3588 = vmul.f32 %v3583, %v3587
      %vm3589 = vweird.f32 %v3371
      %vm3590 = vweird.f32 %v3583
      %vm3591 = vmor %vm3589, %vm3590
      %v3592 = vsel %vm3591, %v3583, %v3588
      %v3593 = vrsqrt.pop %v3372
      %v3594 = vmul.f32 %v3593, %v3372
      %v3595 = vmul.f32 %v3594, %v3593
      %v3596 = vmul.f32 0.5, %v3595
      %v3597 = vsub.f32 1.5, %v3596
      %v3598 = vmul.f32 %v3593, %v3597
      %vm3599 = vweird.f32 %v3372
      %vm3600 = vweird.f32 %v3593
      %vm3601 = vmor %vm3599, %vm3600
      %v3602 = vsel %vm3601, %v3593, %v3598
      %v3603 = vrsqrt.pop %v3373
      %v3604 = vmul.f32 %v3603, %v3373
      %v3605 = vmul.f32 %v3604, %v3603
      %v3606 = vmul.f32 0.5, %v3605
      %v3607 = vsub.f32 1.5, %v3606
      %v3608 = vmul.f32 %v3603, %v3607
      %vm3609 = vweird.f32 %v3373
      %vm3610 = vweird.f32 %v3603
      %vm3611 = vmor %vm3609, %vm3610
      %v3612 = vsel %vm3611, %v3603, %v3608
      %v3613 = vrsqrt.pop %v3374
      %v3614 = vmul.f32 %v3613, %v3374
      %v3615 = vmul.f32 %v3614, %v3613
      %v3616 = vmul.f32 0.5, %v3615
      %v3617 = vsub.f32 1.5, %v3616
      %v3618 = vmul.f32 %v3613, %v3617
      %vm3619 = vweird.f32 %v3374
      %vm3620 = vweird.f32 %v3613
      %vm3621 = vmor %vm3619, %vm3620
      %v3622 = vsel %vm3621, %v3613, %v3618
      %v3623 = vrsqrt.pop %v3375
      %v3624 = vmul.f32 %v3623, %v3375
      %v3625 = vmul.f32 %v3624, %v3623
      %v3626 = vmul.f32 0.5, %v3625
      %v3627 = vsub.f32 1.5, %v3626
      %v3628 = vmul.f32 %v3623, %v3627
      %vm3629 = vweird.f32 %v3375
      %vm3630 = vweird.f32 %v3623
      %vm3631 = vmor %vm3629, %vm3630
      %v3632 = vsel %vm3631, %v3623, %v3628
      %v3633 = vrsqrt.pop %v3376
      %v3634 = vmul.f32 %v3633, %v3376
      %v3635 = vmul.f32 %v3634, %v3633
      %v3636 = vmul.f32 0.5, %v3635
      %v3637 = vsub.f32 1.5, %v3636
      %v3638 = vmul.f32 %v3633, %v3637
      %vm3639 = vweird.f32 %v3376
      %vm3640 = vweird.f32 %v3633
      %vm3641 = vmor %vm3639, %vm3640
      %v3642 = vsel %vm3641, %v3633, %v3638
      %v3643 = vrsqrt.pop %v3377
      %v3644 = vmul.f32 %v3643, %v3377
      %v3645 = vmul.f32 %v3644, %v3643
      %v3646 = vmul.f32 0.5, %v3645
      %v3647 = vsub.f32 1.5, %v3646
      %v3648 = vmul.f32 %v3643, %v3647
      %vm3649 = vweird.f32 %v3377
      %vm3650 = vweird.f32 %v3643
      %vm3651 = vmor %vm3649, %vm3650
      %v3652 = vsel %vm3651, %v3643, %v3648
      %v3653 = vrsqrt.pop %v3378
      %v3654 = vmul.f32 %v3653, %v3378
      %v3655 = vmul.f32 %v3654, %v3653
      %v3656 = vmul.f32 0.5, %v3655
      %v3657 = vsub.f32 1.5, %v3656
      %v3658 = vmul.f32 %v3653, %v3657
      %vm3659 = vweird.f32 %v3378
      %vm3660 = vweird.f32 %v3653
      %vm3661 = vmor %vm3659, %vm3660
      %v3662 = vsel %vm3661, %v3653, %v3658
      %v3663 = vrsqrt.pop %v3379
      %v3664 = vmul.f32 %v3663, %v3379
      %v3665 = vmul.f32 %v3664, %v3663
      %v3666 = vmul.f32 0.5, %v3665
      %v3667 = vsub.f32 1.5, %v3666
      %v3668 = vmul.f32 %v3663, %v3667
      %vm3669 = vweird.f32 %v3379
      %vm3670 = vweird.f32 %v3663
      %vm3671 = vmor %vm3669, %vm3670
      %v3672 = vsel %vm3671, %v3663, %v3668
      %v3673 = vrsqrt.pop %v3380
      %v3674 = vmul.f32 %v3673, %v3380
      %v3675 = vmul.f32 %v3674, %v3673
      %v3676 = vmul.f32 0.5, %v3675
      %v3677 = vsub.f32 1.5, %v3676
      %v3678 = vmul.f32 %v3673, %v3677
      %vm3679 = vweird.f32 %v3380
      %vm3680 = vweird.f32 %v3673
      %vm3681 = vmor %vm3679, %vm3680
      %v3682 = vsel %vm3681, %v3673, %v3678
      %v3683 = vrsqrt.pop %v3381
      %v3684 = vmul.f32 %v3683, %v3381
      %v3685 = vmul.f32 %v3684, %v3683
      %v3686 = vmul.f32 0.5, %v3685
      %v3687 = vsub.f32 1.5, %v3686
      %v3688 = vmul.f32 %v3683, %v3687
      %vm3689 = vweird.f32 %v3381
      %vm3690 = vweird.f32 %v3683
      %vm3691 = vmor %vm3689, %vm3690
      %v3692 = vsel %vm3691, %v3683, %v3688
      %v3693 = vrsqrt.pop %v3382
      %v3694 = vmul.f32 %v3693, %v3382
      %v3695 = vmul.f32 %v3694, %v3693
      %v3696 = vmul.f32 0.5, %v3695
      %v3697 = vsub.f32 1.5, %v3696
      %v3698 = vmul.f32 %v3693, %v3697
      %vm3699 = vweird.f32 %v3382
      %vm3700 = vweird.f32 %v3693
      %vm3701 = vmor %vm3699, %vm3700
      %v3702 = vsel %vm3701, %v3693, %v3698
      %v3703 = vmul.f32 %v3031, %v3392
      %v3704 = vmul.f32 %v3032, %v3402
      %v3705 = vmul.f32 %v3033, %v3412
      %v3706 = vmul.f32 %v3034, %v3422
      %v3707 = vmul.f32 %v3035, %v3432
      %v3708 = vmul.f32 %v3036, %v3442
      %v3709 = vmul.f32 %v3037, %v3452
      %v3710 = vmul.f32 %v3038, %v3462
      %v3711 = vmul.f32 %v3039, %v3472
      %v3712 = vmul.f32 %v3040, %v3482
      %v3713 = vmul.f32 %v3041, %v3492
      %v3714 = vmul.f32 %v3042, %v3502
      %v3715 = vmul.f32 %v3043, %v3512
      %v3716 = vmul.f32 %v3044, %v3522
      %v3717 = vmul.f32 %v3045, %v3532
      %v3718 = vmul.f32 %v3046, %v3542
      %v3719 = vmul.f32 %v3047, %v3552
      %v3720 = vmul.f32 %v3048, %v3562
      %v3721 = vmul.f32 %v3049, %v3572
      %v3722 = vmul.f32 %v3050, %v3582
      %v3723 = vmul.f32 %v3051, %v3592
      %v3724 = vmul.f32 %v3052, %v3602
      %v3725 = vmul.f32 %v3053, %v3612
      %v3726 = vmul.f32 %v3054, %v3622
      %v3727 = vmul.f32 %v3055, %v3632
      %v3728 = vmul.f32 %v3056, %v3642
      %v3729 = vmul.f32 %v3057, %v3652
      %v3730 = vmul.f32 %v3058, %v3662
      %v3731 = vmul.f32 %v3059, %v3672
      %v3732 = vmul.f32 %v3060, %v3682
      %v3733 = vmul.f32 %v3061, %v3692
      %v3734 = vmul.f32 %v3062, %v3702
      %v3735 = vsel %vm207, %v887, %v1847
      %v3736 = vsel %vm207, %v888, %v1848
      %v3737 = vsel %vm207, %v889, %v1849
      %v3738 = vsel %vm207, %v890, %v1850
      %v3739 = vsel %vm207, %v891, %v1851
      %v3740 = vsel %vm207, %v892, %v1852
      %v3741 = vsel %vm207, %v893, %v1853
      %v3742 = vsel %vm207, %v894, %v1854
      %v3743 = vsel %vm207, %v895, %v1855
      %v3744 = vsel %vm207, %v896, %v1856
      %v3745 = vsel %vm207, %v897, %v1857
      %v3746 = vsel %vm207, %v898, %v1858
      %v3747 = vsel %vm207, %v899, %v1859
      %v3748 = vsel %vm207, %v900, %v1860
      %v3749 = vsel %vm207, %v901, %v1861
      %v3750 = vsel %vm207, %v902, %v1862
      %v3751 = vsel %vm207, %v903, %v1863
      %v3752 = vsel %vm207, %v904, %v1864
      %v3753 = vsel %vm207, %v905, %v1865
      %v3754 = vsel %vm207, %v906, %v1866
      %v3755 = vsel %vm207, %v907, %v1867
      %v3756 = vsel %vm207, %v908, %v1868
      %v3757 = vsel %vm207, %v909, %v1869
      %v3758 = vsel %vm207, %v910, %v1870
      %v3759 = vsel %vm207, %v911, %v1871
      %v3760 = vsel %vm207, %v912, %v1872
      %v3761 = vsel %vm207, %v913, %v1873
      %v3762 = vsel %vm207, %v914, %v1874
      %v3763 = vsel %vm207, %v915, %v1875
      %v3764 = vsel %vm207, %v916, %v1876
      %v3765 = vsel %vm207, %v917, %v1877
      %v3766 = vsel %vm207, %v918, %v1878
      %vm3767 = vcmask 64512
      %v3768 = vsel %vm3767, %v3735, %v2775
      %v3769 = vsel %vm3767, %v3736, %v2776
      %v3770 = vsel %vm3767, %v3737, %v2777
      %v3771 = vsel %vm3767, %v3738, %v2778
      %v3772 = vsel %vm3767, %v3739, %v2779
      %v3773 = vsel %vm3767, %v3740, %v2780
      %v3774 = vsel %vm3767, %v3741, %v2781
      %v3775 = vsel %vm3767, %v3742, %v2782
      %v3776 = vsel %vm3767, %v3743, %v2783
      %v3777 = vsel %vm3767, %v3744, %v2784
      %v3778 = vsel %vm3767, %v3745, %v2785
      %v3779 = vsel %vm3767, %v3746, %v2786
      %v3780 = vsel %vm3767, %v3747, %v2787
      %v3781 = vsel %vm3767, %v3748, %v2788
      %v3782 = vsel %vm3767, %v3749, %v2789
      %v3783 = vsel %vm3767, %v3750, %v2790
      %v3784 = vsel %vm3767, %v3751, %v2791
      %v3785 = vsel %vm3767, %v3752, %v2792
      %v3786 = vsel %vm3767, %v3753, %v2793
      %v3787 = vsel %vm3767, %v3754, %v2794
      %v3788 = vsel %vm3767, %v3755, %v2795
      %v3789 = vsel %vm3767, %v3756, %v2796
      %v3790 = vsel %vm3767, %v3757, %v2797
      %v3791 = vsel %vm3767, %v3758, %v2798
      %v3792 = vsel %vm3767, %v3759, %v2799
      %v3793 = vsel %vm3767, %v3760, %v2800
      %v3794 = vsel %vm3767, %v3761, %v2801
      %v3795 = vsel %vm3767, %v3762, %v2802
      %v3796 = vsel %vm3767, %v3763, %v2803
      %v3797 = vsel %vm3767, %v3764, %v2804
      %v3798 = vsel %vm3767, %v3765, %v2805
      %v3799 = vsel %vm3767, %v3766, %v2806
      %vm3800 = vcmask 97280
      %v3801 = vsel %vm3800, %v3768, %v3703
      %v3802 = vsel %vm3800, %v3769, %v3704
      %v3803 = vsel %vm3800, %v3770, %v3705
      %v3804 = vsel %vm3800, %v3771, %v3706
      %v3805 = vsel %vm3800, %v3772, %v3707
      %v3806 = vsel %vm3800, %v3773, %v3708
      %v3807 = vsel %vm3800, %v3774, %v3709
      %v3808 = vsel %vm3800, %v3775, %v3710
      %v3809 = vsel %vm3800, %v3776, %v3711
      %v3810 = vsel %vm3800, %v3777, %v3712
      %v3811 = vsel %vm3800, %v3778, %v3713
      %v3812 = vsel %vm3800, %v3779, %v3714
      %v3813 = vsel %vm3800, %v3780, %v3715
      %v3814 = vsel %vm3800, %v3781, %v3716
      %v3815 = vsel %vm3800, %v3782, %v3717
      %v3816 = vsel %vm3800, %v3783, %v3718
      %v3817 = vsel %vm3800, %v3784, %v3719
      %v3818 = vsel %vm3800, %v3785, %v3720
      %v3819 = vsel %vm3800, %v3786, %v3721
      %v3820 = vsel %vm3800, %v3787, %v3722
      %v3821 = vsel %vm3800, %v3788, %v3723
      %v3822 = vsel %vm3800, %v3789, %v3724
      %v3823 = vsel %vm3800, %v3790, %v3725
      %v3824 = vsel %vm3800, %v3791, %v3726
      %v3825 = vsel %vm3800, %v3792, %v3727
      %v3826 = vsel %vm3800, %v3793, %v3728
      %v3827 = vsel %vm3800, %v3794, %v3729
      %v3828 = vsel %vm3800, %v3795, %v3730
      %v3829 = vsel %vm3800, %v3796, %v3731
      %v3830 = vsel %vm3800, %v3797, %v3732
      %v3831 = vsel %vm3800, %v3798, %v3733
      %v3832 = vsel %vm3800, %v3799, %v3734
      %v3833 = vpack.c.bf16 %v3802, %v3801
      %v3834 = vpack.c.bf16 %v3804, %v3803
      %v3835 = vpack.c.bf16 %v3806, %v3805
      %v3836 = vpack.c.bf16 %v3808, %v3807
      %v3837 = vpack.c.bf16 %v3810, %v3809
      %v3838 = vpack.c.bf16 %v3812, %v3811
      %v3839 = vpack.c.bf16 %v3814, %v3813
      %v3840 = vpack.c.bf16 %v3816, %v3815
      %v3841 = vpack.c.bf16 %v3818, %v3817
      %v3842 = vpack.c.bf16 %v3820, %v3819
      %v3843 = vpack.c.bf16 %v3822, %v3821
      %v3844 = vpack.c.bf16 %v3824, %v3823
      %v3845 = vpack.c.bf16 %v3826, %v3825
      %v3846 = vpack.c.bf16 %v3828, %v3827
      %v3847 = vpack.c.bf16 %v3830, %v3829
      %v3848 = vpack.c.bf16 %v3832, %v3831
      %v3849 = vld [vmem:[%s1] sm:$0xf]
      %v3850 = vld [vmem:[%s1 + $0x4] sm:$0xf]
      %v3851 = vld [vmem:[%s2] sm:$0x1]
      %v3853 = vperm.slane %v3851, 0
      %v3857 = vunpack.c.l.b16 %v3849
      %v3858 = vunpack.c.l.b16 %v3850
      %v3859 = vpack.c.b16 %v3858, %v3857
      %vm3861 = vcmask 130048
      %v3863 = vsel %vm3861, %v3833, 0
      %v3866 = vsel %vm3861, %v3834, 0
      %v3869 = vsel %vm3861, %v3835, 0
      %v3872 = vsel %vm3861, %v3836, 0
      %v3875 = vsel %vm3861, %v3837, 0
      %v3878 = vsel %vm3861, %v3838, 0
      %v3881 = vsel %vm3861, %v3839, 0
      %v3884 = vsel %vm3861, %v3840, 0
      %v3887 = vsel %vm3861, %v3841, 0
      %v3890 = vsel %vm3861, %v3842, 0
      %v3893 = vsel %vm3861, %v3843, 0
      %v3896 = vsel %vm3861, %v3844, 0
      %v3899 = vsel %vm3861, %v3845, 0
      %v3902 = vsel %vm3861, %v3846, 0
      %v3905 = vsel %vm3861, %v3847, 0
      %v3908 = vsel %vm3861, %v3848, 0
      %3910 = vmatpush.bf16.msra.mxu0 0
      %3911 = vmatpush.bf16.msra.mxu0 0
      %3912 = vmatpush.bf16.msra.mxu0 0
      %3913 = vmatpush.bf16.msra.mxu0 0
      %3914 = vmatpush.bf16.msra.mxu0 0
      %3915 = vmatpush.bf16.msra.mxu0 0
      %3916 = vmatpush.bf16.msra.mxu0 0
      %3917 = vmatpush.bf16.msra.mxu0 %v3859
      %3918 = vmatmul.bf16.gmra.mxu0 %v3863
      %v3919 = vpop.f32.mrf.mxu0
      %v3920 = vadd.f32 %v3853, %v3919
      %v3921 = vpop.f32.mrf.mxu0
      %v3922 = vadd.f32 %v3853, %v3921
      %3923 = vmatmul.bf16.gmra.mxu0 %v3866
      %v3924 = vpop.f32.mrf.mxu0
      %v3925 = vadd.f32 %v3853, %v3924
      %v3926 = vpop.f32.mrf.mxu0
      %v3927 = vadd.f32 %v3853, %v3926
      %3928 = vmatmul.bf16.gmra.mxu0 %v3869
      %v3929 = vpop.f32.mrf.mxu0
      %v3930 = vadd.f32 %v3853, %v3929
      %v3931 = vpop.f32.mrf.mxu0
      %v3932 = vadd.f32 %v3853, %v3931
      %3933 = vmatmul.bf16.gmra.mxu0 %v3872
      %v3934 = vpop.f32.mrf.mxu0
      %v3935 = vadd.f32 %v3853, %v3934
      %v3936 = vpop.f32.mrf.mxu0
      %v3937 = vadd.f32 %v3853, %v3936
      %3938 = vmatmul.bf16.gmra.mxu0 %v3875
      %v3939 = vpop.f32.mrf.mxu0
      %v3940 = vadd.f32 %v3853, %v3939
      %v3941 = vpop.f32.mrf.mxu0
      %v3942 = vadd.f32 %v3853, %v3941
      %3943 = vmatmul.bf16.gmra.mxu0 %v3878
      %v3944 = vpop.f32.mrf.mxu0
      %v3945 = vadd.f32 %v3853, %v3944
      %v3946 = vpop.f32.mrf.mxu0
      %v3947 = vadd.f32 %v3853, %v3946
      %3948 = vmatmul.bf16.gmra.mxu0 %v3881
      %v3949 = vpop.f32.mrf.mxu0
      %v3950 = vadd.f32 %v3853, %v3949
      %v3951 = vpop.f32.mrf.mxu0
      %v3952 = vadd.f32 %v3853, %v3951
      %3953 = vmatmul.bf16.gmra.mxu0 %v3884
      %v3954 = vpop.f32.mrf.mxu0
      %v3955 = vadd.f32 %v3853, %v3954
      %v3956 = vpop.f32.mrf.mxu0
      %v3957 = vadd.f32 %v3853, %v3956
      %3958 = vmatmul.bf16.gmra.mxu0 %v3887
      %v3959 = vpop.f32.mrf.mxu0
      %v3960 = vadd.f32 %v3853, %v3959
      %v3961 = vpop.f32.mrf.mxu0
      %v3962 = vadd.f32 %v3853, %v3961
      %3963 = vmatmul.bf16.gmra.mxu0 %v3890
      %v3964 = vpop.f32.mrf.mxu0
      %v3965 = vadd.f32 %v3853, %v3964
      %v3966 = vpop.f32.mrf.mxu0
      %v3967 = vadd.f32 %v3853, %v3966
      %3968 = vmatmul.bf16.gmra.mxu0 %v3893
      %v3969 = vpop.f32.mrf.mxu0
      %v3970 = vadd.f32 %v3853, %v3969
      %v3971 = vpop.f32.mrf.mxu0
      %v3972 = vadd.f32 %v3853, %v3971
      %3973 = vmatmul.bf16.gmra.mxu0 %v3896
      %v3974 = vpop.f32.mrf.mxu0
      %v3975 = vadd.f32 %v3853, %v3974
      %v3976 = vpop.f32.mrf.mxu0
      %v3977 = vadd.f32 %v3853, %v3976
      %3978 = vmatmul.bf16.gmra.mxu0 %v3899
      %v3979 = vpop.f32.mrf.mxu0
      %v3980 = vadd.f32 %v3853, %v3979
      %v3981 = vpop.f32.mrf.mxu0
      %v3982 = vadd.f32 %v3853, %v3981
      %3983 = vmatmul.bf16.gmra.mxu0 %v3902
      %v3984 = vpop.f32.mrf.mxu0
      %v3985 = vadd.f32 %v3853, %v3984
      %v3986 = vpop.f32.mrf.mxu0
      %v3987 = vadd.f32 %v3853, %v3986
      %3988 = vmatmul.bf16.gmra.mxu0 %v3905
      %v3989 = vpop.f32.mrf.mxu0
      %v3990 = vadd.f32 %v3853, %v3989
      %v3991 = vpop.f32.mrf.mxu0
      %v3992 = vadd.f32 %v3853, %v3991
      %3993 = vmatmul.bf16.gmra.mxu0 %v3908
      %v3994 = vpop.f32.mrf.mxu0
      %v3995 = vadd.f32 %v3853, %v3994
      %v3996 = vpop.f32.mrf.mxu0
      %v3997 = vadd.f32 %v3853, %v3996
      %3998 = vdwg.mxu0
      %3999 = vst.msk [vmem:[%s172] sm:$0xff] %vm3767, %v3920
      %4000 = vst.msk [vmem:[%s172 + $0x8] sm:$0xff] %vm3767, %v3922
      %4001 = vst.msk [vmem:[%s172 + $0x10] sm:$0xff] %vm3767, %v3925
      %4002 = vst.msk [vmem:[%s172 + $0x18] sm:$0xff] %vm3767, %v3927
      %4003 = vst.msk [vmem:[%s172 + $0x20] sm:$0xff] %vm3767, %v3930
      %4004 = vst.msk [vmem:[%s172 + $0x28] sm:$0xff] %vm3767, %v3932
      %4005 = vst.msk [vmem:[%s172 + $0x30] sm:$0xff] %vm3767, %v3935
      %4006 = vst.msk [vmem:[%s172 + $0x38] sm:$0xff] %vm3767, %v3937
      %4007 = vst.msk [vmem:[%s172 + $0x40] sm:$0xff] %vm3767, %v3940
      %4008 = vst.msk [vmem:[%s172 + $0x48] sm:$0xff] %vm3767, %v3942
      %4009 = vst.msk [vmem:[%s172 + $0x50] sm:$0xff] %vm3767, %v3945
      %4010 = vst.msk [vmem:[%s172 + $0x58] sm:$0xff] %vm3767, %v3947
      %4011 = vst.msk [vmem:[%s172 + $0x60] sm:$0xff] %vm3767, %v3950
      %4012 = vst.msk [vmem:[%s172 + $0x68] sm:$0xff] %vm3767, %v3952
      %4013 = vst.msk [vmem:[%s172 + $0x70] sm:$0xff] %vm3767, %v3955
      %4014 = vst.msk [vmem:[%s172 + $0x78] sm:$0xff] %vm3767, %v3957
      %4015 = vst.msk [vmem:[%s172 + $0x80] sm:$0xff] %vm3767, %v3960
      %4016 = vst.msk [vmem:[%s172 + $0x88] sm:$0xff] %vm3767, %v3962
      %4017 = vst.msk [vmem:[%s172 + $0x90] sm:$0xff] %vm3767, %v3965
      %4018 = vst.msk [vmem:[%s172 + $0x98] sm:$0xff] %vm3767, %v3967
      %4019 = vst.msk [vmem:[%s172 + $0xa0] sm:$0xff] %vm3767, %v3970
      %4020 = vst.msk [vmem:[%s172 + $0xa8] sm:$0xff] %vm3767, %v3972
      %4021 = vst.msk [vmem:[%s172 + $0xb0] sm:$0xff] %vm3767, %v3975
      %4022 = vst.msk [vmem:[%s172 + $0xb8] sm:$0xff] %vm3767, %v3977
      %4023 = vst.msk [vmem:[%s172 + $0xc0] sm:$0xff] %vm3767, %v3980
      %4024 = vst.msk [vmem:[%s172 + $0xc8] sm:$0xff] %vm3767, %v3982
      %4025 = vst.msk [vmem:[%s172 + $0xd0] sm:$0xff] %vm3767, %v3985
      %4026 = vst.msk [vmem:[%s172 + $0xd8] sm:$0xff] %vm3767, %v3987
      %4027 = vst.msk [vmem:[%s172 + $0xe0] sm:$0xff] %vm3767, %v3990
      %4028 = vst.msk [vmem:[%s172 + $0xe8] sm:$0xff] %vm3767, %v3992
      %4029 = vst.msk [vmem:[%s172 + $0xf0] sm:$0xff] %vm3767, %v3995
      %4030 = vst.msk [vmem:[%s172 + $0xf8] sm:$0xff] %vm3767, %v3997
      %s4031 = smul.u32 32, %s14
      %p4032 = scmp.lt.s32.totalorder %s4031, 63
      %s4033 = scalar_select %p4032, %s4031, 63
      %s4034 = smul.addr %s4033, 8
      %s4035 = scalar_lea.vmem %s3, %s4034
      // Predicated region
      $region33: #{downsample.1} parent=31 // pred_check
        %p4036 = pneg %p100
      $region34: #{downsample.1} parent=31 // pred_check_branch
        %4038 = sbr.rel (%p4036) target = $region36
      $region35: #{downsample.1} parent=31 // pred_region
        %s4039 = smul.u32 32, %s14
      $region36: #{downsample.1} parent=31 // pred_fallthru
        _
    $region32: #{downsample.1} parent=5 // pred_fallthru
      _
    %p4040 = scmp.le.s32.totalorder 2, %s9
    // Predicated region
    $region37: #{downsample.1} parent=5 // pred_check
      %p4041 = pneg %p4040
    $region38: #{downsample.1} parent=5 // pred_check_branch
      %4043 = sbr.rel (%p4041) target = $region40
    $region39: #{downsample.1} parent=5 // pred_region
      %s4044 = ssub.s32 %s9, 2
      // Predicated region
      $region41: #{downsample.1} parent=39 // pred_check
        %p4045 = pneg %p106
      $region42: #{downsample.1} parent=39 // pred_check_branch
        %4047 = sbr.rel (%p4045) target = $region44
      $region43: #{downsample.1} parent=39 // pred_region
        %s4048 = smul.u32 32, %s15
        %p4049 = scmp.lt.s32.totalorder %s4048, 63
        %s4050 = scalar_select %p4049, %s4048, 63
        %s4051 = smul.addr %s4050, 8
        %s4052 = scalar_lea.vmem %s3, %s4051
      $region44: #{downsample.1} parent=39 // pred_fallthru
        _
    $region40: #{downsample.1} parent=5 // pred_fallthru
      _
  $region6: #{downsample.1} parent=0 // loop_footer
    %s13 = sadd.s32 1, %s9
  $region7: #{downsample.1} parent=0 // loop_footer_branch
    %8 = sbr.rel target = $region3
  $region8: #{downsample.1} parent=0 // loop_exit
    _

</llo_original>
